<compile_context>
chip_gen: v7x
topology: tpu7x:2x2x1
jax: 0.10.0
libtpu: 0.0.40
codegen_flags: <defaults>
</compile_context>

<pallas_src>
import jax
import jax.numpy as jnp
from jax import lax
from jax.experimental import pallas as pl
from jax.experimental.pallas import tpu as pltpu

KSIZE = 7
PAD = 3  # padding = 3 for kernel_size = 7


def spatial_attention(x, weight):
    """x: (B, C, H, W), weight: (1, 2, 7, 7) -> (B, 1, H, W)."""
    B, C, H, W = x.shape
    assert C >= 1
    assert weight.shape == (1, 2, KSIZE, KSIZE)
    w_flat = weight.reshape(-1).astype(jnp.float32)  # (2*7*7,) as [c, kh, kw]

    # Lane-dense conv width and aligned padded-scratch dimensions.
    L = pl.cdiv(W, 128) * 128            # accumulation width (multiple of 128)
    HP = pl.cdiv(H + 2 * PAD, 8) * 8     # sublane-aligned padded height
    WP = L + 128                         # lane-aligned padded width (>= L + 6)
    HPAD = H + 2 * PAD                   # scratch rows actually read by the conv
    WPAD = W + 2 * PAD                   # scratch cols actually read by the conv

    def kernel(w_ref, x_ref, o_ref, pad_ref):
        # w_ref  : SMEM (2*7*7,) f32   conv weights, flattened [c, kh, kw]
        # x_ref  : VMEM (C, H, W)      one batch element
        # o_ref  : VMEM (H, W)         sigmoid(conv) output for that element
        # pad_ref: VMEM (2, HP, WP)    zero-padded, aligned [avg, max] maps

        # ---- single-pass channel reduction: running f32 sum + running max ----
        x0 = x_ref[0].astype(jnp.float32)                       # (H, W)

        def body(i, carry):
            s, m = carry
            xi = x_ref[i].astype(jnp.float32)
            return s + xi, jnp.maximum(m, xi)

        s, mx = lax.fori_loop(1, C, body, (x0, x0), unroll=True)
        avg = s * (1.0 / C)

        # ---- refresh the padded maps: zero only the (H+6, W+6) window the conv
        #      reads, then overwrite its interior.  The alignment tail
        #      (rows >= H+6, cols >= W+6) is never read for kept output pixels,
        #      so it is left untouched. ----
        zeros_win = jnp.zeros((HPAD, WPAD), jnp.float32)
        pad_ref[0, 0:HPAD, 0:WPAD] = zeros_win
        pad_ref[1, 0:HPAD, 0:WPAD] = zeros_win
        pad_ref[0, PAD:PAD + H, PAD:PAD + W] = avg
        pad_ref[1, PAD:PAD + H, PAD:PAD + W] = mx

        # ---- hoist all 2*7*7 weights out of the tap loops (SMEM scalar reads) ----
        ws = [w_ref[i] for i in range(2 * KSIZE * KSIZE)]

        # ---- 7x7 conv, 2 in-channels -> 1 out-channel:
        #   q_{c,kw}[r, j] = pad_c[r, j + kw]            (14 lane-offset reads)
        #   t_kh           = sum_{c,kw} w[c,kh,kw]*q_{c,kw}   (lane-dense FMAs)
        #   out[i, j]      = sum_kh t_kh[i + kh, j]      (7 sublane-offset slices)
        t = [jnp.zeros((HP, L), jnp.float32) for _ in range(KSIZE)]
        for c in range(2):
            for kw in range(KSIZE):
                q = pad_ref[c, :, kw:kw + L]             # (HP, L), lane offset kw
                for kh in range(KSIZE):
                    w = ws[c * KSIZE * KSIZE + kh * KSIZE + kw]
                    t[kh] = t[kh] + w * q

        acc = t[0][0:H, :]
        for kh in range(1, KSIZE):
            acc = acc + t[kh][kh:kh + H, :]

        o_ref[...] = jax.nn.sigmoid(acc[:, :W]).astype(o_ref.dtype)

    return pl.pallas_call(
        kernel,
        out_shape=jax.ShapeDtypeStruct((B, 1, H, W), x.dtype),
        grid_spec=pltpu.PrefetchScalarGridSpec(
            num_scalar_prefetch=0,
            grid=(B,),
            in_specs=[
                pl.BlockSpec(memory_space=pltpu.MemorySpace.SMEM),      # weights
                pl.BlockSpec((None, C, H, W), lambda b: (b, 0, 0, 0)),  # x batch
            ],
            out_specs=pl.BlockSpec((None, None, H, W), lambda b: (b, 0, 0, 0)),
            scratch_shapes=[
                pltpu.VMEM((2, HP, WP), jnp.float32),
            ],
        ),
        compiler_params=pltpu.CompilerParams(
            dimension_semantics=("parallel",),      # batch axis -> multi-TC chips
            vmem_limit_bytes=32 * 1024 * 1024,
        ),
    )(w_flat, x)


def reference(x, weight):
    """Pure-JAX reference of the PyTorch forward pass."""
    avg = jnp.mean(x, axis=1, keepdims=True)
    mx = jnp.max(x, axis=1, keepdims=True)
    cat = jnp.concatenate([avg, mx], axis=1)
    y = jax.lax.conv_general_dilated(
        cat, weight,
        window_strides=(1, 1),
        padding=((PAD, PAD), (PAD, PAD)),
        dimension_numbers=("NCHW", "OIHW", "NCHW"),
    )
    return jax.nn.sigmoid(y)


if __name__ == "__main__":
    key = jax.random.PRNGKey(0)
    kx, kw = jax.random.split(key)

    B, C, H, W = 2, 4, 16, 16
    x = jax.random.normal(kx, (B, C, H, W), dtype=jnp.float32)

    # Deterministic weight init matching nn.Conv2d default range:
    # uniform(-1/sqrt(fan_in), 1/sqrt(fan_in)), fan_in = 2*7*7.
    fan_in = 2 * KSIZE * KSIZE
    bound = 1.0 / (fan_in ** 0.5)
    weight = jax.random.uniform(
        kw, (1, 2, KSIZE, KSIZE), minval=-bound, maxval=bound, dtype=jnp.float32
    )

    out = spatial_attention(x, weight)
    out = jax.block_until_ready(out)

    ref = reference(x, weight)
    assert out.shape == (B, 1, H, W), out.shape
    max_err = float(jnp.max(jnp.abs(out - ref)))
    assert jnp.allclose(out, ref, atol=1e-5, rtol=1e-5), max_err

    print("KERNEL_OK")
</pallas_src>

<mosaic_0001>
module attributes {stable_mosaic.version = 11 : i64} {
  func.func @kernel(%arg0: i32, %arg1: memref<98xf32, #tpu.memory_space<smem>>, %arg2: memref<1x4x16x16xf32, #tpu.memory_space<vmem>>, %arg3: memref<1x1x16x16xf32, #tpu.memory_space<vmem>>, %arg4: memref<2x24x256xf32, #tpu.memory_space<vmem>>) attributes {dimension_semantics = [#tpu.dimension_semantics<parallel>], iteration_bounds = array<i64: 2>, scalar_prefetch = 0 : i64, scratch_operands = 1 : i64, tpu.core_type = #tpu.core_type<tc>, window_params = [{transform_indices = @transform_0, window_bounds = array<i64: 98>}, {transform_indices = @transform_1, window_bounds = array<i64: 1, 4, 16, 16>}, {transform_indices = @transform_2, window_bounds = array<i64: 1, 1, 16, 16>}]} {
    %c0 = arith.constant 0 : index
    %c0_0 = arith.constant 0 : index
    %c0_1 = arith.constant 0 : index
    %c0_2 = arith.constant 0 : index
    %0 = vector.load %arg2[%c0, %c0_0, %c0_1, %c0_2] : memref<1x4x16x16xf32, #tpu.memory_space<vmem>>, vector<1x1x16x16xf32>
    %1 = vector.shape_cast %0 : vector<1x1x16x16xf32> to vector<16x16xf32>
    %c1_i32 = arith.constant 1 : i32
    %c0_3 = arith.constant 0 : index
    %2 = arith.index_cast %c1_i32 : i32 to index
    %c0_4 = arith.constant 0 : index
    %c0_5 = arith.constant 0 : index
    %3 = vector.load %arg2[%c0_3, %2, %c0_4, %c0_5] : memref<1x4x16x16xf32, #tpu.memory_space<vmem>>, vector<1x1x16x16xf32>
    %4 = vector.shape_cast %3 : vector<1x1x16x16xf32> to vector<16x16xf32>
    %5 = arith.addf %1, %4 : vector<16x16xf32>
    %6 = arith.maximumf %1, %4 : vector<16x16xf32>
    %c2_i32 = arith.constant 2 : i32
    %c0_6 = arith.constant 0 : index
    %7 = arith.index_cast %c2_i32 : i32 to index
    %c0_7 = arith.constant 0 : index
    %c0_8 = arith.constant 0 : index
    %8 = vector.load %arg2[%c0_6, %7, %c0_7, %c0_8] : memref<1x4x16x16xf32, #tpu.memory_space<vmem>>, vector<1x1x16x16xf32>
    %9 = vector.shape_cast %8 : vector<1x1x16x16xf32> to vector<16x16xf32>
    %10 = arith.addf %5, %9 : vector<16x16xf32>
    %11 = arith.maximumf %6, %9 : vector<16x16xf32>
    %c3_i32 = arith.constant 3 : i32
    %c0_9 = arith.constant 0 : index
    %12 = arith.index_cast %c3_i32 : i32 to index
    %c0_10 = arith.constant 0 : index
    %c0_11 = arith.constant 0 : index
    %13 = vector.load %arg2[%c0_9, %12, %c0_10, %c0_11] : memref<1x4x16x16xf32, #tpu.memory_space<vmem>>, vector<1x1x16x16xf32>
    %14 = vector.shape_cast %13 : vector<1x1x16x16xf32> to vector<16x16xf32>
    %15 = arith.addf %10, %14 : vector<16x16xf32>
    %16 = arith.maximumf %11, %14 : vector<16x16xf32>
    %c3_i32_12 = arith.constant 3 : i32
    %cst = arith.constant 2.500000e-01 : f32
    %17 = vector.broadcast %cst : f32 to vector<16x16xf32>
    %18 = arith.mulf %15, %17 : vector<16x16xf32>
    %cst_13 = arith.constant 0.000000e+00 : f32
    %19 = vector.broadcast %cst_13 : f32 to vector<22x22xf32>
    %c0_14 = arith.constant 0 : index
    %c0_15 = arith.constant 0 : index
    %c0_16 = arith.constant 0 : index
    %20 = vector.load %arg4[%c0_14, %c0_15, %c0_16] : memref<2x24x256xf32, #tpu.memory_space<vmem>>, vector<1x22x22xf32>
    %21 = vector.shape_cast %20 : vector<1x22x22xf32> to vector<22x22xf32>
    %22 = vector.shape_cast %19 : vector<22x22xf32> to vector<1x22x22xf32>
    tpu.vector_store %arg4[%c0_14, %c0_15, %c0_16], %22 {strides = array<i32>} : memref<2x24x256xf32, #tpu.memory_space<vmem>>, vector<1x22x22xf32>,
    %c1 = arith.constant 1 : index
    %c0_17 = arith.constant 0 : index
    %c0_18 = arith.constant 0 : index
    %23 = vector.load %arg4[%c1, %c0_17, %c0_18] : memref<2x24x256xf32, #tpu.memory_space<vmem>>, vector<1x22x22xf32>
    %24 = vector.shape_cast %23 : vector<1x22x22xf32> to vector<22x22xf32>
    %25 = vector.shape_cast %19 : vector<22x22xf32> to vector<1x22x22xf32>
    tpu.vector_store %arg4[%c1, %c0_17, %c0_18], %25 {strides = array<i32>} : memref<2x24x256xf32, #tpu.memory_space<vmem>>, vector<1x22x22xf32>,
    %c0_19 = arith.constant 0 : index
    %c3 = arith.constant 3 : index
    %c3_20 = arith.constant 3 : index
    %26 = vector.load %arg4[%c0_19, %c3, %c3_20] : memref<2x24x256xf32, #tpu.memory_space<vmem>>, vector<1x16x16xf32>
    %27 = vector.shape_cast %26 : vector<1x16x16xf32> to vector<16x16xf32>
    %28 = vector.shape_cast %18 : vector<16x16xf32> to vector<1x16x16xf32>
    tpu.vector_store %arg4[%c0_19, %c3, %c3_20], %28 {strides = array<i32>} : memref<2x24x256xf32, #tpu.memory_space<vmem>>, vector<1x16x16xf32>,
    %c1_21 = arith.constant 1 : index
    %c3_22 = arith.constant 3 : index
    %c3_23 = arith.constant 3 : index
    %29 = vector.load %arg4[%c1_21, %c3_22, %c3_23] : memref<2x24x256xf32, #tpu.memory_space<vmem>>, vector<1x16x16xf32>
    %30 = vector.shape_cast %29 : vector<1x16x16xf32> to vector<16x16xf32>
    %31 = vector.shape_cast %16 : vector<16x16xf32> to vector<1x16x16xf32>
    tpu.vector_store %arg4[%c1_21, %c3_22, %c3_23], %31 {strides = array<i32>} : memref<2x24x256xf32, #tpu.memory_space<vmem>>, vector<1x16x16xf32>,
    %c0_24 = arith.constant 0 : index
    %32 = memref.load %arg1[%c0_24] : memref<98xf32, #tpu.memory_space<smem>>
    %c1_25 = arith.constant 1 : index
    %33 = memref.load %arg1[%c1_25] : memref<98xf32, #tpu.memory_space<smem>>
    %c2 = arith.constant 2 : index
    %34 = memref.load %arg1[%c2] : memref<98xf32, #tpu.memory_space<smem>>
    %c3_26 = arith.constant 3 : index
    %35 = memref.load %arg1[%c3_26] : memref<98xf32, #tpu.memory_space<smem>>
    %c4 = arith.constant 4 : index
    %36 = memref.load %arg1[%c4] : memref<98xf32, #tpu.memory_space<smem>>
    %c5 = arith.constant 5 : index
    %37 = memref.load %arg1[%c5] : memref<98xf32, #tpu.memory_space<smem>>
    %c6 = arith.constant 6 : index
    %38 = memref.load %arg1[%c6] : memref<98xf32, #tpu.memory_space<smem>>
    %c7 = arith.constant 7 : index
    %39 = memref.load %arg1[%c7] : memref<98xf32, #tpu.memory_space<smem>>
    %c8 = arith.constant 8 : index
    %40 = memref.load %arg1[%c8] : memref<98xf32, #tpu.memory_space<smem>>
    %c9 = arith.constant 9 : index
    %41 = memref.load %arg1[%c9] : memref<98xf32, #tpu.memory_space<smem>>
    %c10 = arith.constant 10 : index
    %42 = memref.load %arg1[%c10] : memref<98xf32, #tpu.memory_space<smem>>
    %c11 = arith.constant 11 : index
    %43 = memref.load %arg1[%c11] : memref<98xf32, #tpu.memory_space<smem>>
    %c12 = arith.constant 12 : index
    %44 = memref.load %arg1[%c12] : memref<98xf32, #tpu.memory_space<smem>>
    %c13 = arith.constant 13 : index
    %45 = memref.load %arg1[%c13] : memref<98xf32, #tpu.memory_space<smem>>
    %c14 = arith.constant 14 : index
    %46 = memref.load %arg1[%c14] : memref<98xf32, #tpu.memory_space<smem>>
    %c15 = arith.constant 15 : index
    %47 = memref.load %arg1[%c15] : memref<98xf32, #tpu.memory_space<smem>>
    %c16 = arith.constant 16 : index
    %48 = memref.load %arg1[%c16] : memref<98xf32, #tpu.memory_space<smem>>
    %c17 = arith.constant 17 : index
    %49 = memref.load %arg1[%c17] : memref<98xf32, #tpu.memory_space<smem>>
    %c18 = arith.constant 18 : index
    %50 = memref.load %arg1[%c18] : memref<98xf32, #tpu.memory_space<smem>>
    %c19 = arith.constant 19 : index
    %51 = memref.load %arg1[%c19] : memref<98xf32, #tpu.memory_space<smem>>
    %c20 = arith.constant 20 : index
    %52 = memref.load %arg1[%c20] : memref<98xf32, #tpu.memory_space<smem>>
    %c21 = arith.constant 21 : index
    %53 = memref.load %arg1[%c21] : memref<98xf32, #tpu.memory_space<smem>>
    %c22 = arith.constant 22 : index
    %54 = memref.load %arg1[%c22] : memref<98xf32, #tpu.memory_space<smem>>
    %c23 = arith.constant 23 : index
    %55 = memref.load %arg1[%c23] : memref<98xf32, #tpu.memory_space<smem>>
    %c24 = arith.constant 24 : index
    %56 = memref.load %arg1[%c24] : memref<98xf32, #tpu.memory_space<smem>>
    %c25 = arith.constant 25 : index
    %57 = memref.load %arg1[%c25] : memref<98xf32, #tpu.memory_space<smem>>
    %c26 = arith.constant 26 : index
    %58 = memref.load %arg1[%c26] : memref<98xf32, #tpu.memory_space<smem>>
    %c27 = arith.constant 27 : index
    %59 = memref.load %arg1[%c27] : memref<98xf32, #tpu.memory_space<smem>>
    %c28 = arith.constant 28 : index
    %60 = memref.load %arg1[%c28] : memref<98xf32, #tpu.memory_space<smem>>
    %c29 = arith.constant 29 : index
    %61 = memref.load %arg1[%c29] : memref<98xf32, #tpu.memory_space<smem>>
    %c30 = arith.constant 30 : index
    %62 = memref.load %arg1[%c30] : memref<98xf32, #tpu.memory_space<smem>>
    %c31 = arith.constant 31 : index
    %63 = memref.load %arg1[%c31] : memref<98xf32, #tpu.memory_space<smem>>
    %c32 = arith.constant 32 : index
    %64 = memref.load %arg1[%c32] : memref<98xf32, #tpu.memory_space<smem>>
    %c33 = arith.constant 33 : index
    %65 = memref.load %arg1[%c33] : memref<98xf32, #tpu.memory_space<smem>>
    %c34 = arith.constant 34 : index
    %66 = memref.load %arg1[%c34] : memref<98xf32, #tpu.memory_space<smem>>
    %c35 = arith.constant 35 : index
    %67 = memref.load %arg1[%c35] : memref<98xf32, #tpu.memory_space<smem>>
    %c36 = arith.constant 36 : index
    %68 = memref.load %arg1[%c36] : memref<98xf32, #tpu.memory_space<smem>>
    %c37 = arith.constant 37 : index
    %69 = memref.load %arg1[%c37] : memref<98xf32, #tpu.memory_space<smem>>
    %c38 = arith.constant 38 : index
    %70 = memref.load %arg1[%c38] : memref<98xf32, #tpu.memory_space<smem>>
    %c39 = arith.constant 39 : index
    %71 = memref.load %arg1[%c39] : memref<98xf32, #tpu.memory_space<smem>>
    %c40 = arith.constant 40 : index
    %72 = memref.load %arg1[%c40] : memref<98xf32, #tpu.memory_space<smem>>
    %c41 = arith.constant 41 : index
    %73 = memref.load %arg1[%c41] : memref<98xf32, #tpu.memory_space<smem>>
    %c42 = arith.constant 42 : index
    %74 = memref.load %arg1[%c42] : memref<98xf32, #tpu.memory_space<smem>>
    %c43 = arith.constant 43 : index
    %75 = memref.load %arg1[%c43] : memref<98xf32, #tpu.memory_space<smem>>
    %c44 = arith.constant 44 : index
    %76 = memref.load %arg1[%c44] : memref<98xf32, #tpu.memory_space<smem>>
    %c45 = arith.constant 45 : index
    %77 = memref.load %arg1[%c45] : memref<98xf32, #tpu.memory_space<smem>>
    %c46 = arith.constant 46 : index
    %78 = memref.load %arg1[%c46] : memref<98xf32, #tpu.memory_space<smem>>
    %c47 = arith.constant 47 : index
    %79 = memref.load %arg1[%c47] : memref<98xf32, #tpu.memory_space<smem>>
    %c48 = arith.constant 48 : index
    %80 = memref.load %arg1[%c48] : memref<98xf32, #tpu.memory_space<smem>>
    %c49 = arith.constant 49 : index
    %81 = memref.load %arg1[%c49] : memref<98xf32, #tpu.memory_space<smem>>
    %c50 = arith.constant 50 : index
    %82 = memref.load %arg1[%c50] : memref<98xf32, #tpu.memory_space<smem>>
    %c51 = arith.constant 51 : index
    %83 = memref.load %arg1[%c51] : memref<98xf32, #tpu.memory_space<smem>>
    %c52 = arith.constant 52 : index
    %84 = memref.load %arg1[%c52] : memref<98xf32, #tpu.memory_space<smem>>
    %c53 = arith.constant 53 : index
    %85 = memref.load %arg1[%c53] : memref<98xf32, #tpu.memory_space<smem>>
    %c54 = arith.constant 54 : index
    %86 = memref.load %arg1[%c54] : memref<98xf32, #tpu.memory_space<smem>>
    %c55 = arith.constant 55 : index
    %87 = memref.load %arg1[%c55] : memref<98xf32, #tpu.memory_space<smem>>
    %c56 = arith.constant 56 : index
    %88 = memref.load %arg1[%c56] : memref<98xf32, #tpu.memory_space<smem>>
    %c57 = arith.constant 57 : index
    %89 = memref.load %arg1[%c57] : memref<98xf32, #tpu.memory_space<smem>>
    %c58 = arith.constant 58 : index
    %90 = memref.load %arg1[%c58] : memref<98xf32, #tpu.memory_space<smem>>
    %c59 = arith.constant 59 : index
    %91 = memref.load %arg1[%c59] : memref<98xf32, #tpu.memory_space<smem>>
    %c60 = arith.constant 60 : index
    %92 = memref.load %arg1[%c60] : memref<98xf32, #tpu.memory_space<smem>>
    %c61 = arith.constant 61 : index
    %93 = memref.load %arg1[%c61] : memref<98xf32, #tpu.memory_space<smem>>
    %c62 = arith.constant 62 : index
    %94 = memref.load %arg1[%c62] : memref<98xf32, #tpu.memory_space<smem>>
    %c63 = arith.constant 63 : index
    %95 = memref.load %arg1[%c63] : memref<98xf32, #tpu.memory_space<smem>>
    %c64 = arith.constant 64 : index
    %96 = memref.load %arg1[%c64] : memref<98xf32, #tpu.memory_space<smem>>
    %c65 = arith.constant 65 : index
    %97 = memref.load %arg1[%c65] : memref<98xf32, #tpu.memory_space<smem>>
    %c66 = arith.constant 66 : index
    %98 = memref.load %arg1[%c66] : memref<98xf32, #tpu.memory_space<smem>>
    %c67 = arith.constant 67 : index
    %99 = memref.load %arg1[%c67] : memref<98xf32, #tpu.memory_space<smem>>
    %c68 = arith.constant 68 : index
    %100 = memref.load %arg1[%c68] : memref<98xf32, #tpu.memory_space<smem>>
    %c69 = arith.constant 69 : index
    %101 = memref.load %arg1[%c69] : memref<98xf32, #tpu.memory_space<smem>>
    %c70 = arith.constant 70 : index
    %102 = memref.load %arg1[%c70] : memref<98xf32, #tpu.memory_space<smem>>
    %c71 = arith.constant 71 : index
    %103 = memref.load %arg1[%c71] : memref<98xf32, #tpu.memory_space<smem>>
    %c72 = arith.constant 72 : index
    %104 = memref.load %arg1[%c72] : memref<98xf32, #tpu.memory_space<smem>>
    %c73 = arith.constant 73 : index
    %105 = memref.load %arg1[%c73] : memref<98xf32, #tpu.memory_space<smem>>
    %c74 = arith.constant 74 : index
    %106 = memref.load %arg1[%c74] : memref<98xf32, #tpu.memory_space<smem>>
    %c75 = arith.constant 75 : index
    %107 = memref.load %arg1[%c75] : memref<98xf32, #tpu.memory_space<smem>>
    %c76 = arith.constant 76 : index
    %108 = memref.load %arg1[%c76] : memref<98xf32, #tpu.memory_space<smem>>
    %c77 = arith.constant 77 : index
    %109 = memref.load %arg1[%c77] : memref<98xf32, #tpu.memory_space<smem>>
    %c78 = arith.constant 78 : index
    %110 = memref.load %arg1[%c78] : memref<98xf32, #tpu.memory_space<smem>>
    %c79 = arith.constant 79 : index
    %111 = memref.load %arg1[%c79] : memref<98xf32, #tpu.memory_space<smem>>
    %c80 = arith.constant 80 : index
    %112 = memref.load %arg1[%c80] : memref<98xf32, #tpu.memory_space<smem>>
    %c81 = arith.constant 81 : index
    %113 = memref.load %arg1[%c81] : memref<98xf32, #tpu.memory_space<smem>>
    %c82 = arith.constant 82 : index
    %114 = memref.load %arg1[%c82] : memref<98xf32, #tpu.memory_space<smem>>
    %c83 = arith.constant 83 : index
    %115 = memref.load %arg1[%c83] : memref<98xf32, #tpu.memory_space<smem>>
    %c84 = arith.constant 84 : index
    %116 = memref.load %arg1[%c84] : memref<98xf32, #tpu.memory_space<smem>>
    %c85 = arith.constant 85 : index
    %117 = memref.load %arg1[%c85] : memref<98xf32, #tpu.memory_space<smem>>
    %c86 = arith.constant 86 : index
    %118 = memref.load %arg1[%c86] : memref<98xf32, #tpu.memory_space<smem>>
    %c87 = arith.constant 87 : index
    %119 = memref.load %arg1[%c87] : memref<98xf32, #tpu.memory_space<smem>>
    %c88 = arith.constant 88 : index
    %120 = memref.load %arg1[%c88] : memref<98xf32, #tpu.memory_space<smem>>
    %c89 = arith.constant 89 : index
    %121 = memref.load %arg1[%c89] : memref<98xf32, #tpu.memory_space<smem>>
    %c90 = arith.constant 90 : index
    %122 = memref.load %arg1[%c90] : memref<98xf32, #tpu.memory_space<smem>>
    %c91 = arith.constant 91 : index
    %123 = memref.load %arg1[%c91] : memref<98xf32, #tpu.memory_space<smem>>
    %c92 = arith.constant 92 : index
    %124 = memref.load %arg1[%c92] : memref<98xf32, #tpu.memory_space<smem>>
    %c93 = arith.constant 93 : index
    %125 = memref.load %arg1[%c93] : memref<98xf32, #tpu.memory_space<smem>>
    %c94 = arith.constant 94 : index
    %126 = memref.load %arg1[%c94] : memref<98xf32, #tpu.memory_space<smem>>
    %c95 = arith.constant 95 : index
    %127 = memref.load %arg1[%c95] : memref<98xf32, #tpu.memory_space<smem>>
    %c96 = arith.constant 96 : index
    %128 = memref.load %arg1[%c96] : memref<98xf32, #tpu.memory_space<smem>>
    %c97 = arith.constant 97 : index
    %129 = memref.load %arg1[%c97] : memref<98xf32, #tpu.memory_space<smem>>
    %cst_27 = arith.constant 0.000000e+00 : f32
    %130 = vector.broadcast %cst_27 : f32 to vector<24x128xf32>
    %cst_28 = arith.constant 0.000000e+00 : f32
    %131 = vector.broadcast %cst_28 : f32 to vector<24x128xf32>
    %cst_29 = arith.constant 0.000000e+00 : f32
    %132 = vector.broadcast %cst_29 : f32 to vector<24x128xf32>
    %cst_30 = arith.constant 0.000000e+00 : f32
    %133 = vector.broadcast %cst_30 : f32 to vector<24x128xf32>
    %cst_31 = arith.constant 0.000000e+00 : f32
    %134 = vector.broadcast %cst_31 : f32 to vector<24x128xf32>
    %cst_32 = arith.constant 0.000000e+00 : f32
    %135 = vector.broadcast %cst_32 : f32 to vector<24x128xf32>
    %cst_33 = arith.constant 0.000000e+00 : f32
    %136 = vector.broadcast %cst_33 : f32 to vector<24x128xf32>
    %c0_34 = arith.constant 0 : index
    %c0_35 = arith.constant 0 : index
    %c0_36 = arith.constant 0 : index
    %137 = vector.load %arg4[%c0_34, %c0_35, %c0_36] : memref<2x24x256xf32, #tpu.memory_space<vmem>>, vector<1x24x128xf32>
    %138 = vector.shape_cast %137 : vector<1x24x128xf32> to vector<24x128xf32>
    %139 = vector.broadcast %32 : f32 to vector<24x128xf32>
    %140 = arith.mulf %139, %138 : vector<24x128xf32>
    %141 = arith.addf %130, %140 : vector<24x128xf32>
    %142 = vector.broadcast %39 : f32 to vector<24x128xf32>
    %143 = arith.mulf %142, %138 : vector<24x128xf32>
    %144 = arith.addf %131, %143 : vector<24x128xf32>
    %145 = vector.broadcast %46 : f32 to vector<24x128xf32>
    %146 = arith.mulf %145, %138 : vector<24x128xf32>
    %147 = arith.addf %132, %146 : vector<24x128xf32>
    %148 = vector.broadcast %53 : f32 to vector<24x128xf32>
    %149 = arith.mulf %148, %138 : vector<24x128xf32>
    %150 = arith.addf %133, %149 : vector<24x128xf32>
    %151 = vector.broadcast %60 : f32 to vector<24x128xf32>
    %152 = arith.mulf %151, %138 : vector<24x128xf32>
    %153 = arith.addf %134, %152 : vector<24x128xf32>
    %154 = vector.broadcast %67 : f32 to vector<24x128xf32>
    %155 = arith.mulf %154, %138 : vector<24x128xf32>
    %156 = arith.addf %135, %155 : vector<24x128xf32>
    %157 = vector.broadcast %74 : f32 to vector<24x128xf32>
    %158 = arith.mulf %157, %138 : vector<24x128xf32>
    %159 = arith.addf %136, %158 : vector<24x128xf32>
    %c0_37 = arith.constant 0 : index
    %c0_38 = arith.constant 0 : index
    %c1_39 = arith.constant 1 : index
    %160 = vector.load %arg4[%c0_37, %c0_38, %c1_39] : memref<2x24x256xf32, #tpu.memory_space<vmem>>, vector<1x24x128xf32>
    %161 = vector.shape_cast %160 : vector<1x24x128xf32> to vector<24x128xf32>
    %162 = vector.broadcast %33 : f32 to vector<24x128xf32>
    %163 = arith.mulf %162, %161 : vector<24x128xf32>
    %164 = arith.addf %141, %163 : vector<24x128xf32>
    %165 = vector.broadcast %40 : f32 to vector<24x128xf32>
    %166 = arith.mulf %165, %161 : vector<24x128xf32>
    %167 = arith.addf %144, %166 : vector<24x128xf32>
    %168 = vector.broadcast %47 : f32 to vector<24x128xf32>
    %169 = arith.mulf %168, %161 : vector<24x128xf32>
    %170 = arith.addf %147, %169 : vector<24x128xf32>
    %171 = vector.broadcast %54 : f32 to vector<24x128xf32>
    %172 = arith.mulf %171, %161 : vector<24x128xf32>
    %173 = arith.addf %150, %172 : vector<24x128xf32>
    %174 = vector.broadcast %61 : f32 to vector<24x128xf32>
    %175 = arith.mulf %174, %161 : vector<24x128xf32>
    %176 = arith.addf %153, %175 : vector<24x128xf32>
    %177 = vector.broadcast %68 : f32 to vector<24x128xf32>
    %178 = arith.mulf %177, %161 : vector<24x128xf32>
    %179 = arith.addf %156, %178 : vector<24x128xf32>
    %180 = vector.broadcast %75 : f32 to vector<24x128xf32>
    %181 = arith.mulf %180, %161 : vector<24x128xf32>
    %182 = arith.addf %159, %181 : vector<24x128xf32>
    %c0_40 = arith.constant 0 : index
    %c0_41 = arith.constant 0 : index
    %c2_42 = arith.constant 2 : index
    %183 = vector.load %arg4[%c0_40, %c0_41, %c2_42] : memref<2x24x256xf32, #tpu.memory_space<vmem>>, vector<1x24x128xf32>
    %184 = vector.shape_cast %183 : vector<1x24x128xf32> to vector<24x128xf32>
    %185 = vector.broadcast %34 : f32 to vector<24x128xf32>
    %186 = arith.mulf %185, %184 : vector<24x128xf32>
    %187 = arith.addf %164, %186 : vector<24x128xf32>
    %188 = vector.broadcast %41 : f32 to vector<24x128xf32>
    %189 = arith.mulf %188, %184 : vector<24x128xf32>
    %190 = arith.addf %167, %189 : vector<24x128xf32>
    %191 = vector.broadcast %48 : f32 to vector<24x128xf32>
    %192 = arith.mulf %191, %184 : vector<24x128xf32>
    %193 = arith.addf %170, %192 : vector<24x128xf32>
    %194 = vector.broadcast %55 : f32 to vector<24x128xf32>
    %195 = arith.mulf %194, %184 : vector<24x128xf32>
    %196 = arith.addf %173, %195 : vector<24x128xf32>
    %197 = vector.broadcast %62 : f32 to vector<24x128xf32>
    %198 = arith.mulf %197, %184 : vector<24x128xf32>
    %199 = arith.addf %176, %198 : vector<24x128xf32>
    %200 = vector.broadcast %69 : f32 to vector<24x128xf32>
    %201 = arith.mulf %200, %184 : vector<24x128xf32>
    %202 = arith.addf %179, %201 : vector<24x128xf32>
    %203 = vector.broadcast %76 : f32 to vector<24x128xf32>
    %204 = arith.mulf %203, %184 : vector<24x128xf32>
    %205 = arith.addf %182, %204 : vector<24x128xf32>
    %c0_43 = arith.constant 0 : index
    %c0_44 = arith.constant 0 : index
    %c3_45 = arith.constant 3 : index
    %206 = vector.load %arg4[%c0_43, %c0_44, %c3_45] : memref<2x24x256xf32, #tpu.memory_space<vmem>>, vector<1x24x128xf32>
    %207 = vector.shape_cast %206 : vector<1x24x128xf32> to vector<24x128xf32>
    %208 = vector.broadcast %35 : f32 to vector<24x128xf32>
    %209 = arith.mulf %208, %207 : vector<24x128xf32>
    %210 = arith.addf %187, %209 : vector<24x128xf32>
    %211 = vector.broadcast %42 : f32 to vector<24x128xf32>
    %212 = arith.mulf %211, %207 : vector<24x128xf32>
    %213 = arith.addf %190, %212 : vector<24x128xf32>
    %214 = vector.broadcast %49 : f32 to vector<24x128xf32>
    %215 = arith.mulf %214, %207 : vector<24x128xf32>
    %216 = arith.addf %193, %215 : vector<24x128xf32>
    %217 = vector.broadcast %56 : f32 to vector<24x128xf32>
    %218 = arith.mulf %217, %207 : vector<24x128xf32>
    %219 = arith.addf %196, %218 : vector<24x128xf32>
    %220 = vector.broadcast %63 : f32 to vector<24x128xf32>
    %221 = arith.mulf %220, %207 : vector<24x128xf32>
    %222 = arith.addf %199, %221 : vector<24x128xf32>
    %223 = vector.broadcast %70 : f32 to vector<24x128xf32>
    %224 = arith.mulf %223, %207 : vector<24x128xf32>
    %225 = arith.addf %202, %224 : vector<24x128xf32>
    %226 = vector.broadcast %77 : f32 to vector<24x128xf32>
    %227 = arith.mulf %226, %207 : vector<24x128xf32>
    %228 = arith.addf %205, %227 : vector<24x128xf32>
    %c0_46 = arith.constant 0 : index
    %c0_47 = arith.constant 0 : index
    %c4_48 = arith.constant 4 : index
    %229 = vector.load %arg4[%c0_46, %c0_47, %c4_48] : memref<2x24x256xf32, #tpu.memory_space<vmem>>, vector<1x24x128xf32>
    %230 = vector.shape_cast %229 : vector<1x24x128xf32> to vector<24x128xf32>
    %231 = vector.broadcast %36 : f32 to vector<24x128xf32>
    %232 = arith.mulf %231, %230 : vector<24x128xf32>
    %233 = arith.addf %210, %232 : vector<24x128xf32>
    %234 = vector.broadcast %43 : f32 to vector<24x128xf32>
    %235 = arith.mulf %234, %230 : vector<24x128xf32>
    %236 = arith.addf %213, %235 : vector<24x128xf32>
    %237 = vector.broadcast %50 : f32 to vector<24x128xf32>
    %238 = arith.mulf %237, %230 : vector<24x128xf32>
    %239 = arith.addf %216, %238 : vector<24x128xf32>
    %240 = vector.broadcast %57 : f32 to vector<24x128xf32>
    %241 = arith.mulf %240, %230 : vector<24x128xf32>
    %242 = arith.addf %219, %241 : vector<24x128xf32>
    %243 = vector.broadcast %64 : f32 to vector<24x128xf32>
    %244 = arith.mulf %243, %230 : vector<24x128xf32>
    %245 = arith.addf %222, %244 : vector<24x128xf32>
    %246 = vector.broadcast %71 : f32 to vector<24x128xf32>
    %247 = arith.mulf %246, %230 : vector<24x128xf32>
    %248 = arith.addf %225, %247 : vector<24x128xf32>
    %249 = vector.broadcast %78 : f32 to vector<24x128xf32>
    %250 = arith.mulf %249, %230 : vector<24x128xf32>
    %251 = arith.addf %228, %250 : vector<24x128xf32>
    %c0_49 = arith.constant 0 : index
    %c0_50 = arith.constant 0 : index
    %c5_51 = arith.constant 5 : index
    %252 = vector.load %arg4[%c0_49, %c0_50, %c5_51] : memref<2x24x256xf32, #tpu.memory_space<vmem>>, vector<1x24x128xf32>
    %253 = vector.shape_cast %252 : vector<1x24x128xf32> to vector<24x128xf32>
    %254 = vector.broadcast %37 : f32 to vector<24x128xf32>
    %255 = arith.mulf %254, %253 : vector<24x128xf32>
    %256 = arith.addf %233, %255 : vector<24x128xf32>
    %257 = vector.broadcast %44 : f32 to vector<24x128xf32>
    %258 = arith.mulf %257, %253 : vector<24x128xf32>
    %259 = arith.addf %236, %258 : vector<24x128xf32>
    %260 = vector.broadcast %51 : f32 to vector<24x128xf32>
    %261 = arith.mulf %260, %253 : vector<24x128xf32>
    %262 = arith.addf %239, %261 : vector<24x128xf32>
    %263 = vector.broadcast %58 : f32 to vector<24x128xf32>
    %264 = arith.mulf %263, %253 : vector<24x128xf32>
    %265 = arith.addf %242, %264 : vector<24x128xf32>
    %266 = vector.broadcast %65 : f32 to vector<24x128xf32>
    %267 = arith.mulf %266, %253 : vector<24x128xf32>
    %268 = arith.addf %245, %267 : vector<24x128xf32>
    %269 = vector.broadcast %72 : f32 to vector<24x128xf32>
    %270 = arith.mulf %269, %253 : vector<24x128xf32>
    %271 = arith.addf %248, %270 : vector<24x128xf32>
    %272 = vector.broadcast %79 : f32 to vector<24x128xf32>
    %273 = arith.mulf %272, %253 : vector<24x128xf32>
    %274 = arith.addf %251, %273 : vector<24x128xf32>
    %c0_52 = arith.constant 0 : index
    %c0_53 = arith.constant 0 : index
    %c6_54 = arith.constant 6 : index
    %275 = vector.load %arg4[%c0_52, %c0_53, %c6_54] : memref<2x24x256xf32, #tpu.memory_space<vmem>>, vector<1x24x128xf32>
    %276 = vector.shape_cast %275 : vector<1x24x128xf32> to vector<24x128xf32>
    %277 = vector.broadcast %38 : f32 to vector<24x128xf32>
    %278 = arith.mulf %277, %276 : vector<24x128xf32>
    %279 = arith.addf %256, %278 : vector<24x128xf32>
    %280 = vector.broadcast %45 : f32 to vector<24x128xf32>
    %281 = arith.mulf %280, %276 : vector<24x128xf32>
    %282 = arith.addf %259, %281 : vector<24x128xf32>
    %283 = vector.broadcast %52 : f32 to vector<24x128xf32>
    %284 = arith.mulf %283, %276 : vector<24x128xf32>
    %285 = arith.addf %262, %284 : vector<24x128xf32>
    %286 = vector.broadcast %59 : f32 to vector<24x128xf32>
    %287 = arith.mulf %286, %276 : vector<24x128xf32>
    %288 = arith.addf %265, %287 : vector<24x128xf32>
    %289 = vector.broadcast %66 : f32 to vector<24x128xf32>
    %290 = arith.mulf %289, %276 : vector<24x128xf32>
    %291 = arith.addf %268, %290 : vector<24x128xf32>
    %292 = vector.broadcast %73 : f32 to vector<24x128xf32>
    %293 = arith.mulf %292, %276 : vector<24x128xf32>
    %294 = arith.addf %271, %293 : vector<24x128xf32>
    %295 = vector.broadcast %80 : f32 to vector<24x128xf32>
    %296 = arith.mulf %295, %276 : vector<24x128xf32>
    %297 = arith.addf %274, %296 : vector<24x128xf32>
    %c1_55 = arith.constant 1 : index
    %c0_56 = arith.constant 0 : index
    %c0_57 = arith.constant 0 : index
    %298 = vector.load %arg4[%c1_55, %c0_56, %c0_57] : memref<2x24x256xf32, #tpu.memory_space<vmem>>, vector<1x24x128xf32>
    %299 = vector.shape_cast %298 : vector<1x24x128xf32> to vector<24x128xf32>
    %300 = vector.broadcast %81 : f32 to vector<24x128xf32>
    %301 = arith.mulf %300, %299 : vector<24x128xf32>
    %302 = arith.addf %279, %301 : vector<24x128xf32>
    %303 = vector.broadcast %88 : f32 to vector<24x128xf32>
    %304 = arith.mulf %303, %299 : vector<24x128xf32>
    %305 = arith.addf %282, %304 : vector<24x128xf32>
    %306 = vector.broadcast %95 : f32 to vector<24x128xf32>
    %307 = arith.mulf %306, %299 : vector<24x128xf32>
    %308 = arith.addf %285, %307 : vector<24x128xf32>
    %309 = vector.broadcast %102 : f32 to vector<24x128xf32>
    %310 = arith.mulf %309, %299 : vector<24x128xf32>
    %311 = arith.addf %288, %310 : vector<24x128xf32>
    %312 = vector.broadcast %109 : f32 to vector<24x128xf32>
    %313 = arith.mulf %312, %299 : vector<24x128xf32>
    %314 = arith.addf %291, %313 : vector<24x128xf32>
    %315 = vector.broadcast %116 : f32 to vector<24x128xf32>
    %316 = arith.mulf %315, %299 : vector<24x128xf32>
    %317 = arith.addf %294, %316 : vector<24x128xf32>
    %318 = vector.broadcast %123 : f32 to vector<24x128xf32>
    %319 = arith.mulf %318, %299 : vector<24x128xf32>
    %320 = arith.addf %297, %319 : vector<24x128xf32>
    %c1_58 = arith.constant 1 : index
    %c0_59 = arith.constant 0 : index
    %c1_60 = arith.constant 1 : index
    %321 = vector.load %arg4[%c1_58, %c0_59, %c1_60] : memref<2x24x256xf32, #tpu.memory_space<vmem>>, vector<1x24x128xf32>
    %322 = vector.shape_cast %321 : vector<1x24x128xf32> to vector<24x128xf32>
    %323 = vector.broadcast %82 : f32 to vector<24x128xf32>
    %324 = arith.mulf %323, %322 : vector<24x128xf32>
    %325 = arith.addf %302, %324 : vector<24x128xf32>
    %326 = vector.broadcast %89 : f32 to vector<24x128xf32>
    %327 = arith.mulf %326, %322 : vector<24x128xf32>
    %328 = arith.addf %305, %327 : vector<24x128xf32>
    %329 = vector.broadcast %96 : f32 to vector<24x128xf32>
    %330 = arith.mulf %329, %322 : vector<24x128xf32>
    %331 = arith.addf %308, %330 : vector<24x128xf32>
    %332 = vector.broadcast %103 : f32 to vector<24x128xf32>
    %333 = arith.mulf %332, %322 : vector<24x128xf32>
    %334 = arith.addf %311, %333 : vector<24x128xf32>
    %335 = vector.broadcast %110 : f32 to vector<24x128xf32>
    %336 = arith.mulf %335, %322 : vector<24x128xf32>
    %337 = arith.addf %314, %336 : vector<24x128xf32>
    %338 = vector.broadcast %117 : f32 to vector<24x128xf32>
    %339 = arith.mulf %338, %322 : vector<24x128xf32>
    %340 = arith.addf %317, %339 : vector<24x128xf32>
    %341 = vector.broadcast %124 : f32 to vector<24x128xf32>
    %342 = arith.mulf %341, %322 : vector<24x128xf32>
    %343 = arith.addf %320, %342 : vector<24x128xf32>
    %c1_61 = arith.constant 1 : index
    %c0_62 = arith.constant 0 : index
    %c2_63 = arith.constant 2 : index
    %344 = vector.load %arg4[%c1_61, %c0_62, %c2_63] : memref<2x24x256xf32, #tpu.memory_space<vmem>>, vector<1x24x128xf32>
    %345 = vector.shape_cast %344 : vector<1x24x128xf32> to vector<24x128xf32>
    %346 = vector.broadcast %83 : f32 to vector<24x128xf32>
    %347 = arith.mulf %346, %345 : vector<24x128xf32>
    %348 = arith.addf %325, %347 : vector<24x128xf32>
    %349 = vector.broadcast %90 : f32 to vector<24x128xf32>
    %350 = arith.mulf %349, %345 : vector<24x128xf32>
    %351 = arith.addf %328, %350 : vector<24x128xf32>
    %352 = vector.broadcast %97 : f32 to vector<24x128xf32>
    %353 = arith.mulf %352, %345 : vector<24x128xf32>
    %354 = arith.addf %331, %353 : vector<24x128xf32>
    %355 = vector.broadcast %104 : f32 to vector<24x128xf32>
    %356 = arith.mulf %355, %345 : vector<24x128xf32>
    %357 = arith.addf %334, %356 : vector<24x128xf32>
    %358 = vector.broadcast %111 : f32 to vector<24x128xf32>
    %359 = arith.mulf %358, %345 : vector<24x128xf32>
    %360 = arith.addf %337, %359 : vector<24x128xf32>
    %361 = vector.broadcast %118 : f32 to vector<24x128xf32>
    %362 = arith.mulf %361, %345 : vector<24x128xf32>
    %363 = arith.addf %340, %362 : vector<24x128xf32>
    %364 = vector.broadcast %125 : f32 to vector<24x128xf32>
    %365 = arith.mulf %364, %345 : vector<24x128xf32>
    %366 = arith.addf %343, %365 : vector<24x128xf32>
    %c1_64 = arith.constant 1 : index
    %c0_65 = arith.constant 0 : index
    %c3_66 = arith.constant 3 : index
    %367 = vector.load %arg4[%c1_64, %c0_65, %c3_66] : memref<2x24x256xf32, #tpu.memory_space<vmem>>, vector<1x24x128xf32>
    %368 = vector.shape_cast %367 : vector<1x24x128xf32> to vector<24x128xf32>
    %369 = vector.broadcast %84 : f32 to vector<24x128xf32>
    %370 = arith.mulf %369, %368 : vector<24x128xf32>
    %371 = arith.addf %348, %370 : vector<24x128xf32>
    %372 = vector.broadcast %91 : f32 to vector<24x128xf32>
    %373 = arith.mulf %372, %368 : vector<24x128xf32>
    %374 = arith.addf %351, %373 : vector<24x128xf32>
    %375 = vector.broadcast %98 : f32 to vector<24x128xf32>
    %376 = arith.mulf %375, %368 : vector<24x128xf32>
    %377 = arith.addf %354, %376 : vector<24x128xf32>
    %378 = vector.broadcast %105 : f32 to vector<24x128xf32>
    %379 = arith.mulf %378, %368 : vector<24x128xf32>
    %380 = arith.addf %357, %379 : vector<24x128xf32>
    %381 = vector.broadcast %112 : f32 to vector<24x128xf32>
    %382 = arith.mulf %381, %368 : vector<24x128xf32>
    %383 = arith.addf %360, %382 : vector<24x128xf32>
    %384 = vector.broadcast %119 : f32 to vector<24x128xf32>
    %385 = arith.mulf %384, %368 : vector<24x128xf32>
    %386 = arith.addf %363, %385 : vector<24x128xf32>
    %387 = vector.broadcast %126 : f32 to vector<24x128xf32>
    %388 = arith.mulf %387, %368 : vector<24x128xf32>
    %389 = arith.addf %366, %388 : vector<24x128xf32>
    %c1_67 = arith.constant 1 : index
    %c0_68 = arith.constant 0 : index
    %c4_69 = arith.constant 4 : index
    %390 = vector.load %arg4[%c1_67, %c0_68, %c4_69] : memref<2x24x256xf32, #tpu.memory_space<vmem>>, vector<1x24x128xf32>
    %391 = vector.shape_cast %390 : vector<1x24x128xf32> to vector<24x128xf32>
    %392 = vector.broadcast %85 : f32 to vector<24x128xf32>
    %393 = arith.mulf %392, %391 : vector<24x128xf32>
    %394 = arith.addf %371, %393 : vector<24x128xf32>
    %395 = vector.broadcast %92 : f32 to vector<24x128xf32>
    %396 = arith.mulf %395, %391 : vector<24x128xf32>
    %397 = arith.addf %374, %396 : vector<24x128xf32>
    %398 = vector.broadcast %99 : f32 to vector<24x128xf32>
    %399 = arith.mulf %398, %391 : vector<24x128xf32>
    %400 = arith.addf %377, %399 : vector<24x128xf32>
    %401 = vector.broadcast %106 : f32 to vector<24x128xf32>
    %402 = arith.mulf %401, %391 : vector<24x128xf32>
    %403 = arith.addf %380, %402 : vector<24x128xf32>
    %404 = vector.broadcast %113 : f32 to vector<24x128xf32>
    %405 = arith.mulf %404, %391 : vector<24x128xf32>
    %406 = arith.addf %383, %405 : vector<24x128xf32>
    %407 = vector.broadcast %120 : f32 to vector<24x128xf32>
    %408 = arith.mulf %407, %391 : vector<24x128xf32>
    %409 = arith.addf %386, %408 : vector<24x128xf32>
    %410 = vector.broadcast %127 : f32 to vector<24x128xf32>
    %411 = arith.mulf %410, %391 : vector<24x128xf32>
    %412 = arith.addf %389, %411 : vector<24x128xf32>
    %c1_70 = arith.constant 1 : index
    %c0_71 = arith.constant 0 : index
    %c5_72 = arith.constant 5 : index
    %413 = vector.load %arg4[%c1_70, %c0_71, %c5_72] : memref<2x24x256xf32, #tpu.memory_space<vmem>>, vector<1x24x128xf32>
    %414 = vector.shape_cast %413 : vector<1x24x128xf32> to vector<24x128xf32>
    %415 = vector.broadcast %86 : f32 to vector<24x128xf32>
    %416 = arith.mulf %415, %414 : vector<24x128xf32>
    %417 = arith.addf %394, %416 : vector<24x128xf32>
    %418 = vector.broadcast %93 : f32 to vector<24x128xf32>
    %419 = arith.mulf %418, %414 : vector<24x128xf32>
    %420 = arith.addf %397, %419 : vector<24x128xf32>
    %421 = vector.broadcast %100 : f32 to vector<24x128xf32>
    %422 = arith.mulf %421, %414 : vector<24x128xf32>
    %423 = arith.addf %400, %422 : vector<24x128xf32>
    %424 = vector.broadcast %107 : f32 to vector<24x128xf32>
    %425 = arith.mulf %424, %414 : vector<24x128xf32>
    %426 = arith.addf %403, %425 : vector<24x128xf32>
    %427 = vector.broadcast %114 : f32 to vector<24x128xf32>
    %428 = arith.mulf %427, %414 : vector<24x128xf32>
    %429 = arith.addf %406, %428 : vector<24x128xf32>
    %430 = vector.broadcast %121 : f32 to vector<24x128xf32>
    %431 = arith.mulf %430, %414 : vector<24x128xf32>
    %432 = arith.addf %409, %431 : vector<24x128xf32>
    %433 = vector.broadcast %128 : f32 to vector<24x128xf32>
    %434 = arith.mulf %433, %414 : vector<24x128xf32>
    %435 = arith.addf %412, %434 : vector<24x128xf32>
    %c1_73 = arith.constant 1 : index
    %c0_74 = arith.constant 0 : index
    %c6_75 = arith.constant 6 : index
    %436 = vector.load %arg4[%c1_73, %c0_74, %c6_75] : memref<2x24x256xf32, #tpu.memory_space<vmem>>, vector<1x24x128xf32>
    %437 = vector.shape_cast %436 : vector<1x24x128xf32> to vector<24x128xf32>
    %438 = vector.broadcast %87 : f32 to vector<24x128xf32>
    %439 = arith.mulf %438, %437 : vector<24x128xf32>
    %440 = arith.addf %417, %439 : vector<24x128xf32>
    %441 = vector.broadcast %94 : f32 to vector<24x128xf32>
    %442 = arith.mulf %441, %437 : vector<24x128xf32>
    %443 = arith.addf %420, %442 : vector<24x128xf32>
    %444 = vector.broadcast %101 : f32 to vector<24x128xf32>
    %445 = arith.mulf %444, %437 : vector<24x128xf32>
    %446 = arith.addf %423, %445 : vector<24x128xf32>
    %447 = vector.broadcast %108 : f32 to vector<24x128xf32>
    %448 = arith.mulf %447, %437 : vector<24x128xf32>
    %449 = arith.addf %426, %448 : vector<24x128xf32>
    %450 = vector.broadcast %115 : f32 to vector<24x128xf32>
    %451 = arith.mulf %450, %437 : vector<24x128xf32>
    %452 = arith.addf %429, %451 : vector<24x128xf32>
    %453 = vector.broadcast %122 : f32 to vector<24x128xf32>
    %454 = arith.mulf %453, %437 : vector<24x128xf32>
    %455 = arith.addf %432, %454 : vector<24x128xf32>
    %456 = vector.broadcast %129 : f32 to vector<24x128xf32>
    %457 = arith.mulf %456, %437 : vector<24x128xf32>
    %458 = arith.addf %435, %457 : vector<24x128xf32>
    %459 = vector.extract_strided_slice %440 {offsets = [0, 0], sizes = [16, 128], strides = [1, 1]} : vector<24x128xf32> to vector<16x128xf32>
    %460 = vector.extract_strided_slice %443 {offsets = [1, 0], sizes = [16, 128], strides = [1, 1]} : vector<24x128xf32> to vector<16x128xf32>
    %461 = arith.addf %459, %460 : vector<16x128xf32>
    %462 = vector.extract_strided_slice %446 {offsets = [2, 0], sizes = [16, 128], strides = [1, 1]} : vector<24x128xf32> to vector<16x128xf32>
    %463 = arith.addf %461, %462 : vector<16x128xf32>
    %464 = vector.extract_strided_slice %449 {offsets = [3, 0], sizes = [16, 128], strides = [1, 1]} : vector<24x128xf32> to vector<16x128xf32>
    %465 = arith.addf %463, %464 : vector<16x128xf32>
    %466 = vector.extract_strided_slice %452 {offsets = [4, 0], sizes = [16, 128], strides = [1, 1]} : vector<24x128xf32> to vector<16x128xf32>
    %467 = arith.addf %465, %466 : vector<16x128xf32>
    %468 = vector.extract_strided_slice %455 {offsets = [5, 0], sizes = [16, 128], strides = [1, 1]} : vector<24x128xf32> to vector<16x128xf32>
    %469 = arith.addf %467, %468 : vector<16x128xf32>
    %470 = vector.extract_strided_slice %458 {offsets = [6, 0], sizes = [16, 128], strides = [1, 1]} : vector<24x128xf32> to vector<16x128xf32>
    %471 = arith.addf %469, %470 : vector<16x128xf32>
    %472 = vector.extract_strided_slice %471 {offsets = [0, 0], sizes = [16, 16], strides = [1, 1]} : vector<16x128xf32> to vector<16x16xf32>
    %473 = arith.negf %472 : vector<16x16xf32>
    %474 = math.exp %473 : vector<16x16xf32>
    %cst_76 = arith.constant 1.000000e+00 : f32
    %475 = vector.broadcast %cst_76 : f32 to vector<16x16xf32>
    %476 = arith.addf %475, %474 : vector<16x16xf32>
    %477 = arith.divf %475, %476 : vector<16x16xf32>
    %c0_77 = arith.constant 0 : index
    %c0_78 = arith.constant 0 : index
    %c0_79 = arith.constant 0 : index
    %c0_80 = arith.constant 0 : index
    %478 = vector.load %arg3[%c0_77, %c0_78, %c0_79, %c0_80] : memref<1x1x16x16xf32, #tpu.memory_space<vmem>>, vector<1x1x16x16xf32>
    %479 = vector.shape_cast %478 : vector<1x1x16x16xf32> to vector<16x16xf32>
    %480 = vector.shape_cast %477 : vector<16x16xf32> to vector<1x1x16x16xf32>
    tpu.vector_store %arg3[%c0_77, %c0_78, %c0_79, %c0_80], %480 {strides = array<i32>} : memref<1x1x16x16xf32, #tpu.memory_space<vmem>>, vector<1x1x16x16xf32>,
    return
  }
  func.func @transform_0(%arg0: i32) -> i32 {
    %c0_i32 = arith.constant 0 : i32
    %c0_i32_0 = arith.constant 0 : i32
    return %c0_i32 : i32
  }
  func.func @transform_1(%arg0: i32) -> (i32, i32, i32, i32) {
    %c0_i32 = arith.constant 0 : i32
    %c0_i32_0 = arith.constant 0 : i32
    %c0_i32_1 = arith.constant 0 : i32
    %c0_i32_2 = arith.constant 0 : i32
    return %arg0, %c0_i32, %c0_i32_0, %c0_i32_1 : i32, i32, i32, i32
  }
  func.func @transform_2(%arg0: i32) -> (i32, i32, i32, i32) {
    %c0_i32 = arith.constant 0 : i32
    %c0_i32_0 = arith.constant 0 : i32
    %c0_i32_1 = arith.constant 0 : i32
    %c0_i32_2 = arith.constant 0 : i32
    return %arg0, %c0_i32, %c0_i32_0, %c0_i32_1 : i32, i32, i32, i32
  }
}

</mosaic_0001>

<llo_original>
// kernel: tpu_custom_call.1
$region0: #{tpu_custom_call.1}
  #allocation0 [shape = 'u32[]', space=smem, size = 0x4, offset = 0x4, fixed_abs, tag = 'smem constant byte address 0x4 - core index']
  #allocation1 [shape = 'u32[144,128]{1,0:T(1,128)}', space=vmem, size = 0x12000, scoped, tag = 'internal scratch']
  #allocation2 [shape = 'f32[2,24,256]{2,1,0:T(8,128)}', space=vmem, size = 0xc000, scoped, tag = 'scratch operand']
  %s0 = inlined_call_operand.hbm [shape: f32[98], index: 0, kind: input, shape index: {}]
  %s1 = inlined_call_operand.hbm [shape: f32[2,4,16,16], index: 1, kind: input, shape index: {}]
  %s2 = inlined_call_operand.hbm [shape: f32[2,1,16,16], index: 2, kind: output, shape index: {}]
  %s3 = sld [smem:[#allocation0]]
  $region49: #{tpu_custom_call.1} parent=0
    _
  %s5 = ssub.s32 1, %s3
  %s6 = scalar_select 0, %s5, %s3
  $region1: #{tpu_custom_call.1} parent=0
    #allocation3 [shape = 'u8[512]{0}', space=smem, size = 0x200, scoped, tag = 'input window, operand 0, single buffered']
    #allocation4 [shape = 's32[2]{0}', space=sflag, size = 0x8, scoped, tag = 'scoped memory for tpu_custom_call.1']
    #allocation5 [shape = 's32[2]{0}', space=sflag, size = 0x8, scoped, tag = 'scoped memory for tpu_custom_call.1']
    #allocation6 [shape = 's32[2]{0}', space=sflag, size = 0x8, scoped, tag = 'scoped memory for tpu_custom_call.1']
    #allocation7 [shape = 'u8[65536]{0}', space=vmem, size = 0x10000, scoped, tag = 'input window, operand 1']
    #allocation8 [shape = 'u8[16384]{0}', space=vmem, size = 0x4000, scoped, tag = 'output window, operand 0']
    %7 = vsyncpa [#allocation6], 0
    %8 = vsyncpa [#allocation4], 0
    %s9 = scalar_lea.sflag [#allocation4], 1
    %10 = vsyncpa %s9, 0
    %11 = vsyncpa [#allocation5], 0
    %s12 = scalar_lea.sflag [#allocation5], 1
    %13 = vsyncpa %s12, 0
    loop: start=0, step=1, limit=4
    $region2: #{tpu_custom_call.1} parent=1 // loop_pre_header
      _
    $region3: #{tpu_custom_call.1} parent=1 // loop_header
      %s15 = sphi 0, %s19
      %p16 = scmp.ge.s32.totalorder %s15, 4
      %s23 = sphi 0, %s23
      %s25 = sphi 0, %s23
      %s26 = sphi 0, %s25
      %s40 = sphi 0, %s26
      %s46 = sphi 0, %s48
      %s49 = sphi 0, %s46
      %s50 = sphi 0, %s49
      %s66 = sphi 0, %s50
      %s72 = sphi 0, %s74
      %s75 = sphi 0, %s72
      %s76 = sphi 0, %s75
      %s92 = sphi 0, %s76
    $region4: #{tpu_custom_call.1} parent=1 // loop_header_branch
      %18 = sbr.rel (%p16) target = $region8
    $region5: #{tpu_custom_call.1} parent=1 // loop_body
      %s20 = ssub.s32 %s15, 1
      %s21 = ssub.s32 %s15, 2
      %s22 = sadd.s32 %s15, 1
      %s24 = sadd.s32 %s23, 1
      %p27 = scmp.eq.s32.totalorder %s15, 1
      %p28 = scmp.ne.s32.totalorder %s23, %s25
      %p29 = scmp.eq.s32.totalorder %s15, 0
      %p30 = por %p28, %p29
      %p31 = scmp.ne.s32.totalorder %s23, %s25
      %p32 = scmp.eq.s32.totalorder %s20, 1
      %p33 = por %p31, %p32
      %p34 = scmp.ne.s32.totalorder %s25, %s26
      %p35 = scmp.eq.s32.totalorder %s20, 0
      %p36 = por %p34, %p35
      %p37 = scmp.ne.s32.totalorder %s25, %s26
      %p38 = scmp.eq.s32.totalorder %s21, 1
      %p39 = por %p37, %p38
      %p41 = scmp.ne.s32.totalorder %s26, %s40
      %p42 = scmp.eq.s32.totalorder %s21, 0
      %p43 = por %p41, %p42
      %s44 = ssub.s32 %s15, %s22
      %p45 = scmp.eq.s32.totalorder %s44, 0
      %s47 = sadd.s32 %s46, 1
      %s48 = scalar_select %p45, %s46, %s47
      %p51 = pneg %p45
      %p52 = scmp.eq.s32.totalorder %s15, 1
      %p53 = por %p51, %p52
      %p54 = scmp.ne.s32.totalorder %s46, %s49
      %p55 = scmp.eq.s32.totalorder %s15, 0
      %p56 = por %p54, %p55
      %p57 = scmp.ne.s32.totalorder %s46, %s49
      %p58 = scmp.eq.s32.totalorder %s20, 1
      %p59 = por %p57, %p58
      %p60 = scmp.ne.s32.totalorder %s49, %s50
      %p61 = scmp.eq.s32.totalorder %s20, 0
      %p62 = por %p60, %p61
      %p63 = scmp.ne.s32.totalorder %s49, %s50
      %p64 = scmp.eq.s32.totalorder %s21, 1
      %p65 = por %p63, %p64
      %p67 = scmp.ne.s32.totalorder %s50, %s66
      %p68 = scmp.eq.s32.totalorder %s21, 0
      %p69 = por %p67, %p68
      %s70 = ssub.s32 %s15, %s22
      %p71 = scmp.eq.s32.totalorder %s70, 0
      %s73 = sadd.s32 %s72, 1
      %s74 = scalar_select %p71, %s72, %s73
      %p77 = pneg %p71
      %p78 = scmp.eq.s32.totalorder %s15, 1
      %p79 = por %p77, %p78
      %p80 = scmp.ne.s32.totalorder %s72, %s75
      %p81 = scmp.eq.s32.totalorder %s15, 0
      %p82 = por %p80, %p81
      %p83 = scmp.ne.s32.totalorder %s72, %s75
      %p84 = scmp.eq.s32.totalorder %s20, 1
      %p85 = por %p83, %p84
      %p86 = scmp.ne.s32.totalorder %s75, %s76
      %p87 = scmp.eq.s32.totalorder %s20, 0
      %p88 = por %p86, %p87
      %p89 = scmp.ne.s32.totalorder %s75, %s76
      %p90 = scmp.eq.s32.totalorder %s21, 1
      %p91 = por %p89, %p90
      %p93 = scmp.ne.s32.totalorder %s76, %s92
      %p94 = scmp.eq.s32.totalorder %s21, 0
      %p95 = por %p93, %p94
      %p96 = scmp.le.s32.totalorder 1, %s15
      %p97 = scmp.lt.s32.totalorder %s15, 3
      %p98 = pnand %p96, %p97
      %p99 = pneg %p98
      // Predicated region
      $region9: #{tpu_custom_call.1} parent=5 // pred_check
        _
      $region10: #{tpu_custom_call.1} parent=5 // pred_check_branch
        %101 = sbr.rel (%p98) target = $region12
      $region11: #{tpu_custom_call.1} parent=5 // pred_region
        %s102 = ssub.s32 %s15, 1
        // Predicated region
        $region13: #{tpu_custom_call.1} parent=11 // pred_check
          %p103 = pneg %p36
        $region14: #{tpu_custom_call.1} parent=11 // pred_check_branch
          %105 = sbr.rel (%p103) target = $region16
        $region15: #{tpu_custom_call.1} parent=11 // pred_region
          %s107 = ssub.s32 16, 16
          %108 = vsyncadd [#allocation6], %s107
          %111 = dma.hbm_to_smem %s0, 16, [#allocation3], [#allocation6]
        $region16: #{tpu_custom_call.1} parent=11 // pred_fallthru
          _
      $region12: #{tpu_custom_call.1} parent=5 // pred_fallthru
        _
      %p112 = scmp.lt.s32.totalorder %s15, 2
      // Predicated region
      $region17: #{tpu_custom_call.1} parent=5 // pred_check
        %p113 = pneg %p112
      $region18: #{tpu_custom_call.1} parent=5 // pred_check_branch
        %115 = sbr.rel (%p113) target = $region20
      $region19: #{tpu_custom_call.1} parent=5 // pred_region
        // Predicated region
        $region21: #{tpu_custom_call.1} parent=19 // pred_check
          %p116 = pneg %p56
        $region22: #{tpu_custom_call.1} parent=19 // pred_check_branch
          %118 = sbr.rel (%p116) target = $region24
        $region23: #{tpu_custom_call.1} parent=19 // pred_region
          %s119 = sand.u32 %s46, 1
          %s120 = scalar_lea.sflag [#allocation4], %s119
          %s121 = sand.u32 %s46, 1
          %s122 = smul.addr %s121, 64
          %s123 = scalar_lea.vmem [#allocation7], %s122
          %s125 = ssub.s32 1024, 1024
          %126 = vsyncadd %s120, %s125
          %s127 = smul.addr %s15, 8
          %s128 = smul.addr %s127, 128
          %s129 = scalar_lea.hbm %s1, %s128
          %s130 = sshll.u32 %s123, 4
          %s131 = int_to_ptr.vmem [resolvable:$true] %s130
          %136 = dma.hbm_to_vmem [thread:$0]  %s129, 1024, %s131, %s120, 128, 128, 8
        $region24: #{tpu_custom_call.1} parent=19 // pred_fallthru
          _
      $region20: #{tpu_custom_call.1} parent=5 // pred_fallthru
        _
      %p137 = scmp.le.s32.totalorder 1, %s15
      %p138 = scmp.lt.s32.totalorder %s15, 3
      %p139 = pnand %p137, %p138
      %p140 = pneg %p139
      // Predicated region
      $region25: #{tpu_custom_call.1} parent=5 // pred_check
        _
      $region26: #{tpu_custom_call.1} parent=5 // pred_check_branch
        %142 = sbr.rel (%p139) target = $region28
      $region27: #{tpu_custom_call.1} parent=5 // pred_region
        %s143 = ssub.s32 %s15, 1
        // Predicated region
        $region29: #{tpu_custom_call.1} parent=27 // pred_check
          %p144 = pneg %p36
        $region30: #{tpu_custom_call.1} parent=27 // pred_check_branch
          %146 = sbr.rel (%p144) target = $region32
        $region31: #{tpu_custom_call.1} parent=27 // pred_region
          %147 = dma.done [#allocation6], 16
        $region32: #{tpu_custom_call.1} parent=27 // pred_fallthru
          _
        %s148 = sand.u32 %s49, 1
        %s149 = scalar_lea.sflag [#allocation4], %s148
        %s150 = sand.u32 %s49, 1
        %s151 = smul.addr %s150, 64
        %s152 = scalar_lea.vmem [#allocation7], %s151
        // Predicated region
        $region33: #{tpu_custom_call.1} parent=27 // pred_check
          %p153 = pneg %p62
        $region34: #{tpu_custom_call.1} parent=27 // pred_check_branch
          %155 = sbr.rel (%p153) target = $region36
        $region35: #{tpu_custom_call.1} parent=27 // pred_region
          %156 = dma.done %s149, 1024
        $region36: #{tpu_custom_call.1} parent=27 // pred_fallthru
          _
        %157 = sfence
        %p158 = pneg %p36
        %p159 = pneg %p33
        %s160 = sand.u32 %s49, 1
        %s161 = scalar_lea.sflag [#allocation4], %s160
        %s162 = sand.u32 %s49, 1
        %s163 = smul.addr %s162, 64
        %s164 = scalar_lea.vmem [#allocation7], %s163
        %p165 = pneg %p62
        %p166 = pneg %p59
        %p167 = pneg %p88
        %p168 = pneg %p85
        %s169 = sand.u32 %s75, 1
        %s170 = scalar_lea.sflag [#allocation5], %s169
        %s171 = sand.u32 %s75, 1
        %s172 = smul.addr %s171, 16
        %s173 = scalar_lea.vmem [#allocation8], %s172
        %v174 = vld [vmem:[%s152] sm:$0xff]
        %v175 = vld [vmem:[%s152 + $0x8] sm:$0xff]
        %s176 = scalar_lea.vmem %s152, 16 [#allocation7]
        %v177 = vld [vmem:[%s176] sm:$0xff]
        %v178 = vld [vmem:[%s176 + $0x8] sm:$0xff]
        %v179 = vadd.f32 %v174, %v177
        %v180 = vadd.f32 %v175, %v178
        %v181 = vmax.f32 %v174, %v177
        %v182 = vmax.f32 %v175, %v178
        %s183 = scalar_lea.vmem %s152, 32 [#allocation7]
        %v184 = vld [vmem:[%s183] sm:$0xff]
        %v185 = vld [vmem:[%s183 + $0x8] sm:$0xff]
        %v186 = vadd.f32 %v179, %v184
        %v187 = vadd.f32 %v180, %v185
        %v188 = vmax.f32 %v181, %v184
        %v189 = vmax.f32 %v182, %v185
        %s190 = scalar_lea.vmem %s152, 48 [#allocation7]
        %v191 = vld [vmem:[%s190] sm:$0xff]
        %v192 = vld [vmem:[%s190 + $0x8] sm:$0xff]
        %v193 = vadd.f32 %v186, %v191
        %v194 = vadd.f32 %v187, %v192
        %v195 = vmax.f32 %v188, %v191
        %v196 = vmax.f32 %v189, %v192
        %v197 = vmul.f32 %v193, 0.25
        %v198 = vmul.f32 %v194, 0.25
        %vm199 = vcmask 179200
        %200 = vst.msk [vmem:[#allocation2] sm:$0xff] %vm199, 0.0
        %201 = vst.msk [vmem:[#allocation2 + $0x10] sm:$0xff] %vm199, 0.0
        %vm202 = vcmask 177152
        %203 = vst.msk [vmem:[#allocation2 + $0x20] sm:$0x3f] %vm202, 0.0
        %s204 = scalar_lea.vmem [#allocation2], 48
        %205 = vst.msk [vmem:[%s204] sm:$0xff] %vm199, 0.0
        %206 = vst.msk [vmem:[%s204 + $0x10] sm:$0xff] %vm199, 0.0
        %207 = vst.msk [vmem:[%s204 + $0x20] sm:$0x3f] %vm202, 0.0
        %vm210 = vcmask 1042432
        %v211 = vrot.slane %v197, 5
        %v212 = vrot.slane %v198, 5
        %v213 = vsel %vm210, %v211, %v212
        %214 = vrot.lane.b32.xlu0 %v211, 3
        %v215 = vpop.permute.xlu0 %214
        %216 = vrot.lane.b32.xlu0 %v213, 3
        %v217 = vpop.permute.xlu0 %216
        %218 = vrot.lane.b32.xlu0 %v212, 3
        %v219 = vpop.permute.xlu0 %218
        %vm223 = vcmask 154651
        %224 = vst.msk [vmem:[#allocation2] sm:$0xf8] %vm223, %v215
        %vm225 = vcmask 154648
        %226 = vst.msk [vmem:[#allocation2 + $0x10] sm:$0xff] %vm225, %v217
        %vm227 = vcmask 149528
        %228 = vst.msk [vmem:[#allocation2 + $0x20] sm:$0x7] %vm227, %v219
        %v231 = vrot.slane %v195, 5
        %v232 = vrot.slane %v196, 5
        %v233 = vsel %vm210, %v231, %v232
        %234 = vrot.lane.b32.xlu0 %v231, 3
        %v235 = vpop.permute.xlu0 %234
        %236 = vrot.lane.b32.xlu0 %v233, 3
        %v237 = vpop.permute.xlu0 %236
        %238 = vrot.lane.b32.xlu0 %v232, 3
        %v239 = vpop.permute.xlu0 %238
        %243 = vst.msk [vmem:[%s204] sm:$0xf8] %vm223, %v235
        %244 = vst.msk [vmem:[%s204 + $0x10] sm:$0xff] %vm225, %v237
        %245 = vst.msk [vmem:[%s204 + $0x20] sm:$0x7] %vm227, %v239
        %s246 = sld [smem:[#allocation3]]
        %s247 = sld [smem:[#allocation3 + $0x1]]
        %s248 = sld [smem:[#allocation3 + $0x2]]
        %s249 = sld [smem:[#allocation3 + $0x3]]
        %s250 = sld [smem:[#allocation3 + $0x4]]
        %s251 = sld [smem:[#allocation3 + $0x5]]
        %s252 = sld [smem:[#allocation3 + $0x6]]
        %s253 = sld [smem:[#allocation3 + $0x7]]
        %s254 = sld [smem:[#allocation3 + $0x8]]
        %s255 = sld [smem:[#allocation3 + $0x9]]
        %s256 = sld [smem:[#allocation3 + $0xa]]
        %s257 = sld [smem:[#allocation3 + $0xb]]
        %s258 = sld [smem:[#allocation3 + $0xc]]
        %s259 = sld [smem:[#allocation3 + $0xd]]
        %s260 = sld [smem:[#allocation3 + $0xe]]
        %s261 = sld [smem:[#allocation3 + $0xf]]
        %s262 = sld [smem:[#allocation3 + $0x10]]
        %s263 = sld [smem:[#allocation3 + $0x11]]
        %s264 = sld [smem:[#allocation3 + $0x12]]
        %s265 = sld [smem:[#allocation3 + $0x13]]
        %s266 = sld [smem:[#allocation3 + $0x14]]
        %s267 = sld [smem:[#allocation3 + $0x15]]
        %s268 = sld [smem:[#allocation3 + $0x16]]
        %s269 = sld [smem:[#allocation3 + $0x17]]
        %s270 = sld [smem:[#allocation3 + $0x18]]
        %s271 = sld [smem:[#allocation3 + $0x19]]
        %s272 = sld [smem:[#allocation3 + $0x1a]]
        %s273 = sld [smem:[#allocation3 + $0x1b]]
        %s274 = sld [smem:[#allocation3 + $0x1c]]
        %s275 = sld [smem:[#allocation3 + $0x1d]]
        %s276 = sld [smem:[#allocation3 + $0x1e]]
        %s277 = sld [smem:[#allocation3 + $0x1f]]
        %s278 = sld [smem:[#allocation3 + $0x20]]
        %s279 = sld [smem:[#allocation3 + $0x21]]
        %s280 = sld [smem:[#allocation3 + $0x22]]
        %s281 = sld [smem:[#allocation3 + $0x23]]
        %s282 = sld [smem:[#allocation3 + $0x24]]
        %s283 = sld [smem:[#allocation3 + $0x25]]
        %s284 = sld [smem:[#allocation3 + $0x26]]
        %s285 = sld [smem:[#allocation3 + $0x27]]
        %s286 = sld [smem:[#allocation3 + $0x28]]
        %s287 = sld [smem:[#allocation3 + $0x29]]
        %s288 = sld [smem:[#allocation3 + $0x2a]]
        %s289 = sld [smem:[#allocation3 + $0x2b]]
        %s290 = sld [smem:[#allocation3 + $0x2c]]
        %s291 = sld [smem:[#allocation3 + $0x2d]]
        %s292 = sld [smem:[#allocation3 + $0x2e]]
        %s293 = sld [smem:[#allocation3 + $0x2f]]
        %s294 = sld [smem:[#allocation3 + $0x30]]
        %s295 = sld [smem:[#allocation3 + $0x31]]
        %s296 = sld [smem:[#allocation3 + $0x32]]
        %s297 = sld [smem:[#allocation3 + $0x33]]
        %s298 = sld [smem:[#allocation3 + $0x34]]
        %s299 = sld [smem:[#allocation3 + $0x35]]
        %s300 = sld [smem:[#allocation3 + $0x36]]
        %s301 = sld [smem:[#allocation3 + $0x37]]
        %s302 = sld [smem:[#allocation3 + $0x38]]
        %s303 = sld [smem:[#allocation3 + $0x39]]
        %s304 = sld [smem:[#allocation3 + $0x3a]]
        %s305 = sld [smem:[#allocation3 + $0x3b]]
        %s306 = sld [smem:[#allocation3 + $0x3c]]
        %s307 = sld [smem:[#allocation3 + $0x3d]]
        %s308 = sld [smem:[#allocation3 + $0x3e]]
        %s309 = sld [smem:[#allocation3 + $0x3f]]
        %s310 = sld [smem:[#allocation3 + $0x40]]
        %s311 = sld [smem:[#allocation3 + $0x41]]
        %s312 = sld [smem:[#allocation3 + $0x42]]
        %s313 = sld [smem:[#allocation3 + $0x43]]
        %s314 = sld [smem:[#allocation3 + $0x44]]
        %s315 = sld [smem:[#allocation3 + $0x45]]
        %s316 = sld [smem:[#allocation3 + $0x46]]
        %s317 = sld [smem:[#allocation3 + $0x47]]
        %s318 = sld [smem:[#allocation3 + $0x48]]
        %s319 = sld [smem:[#allocation3 + $0x49]]
        %s320 = sld [smem:[#allocation3 + $0x4a]]
        %s321 = sld [smem:[#allocation3 + $0x4b]]
        %s322 = sld [smem:[#allocation3 + $0x4c]]
        %s323 = sld [smem:[#allocation3 + $0x4d]]
        %s324 = sld [smem:[#allocation3 + $0x4e]]
        %s325 = sld [smem:[#allocation3 + $0x4f]]
        %s326 = sld [smem:[#allocation3 + $0x50]]
        %s327 = sld [smem:[#allocation3 + $0x51]]
        %s328 = sld [smem:[#allocation3 + $0x52]]
        %s329 = sld [smem:[#allocation3 + $0x53]]
        %s330 = sld [smem:[#allocation3 + $0x54]]
        %s331 = sld [smem:[#allocation3 + $0x55]]
        %s332 = sld [smem:[#allocation3 + $0x56]]
        %s333 = sld [smem:[#allocation3 + $0x57]]
        %s334 = sld [smem:[#allocation3 + $0x58]]
        %s335 = sld [smem:[#allocation3 + $0x59]]
        %s336 = sld [smem:[#allocation3 + $0x5a]]
        %s337 = sld [smem:[#allocation3 + $0x5b]]
        %s338 = sld [smem:[#allocation3 + $0x5c]]
        %s339 = sld [smem:[#allocation3 + $0x5d]]
        %s340 = sld [smem:[#allocation3 + $0x5e]]
        %s341 = sld [smem:[#allocation3 + $0x5f]]
        %s342 = sld [smem:[#allocation3 + $0x60]]
        %s343 = sld [smem:[#allocation3 + $0x61]]
        %v344 = vld [vmem:[#allocation2] sm:$0xff]
        %v345 = vld [vmem:[#allocation2 + $0x10] sm:$0xff]
        %v346 = vld [vmem:[#allocation2 + $0x20] sm:$0xff]
        %v347 = vstv %s246
        %v348 = vmul.f32 %v347, %v344
        %v349 = vmul.f32 %v347, %v345
        %v350 = vadd.f32 %v348, 0.0
        %v351 = vadd.f32 %v349, 0.0
        %v352 = vstv %s253
        %v353 = vmul.f32 %v352, %v344
        %v354 = vmul.f32 %v352, %v345
        %v355 = vmul.f32 %v352, %v346
        %v356 = vadd.f32 %v353, 0.0
        %v357 = vadd.f32 %v354, 0.0
        %v358 = vadd.f32 %v355, 0.0
        %v359 = vstv %s260
        %v360 = vmul.f32 %v359, %v344
        %v361 = vmul.f32 %v359, %v345
        %v362 = vmul.f32 %v359, %v346
        %v363 = vadd.f32 %v360, 0.0
        %v364 = vadd.f32 %v361, 0.0
        %v365 = vadd.f32 %v362, 0.0
        %v366 = vstv %s267
        %v367 = vmul.f32 %v366, %v344
        %v368 = vmul.f32 %v366, %v345
        %v369 = vmul.f32 %v366, %v346
        %v370 = vadd.f32 %v367, 0.0
        %v371 = vadd.f32 %v368, 0.0
        %v372 = vadd.f32 %v369, 0.0
        %v373 = vstv %s274
        %v374 = vmul.f32 %v373, %v344
        %v375 = vmul.f32 %v373, %v345
        %v376 = vmul.f32 %v373, %v346
        %v377 = vadd.f32 %v374, 0.0
        %v378 = vadd.f32 %v375, 0.0
        %v379 = vadd.f32 %v376, 0.0
        %v380 = vstv %s281
        %v381 = vmul.f32 %v380, %v344
        %v382 = vmul.f32 %v380, %v345
        %v383 = vmul.f32 %v380, %v346
        %v384 = vadd.f32 %v381, 0.0
        %v385 = vadd.f32 %v382, 0.0
        %v386 = vadd.f32 %v383, 0.0
        %v387 = vstv %s288
        %v388 = vmul.f32 %v387, %v344
        %v389 = vmul.f32 %v387, %v345
        %v390 = vmul.f32 %v387, %v346
        %v391 = vadd.f32 %v388, 0.0
        %v392 = vadd.f32 %v389, 0.0
        %v393 = vadd.f32 %v390, 0.0
        %v394 = vld [vmem:[#allocation2 + $0x8] sm:$0xff]
        %v395 = vld [vmem:[#allocation2 + $0x18] sm:$0xff]
        %v396 = vld [vmem:[#allocation2 + $0x28] sm:$0xff]
        %v397 = vstv %s247
        %v398 = vmul.f32 %v397, %v344
        %v399 = vmul.f32 %v397, %v394
        %v400 = vmul.f32 %v397, %v345
        %v401 = vmul.f32 %v397, %v395
        %406 = vrot.lane.b32.xlu0 %v398, 127
        %v407 = vpop.permute.xlu0 %406
        %408 = vrot.lane.b32.xlu0 %v399, 127
        %v409 = vpop.permute.xlu0 %408
        %410 = vrot.lane.b32.xlu0 %v400, 127
        %v411 = vpop.permute.xlu0 %410
        %412 = vrot.lane.b32.xlu0 %v401, 127
        %v413 = vpop.permute.xlu0 %412
        %vm414 = vcmask 1039360
        %v415 = vsel %vm414, %v407, %v409
        %v416 = vsel %vm414, %v411, %v413
        %v419 = vadd.f32 %v350, %v415
        %v420 = vadd.f32 %v351, %v416
        %v421 = vstv %s254
        %v422 = vmul.f32 %v421, %v344
        %v423 = vmul.f32 %v421, %v394
        %v424 = vmul.f32 %v421, %v345
        %v425 = vmul.f32 %v421, %v395
        %v426 = vmul.f32 %v421, %v346
        %v427 = vmul.f32 %v421, %v396
        %434 = vrot.lane.b32.xlu0 %v422, 127
        %v435 = vpop.permute.xlu0 %434
        %436 = vrot.lane.b32.xlu0 %v423, 127
        %v437 = vpop.permute.xlu0 %436
        %438 = vrot.lane.b32.xlu0 %v424, 127
        %v439 = vpop.permute.xlu0 %438
        %440 = vrot.lane.b32.xlu0 %v425, 127
        %v441 = vpop.permute.xlu0 %440
        %442 = vrot.lane.b32.xlu0 %v426, 127
        %v443 = vpop.permute.xlu0 %442
        %444 = vrot.lane.b32.xlu0 %v427, 127
        %v445 = vpop.permute.xlu0 %444
        %v446 = vsel %vm414, %v435, %v437
        %v447 = vsel %vm414, %v439, %v441
        %v448 = vsel %vm414, %v443, %v445
        %v452 = vadd.f32 %v356, %v446
        %v453 = vadd.f32 %v357, %v447
        %v454 = vadd.f32 %v358, %v448
        %v455 = vstv %s261
        %v456 = vmul.f32 %v455, %v344
        %v457 = vmul.f32 %v455, %v394
        %v458 = vmul.f32 %v455, %v345
        %v459 = vmul.f32 %v455, %v395
        %v460 = vmul.f32 %v455, %v346
        %v461 = vmul.f32 %v455, %v396
        %468 = vrot.lane.b32.xlu0 %v456, 127
        %v469 = vpop.permute.xlu0 %468
        %470 = vrot.lane.b32.xlu0 %v457, 127
        %v471 = vpop.permute.xlu0 %470
        %472 = vrot.lane.b32.xlu0 %v458, 127
        %v473 = vpop.permute.xlu0 %472
        %474 = vrot.lane.b32.xlu0 %v459, 127
        %v475 = vpop.permute.xlu0 %474
        %476 = vrot.lane.b32.xlu0 %v460, 127
        %v477 = vpop.permute.xlu0 %476
        %478 = vrot.lane.b32.xlu0 %v461, 127
        %v479 = vpop.permute.xlu0 %478
        %v480 = vsel %vm414, %v469, %v471
        %v481 = vsel %vm414, %v473, %v475
        %v482 = vsel %vm414, %v477, %v479
        %v486 = vadd.f32 %v363, %v480
        %v487 = vadd.f32 %v364, %v481
        %v488 = vadd.f32 %v365, %v482
        %v489 = vstv %s268
        %v490 = vmul.f32 %v489, %v344
        %v491 = vmul.f32 %v489, %v394
        %v492 = vmul.f32 %v489, %v345
        %v493 = vmul.f32 %v489, %v395
        %v494 = vmul.f32 %v489, %v346
        %v495 = vmul.f32 %v489, %v396
        %502 = vrot.lane.b32.xlu0 %v490, 127
        %v503 = vpop.permute.xlu0 %502
        %504 = vrot.lane.b32.xlu0 %v491, 127
        %v505 = vpop.permute.xlu0 %504
        %506 = vrot.lane.b32.xlu0 %v492, 127
        %v507 = vpop.permute.xlu0 %506
        %508 = vrot.lane.b32.xlu0 %v493, 127
        %v509 = vpop.permute.xlu0 %508
        %510 = vrot.lane.b32.xlu0 %v494, 127
        %v511 = vpop.permute.xlu0 %510
        %512 = vrot.lane.b32.xlu0 %v495, 127
        %v513 = vpop.permute.xlu0 %512
        %v514 = vsel %vm414, %v503, %v505
        %v515 = vsel %vm414, %v507, %v509
        %v516 = vsel %vm414, %v511, %v513
        %v520 = vadd.f32 %v370, %v514
        %v521 = vadd.f32 %v371, %v515
        %v522 = vadd.f32 %v372, %v516
        %v523 = vstv %s275
        %v524 = vmul.f32 %v523, %v344
        %v525 = vmul.f32 %v523, %v394
        %v526 = vmul.f32 %v523, %v345
        %v527 = vmul.f32 %v523, %v395
        %v528 = vmul.f32 %v523, %v346
        %v529 = vmul.f32 %v523, %v396
        %536 = vrot.lane.b32.xlu0 %v524, 127
        %v537 = vpop.permute.xlu0 %536
        %538 = vrot.lane.b32.xlu0 %v525, 127
        %v539 = vpop.permute.xlu0 %538
        %540 = vrot.lane.b32.xlu0 %v526, 127
        %v541 = vpop.permute.xlu0 %540
        %542 = vrot.lane.b32.xlu0 %v527, 127
        %v543 = vpop.permute.xlu0 %542
        %544 = vrot.lane.b32.xlu0 %v528, 127
        %v545 = vpop.permute.xlu0 %544
        %546 = vrot.lane.b32.xlu0 %v529, 127
        %v547 = vpop.permute.xlu0 %546
        %v548 = vsel %vm414, %v537, %v539
        %v549 = vsel %vm414, %v541, %v543
        %v550 = vsel %vm414, %v545, %v547
        %v554 = vadd.f32 %v377, %v548
        %v555 = vadd.f32 %v378, %v549
        %v556 = vadd.f32 %v379, %v550
        %v557 = vstv %s282
        %v558 = vmul.f32 %v557, %v344
        %v559 = vmul.f32 %v557, %v394
        %v560 = vmul.f32 %v557, %v345
        %v561 = vmul.f32 %v557, %v395
        %v562 = vmul.f32 %v557, %v346
        %v563 = vmul.f32 %v557, %v396
        %570 = vrot.lane.b32.xlu0 %v558, 127
        %v571 = vpop.permute.xlu0 %570
        %572 = vrot.lane.b32.xlu0 %v559, 127
        %v573 = vpop.permute.xlu0 %572
        %574 = vrot.lane.b32.xlu0 %v560, 127
        %v575 = vpop.permute.xlu0 %574
        %576 = vrot.lane.b32.xlu0 %v561, 127
        %v577 = vpop.permute.xlu0 %576
        %578 = vrot.lane.b32.xlu0 %v562, 127
        %v579 = vpop.permute.xlu0 %578
        %580 = vrot.lane.b32.xlu0 %v563, 127
        %v581 = vpop.permute.xlu0 %580
        %v582 = vsel %vm414, %v571, %v573
        %v583 = vsel %vm414, %v575, %v577
        %v584 = vsel %vm414, %v579, %v581
        %v588 = vadd.f32 %v384, %v582
        %v589 = vadd.f32 %v385, %v583
        %v590 = vadd.f32 %v386, %v584
        %v591 = vstv %s289
        %v592 = vmul.f32 %v591, %v344
        %v593 = vmul.f32 %v591, %v394
        %v594 = vmul.f32 %v591, %v345
        %v595 = vmul.f32 %v591, %v395
        %v596 = vmul.f32 %v591, %v346
        %v597 = vmul.f32 %v591, %v396
        %604 = vrot.lane.b32.xlu0 %v592, 127
        %v605 = vpop.permute.xlu0 %604
        %606 = vrot.lane.b32.xlu0 %v593, 127
        %v607 = vpop.permute.xlu0 %606
        %608 = vrot.lane.b32.xlu0 %v594, 127
        %v609 = vpop.permute.xlu0 %608
        %610 = vrot.lane.b32.xlu0 %v595, 127
        %v611 = vpop.permute.xlu0 %610
        %612 = vrot.lane.b32.xlu0 %v596, 127
        %v613 = vpop.permute.xlu0 %612
        %614 = vrot.lane.b32.xlu0 %v597, 127
        %v615 = vpop.permute.xlu0 %614
        %v616 = vsel %vm414, %v605, %v607
        %v617 = vsel %vm414, %v609, %v611
        %v618 = vsel %vm414, %v613, %v615
        %v622 = vadd.f32 %v391, %v616
        %v623 = vadd.f32 %v392, %v617
        %v624 = vadd.f32 %v393, %v618
        %v625 = vstv %s248
        %v626 = vmul.f32 %v625, %v344
        %v627 = vmul.f32 %v625, %v394
        %v628 = vmul.f32 %v625, %v345
        %v629 = vmul.f32 %v625, %v395
        %634 = vrot.lane.b32.xlu0 %v626, 126
        %v635 = vpop.permute.xlu0 %634
        %636 = vrot.lane.b32.xlu0 %v627, 126
        %v637 = vpop.permute.xlu0 %636
        %638 = vrot.lane.b32.xlu0 %v628, 126
        %v639 = vpop.permute.xlu0 %638
        %640 = vrot.lane.b32.xlu0 %v629, 126
        %v641 = vpop.permute.xlu0 %640
        %vm642 = vcmask 1031168
        %v643 = vsel %vm642, %v635, %v637
        %v644 = vsel %vm642, %v639, %v641
        %v647 = vadd.f32 %v419, %v643
        %v648 = vadd.f32 %v420, %v644
        %v649 = vstv %s255
        %v650 = vmul.f32 %v649, %v344
        %v651 = vmul.f32 %v649, %v394
        %v652 = vmul.f32 %v649, %v345
        %v653 = vmul.f32 %v649, %v395
        %v654 = vmul.f32 %v649, %v346
        %v655 = vmul.f32 %v649, %v396
        %662 = vrot.lane.b32.xlu0 %v650, 126
        %v663 = vpop.permute.xlu0 %662
        %664 = vrot.lane.b32.xlu0 %v651, 126
        %v665 = vpop.permute.xlu0 %664
        %666 = vrot.lane.b32.xlu0 %v652, 126
        %v667 = vpop.permute.xlu0 %666
        %668 = vrot.lane.b32.xlu0 %v653, 126
        %v669 = vpop.permute.xlu0 %668
        %670 = vrot.lane.b32.xlu0 %v654, 126
        %v671 = vpop.permute.xlu0 %670
        %672 = vrot.lane.b32.xlu0 %v655, 126
        %v673 = vpop.permute.xlu0 %672
        %v674 = vsel %vm642, %v663, %v665
        %v675 = vsel %vm642, %v667, %v669
        %v676 = vsel %vm642, %v671, %v673
        %v680 = vadd.f32 %v452, %v674
        %v681 = vadd.f32 %v453, %v675
        %v682 = vadd.f32 %v454, %v676
        %v683 = vstv %s262
        %v684 = vmul.f32 %v683, %v344
        %v685 = vmul.f32 %v683, %v394
        %v686 = vmul.f32 %v683, %v345
        %v687 = vmul.f32 %v683, %v395
        %v688 = vmul.f32 %v683, %v346
        %v689 = vmul.f32 %v683, %v396
        %696 = vrot.lane.b32.xlu0 %v684, 126
        %v697 = vpop.permute.xlu0 %696
        %698 = vrot.lane.b32.xlu0 %v685, 126
        %v699 = vpop.permute.xlu0 %698
        %700 = vrot.lane.b32.xlu0 %v686, 126
        %v701 = vpop.permute.xlu0 %700
        %702 = vrot.lane.b32.xlu0 %v687, 126
        %v703 = vpop.permute.xlu0 %702
        %704 = vrot.lane.b32.xlu0 %v688, 126
        %v705 = vpop.permute.xlu0 %704
        %706 = vrot.lane.b32.xlu0 %v689, 126
        %v707 = vpop.permute.xlu0 %706
        %v708 = vsel %vm642, %v697, %v699
        %v709 = vsel %vm642, %v701, %v703
        %v710 = vsel %vm642, %v705, %v707
        %v714 = vadd.f32 %v486, %v708
        %v715 = vadd.f32 %v487, %v709
        %v716 = vadd.f32 %v488, %v710
        %v717 = vstv %s269
        %v718 = vmul.f32 %v717, %v344
        %v719 = vmul.f32 %v717, %v394
        %v720 = vmul.f32 %v717, %v345
        %v721 = vmul.f32 %v717, %v395
        %v722 = vmul.f32 %v717, %v346
        %v723 = vmul.f32 %v717, %v396
        %730 = vrot.lane.b32.xlu0 %v718, 126
        %v731 = vpop.permute.xlu0 %730
        %732 = vrot.lane.b32.xlu0 %v719, 126
        %v733 = vpop.permute.xlu0 %732
        %734 = vrot.lane.b32.xlu0 %v720, 126
        %v735 = vpop.permute.xlu0 %734
        %736 = vrot.lane.b32.xlu0 %v721, 126
        %v737 = vpop.permute.xlu0 %736
        %738 = vrot.lane.b32.xlu0 %v722, 126
        %v739 = vpop.permute.xlu0 %738
        %740 = vrot.lane.b32.xlu0 %v723, 126
        %v741 = vpop.permute.xlu0 %740
        %v742 = vsel %vm642, %v731, %v733
        %v743 = vsel %vm642, %v735, %v737
        %v744 = vsel %vm642, %v739, %v741
        %v748 = vadd.f32 %v520, %v742
        %v749 = vadd.f32 %v521, %v743
        %v750 = vadd.f32 %v522, %v744
        %v751 = vstv %s276
        %v752 = vmul.f32 %v751, %v344
        %v753 = vmul.f32 %v751, %v394
        %v754 = vmul.f32 %v751, %v345
        %v755 = vmul.f32 %v751, %v395
        %v756 = vmul.f32 %v751, %v346
        %v757 = vmul.f32 %v751, %v396
        %764 = vrot.lane.b32.xlu0 %v752, 126
        %v765 = vpop.permute.xlu0 %764
        %766 = vrot.lane.b32.xlu0 %v753, 126
        %v767 = vpop.permute.xlu0 %766
        %768 = vrot.lane.b32.xlu0 %v754, 126
        %v769 = vpop.permute.xlu0 %768
        %770 = vrot.lane.b32.xlu0 %v755, 126
        %v771 = vpop.permute.xlu0 %770
        %772 = vrot.lane.b32.xlu0 %v756, 126
        %v773 = vpop.permute.xlu0 %772
        %774 = vrot.lane.b32.xlu0 %v757, 126
        %v775 = vpop.permute.xlu0 %774
        %v776 = vsel %vm642, %v765, %v767
        %v777 = vsel %vm642, %v769, %v771
        %v778 = vsel %vm642, %v773, %v775
        %v782 = vadd.f32 %v554, %v776
        %v783 = vadd.f32 %v555, %v777
        %v784 = vadd.f32 %v556, %v778
        %v785 = vstv %s283
        %v786 = vmul.f32 %v785, %v344
        %v787 = vmul.f32 %v785, %v394
        %v788 = vmul.f32 %v785, %v345
        %v789 = vmul.f32 %v785, %v395
        %v790 = vmul.f32 %v785, %v346
        %v791 = vmul.f32 %v785, %v396
        %798 = vrot.lane.b32.xlu0 %v786, 126
        %v799 = vpop.permute.xlu0 %798
        %800 = vrot.lane.b32.xlu0 %v787, 126
        %v801 = vpop.permute.xlu0 %800
        %802 = vrot.lane.b32.xlu0 %v788, 126
        %v803 = vpop.permute.xlu0 %802
        %804 = vrot.lane.b32.xlu0 %v789, 126
        %v805 = vpop.permute.xlu0 %804
        %806 = vrot.lane.b32.xlu0 %v790, 126
        %v807 = vpop.permute.xlu0 %806
        %808 = vrot.lane.b32.xlu0 %v791, 126
        %v809 = vpop.permute.xlu0 %808
        %v810 = vsel %vm642, %v799, %v801
        %v811 = vsel %vm642, %v803, %v805
        %v812 = vsel %vm642, %v807, %v809
        %v816 = vadd.f32 %v588, %v810
        %v817 = vadd.f32 %v589, %v811
        %v818 = vadd.f32 %v590, %v812
        %v819 = vstv %s290
        %v820 = vmul.f32 %v819, %v344
        %v821 = vmul.f32 %v819, %v394
        %v822 = vmul.f32 %v819, %v345
        %v823 = vmul.f32 %v819, %v395
        %v824 = vmul.f32 %v819, %v346
        %v825 = vmul.f32 %v819, %v396
        %832 = vrot.lane.b32.xlu0 %v820, 126
        %v833 = vpop.permute.xlu0 %832
        %834 = vrot.lane.b32.xlu0 %v821, 126
        %v835 = vpop.permute.xlu0 %834
        %836 = vrot.lane.b32.xlu0 %v822, 126
        %v837 = vpop.permute.xlu0 %836
        %838 = vrot.lane.b32.xlu0 %v823, 126
        %v839 = vpop.permute.xlu0 %838
        %840 = vrot.lane.b32.xlu0 %v824, 126
        %v841 = vpop.permute.xlu0 %840
        %842 = vrot.lane.b32.xlu0 %v825, 126
        %v843 = vpop.permute.xlu0 %842
        %v844 = vsel %vm642, %v833, %v835
        %v845 = vsel %vm642, %v837, %v839
        %v846 = vsel %vm642, %v841, %v843
        %v850 = vadd.f32 %v622, %v844
        %v851 = vadd.f32 %v623, %v845
        %v852 = vadd.f32 %v624, %v846
        %v853 = vstv %s249
        %v854 = vmul.f32 %v853, %v344
        %v855 = vmul.f32 %v853, %v394
        %v856 = vmul.f32 %v853, %v345
        %v857 = vmul.f32 %v853, %v395
        %862 = vrot.lane.b32.xlu0 %v854, 125
        %v863 = vpop.permute.xlu0 %862
        %864 = vrot.lane.b32.xlu0 %v855, 125
        %v865 = vpop.permute.xlu0 %864
        %866 = vrot.lane.b32.xlu0 %v856, 125
        %v867 = vpop.permute.xlu0 %866
        %868 = vrot.lane.b32.xlu0 %v857, 125
        %v869 = vpop.permute.xlu0 %868
        %vm870 = vcmask 1022976
        %v871 = vsel %vm870, %v863, %v865
        %v872 = vsel %vm870, %v867, %v869
        %v875 = vadd.f32 %v647, %v871
        %v876 = vadd.f32 %v648, %v872
        %v877 = vstv %s256
        %v878 = vmul.f32 %v877, %v344
        %v879 = vmul.f32 %v877, %v394
        %v880 = vmul.f32 %v877, %v345
        %v881 = vmul.f32 %v877, %v395
        %v882 = vmul.f32 %v877, %v346
        %v883 = vmul.f32 %v877, %v396
        %890 = vrot.lane.b32.xlu0 %v878, 125
        %v891 = vpop.permute.xlu0 %890
        %892 = vrot.lane.b32.xlu0 %v879, 125
        %v893 = vpop.permute.xlu0 %892
        %894 = vrot.lane.b32.xlu0 %v880, 125
        %v895 = vpop.permute.xlu0 %894
        %896 = vrot.lane.b32.xlu0 %v881, 125
        %v897 = vpop.permute.xlu0 %896
        %898 = vrot.lane.b32.xlu0 %v882, 125
        %v899 = vpop.permute.xlu0 %898
        %900 = vrot.lane.b32.xlu0 %v883, 125
        %v901 = vpop.permute.xlu0 %900
        %v902 = vsel %vm870, %v891, %v893
        %v903 = vsel %vm870, %v895, %v897
        %v904 = vsel %vm870, %v899, %v901
        %v908 = vadd.f32 %v680, %v902
        %v909 = vadd.f32 %v681, %v903
        %v910 = vadd.f32 %v682, %v904
        %v911 = vstv %s263
        %v912 = vmul.f32 %v911, %v344
        %v913 = vmul.f32 %v911, %v394
        %v914 = vmul.f32 %v911, %v345
        %v915 = vmul.f32 %v911, %v395
        %v916 = vmul.f32 %v911, %v346
        %v917 = vmul.f32 %v911, %v396
        %924 = vrot.lane.b32.xlu0 %v912, 125
        %v925 = vpop.permute.xlu0 %924
        %926 = vrot.lane.b32.xlu0 %v913, 125
        %v927 = vpop.permute.xlu0 %926
        %928 = vrot.lane.b32.xlu0 %v914, 125
        %v929 = vpop.permute.xlu0 %928
        %930 = vrot.lane.b32.xlu0 %v915, 125
        %v931 = vpop.permute.xlu0 %930
        %932 = vrot.lane.b32.xlu0 %v916, 125
        %v933 = vpop.permute.xlu0 %932
        %934 = vrot.lane.b32.xlu0 %v917, 125
        %v935 = vpop.permute.xlu0 %934
        %v936 = vsel %vm870, %v925, %v927
        %v937 = vsel %vm870, %v929, %v931
        %v938 = vsel %vm870, %v933, %v935
        %v942 = vadd.f32 %v714, %v936
        %v943 = vadd.f32 %v715, %v937
        %v944 = vadd.f32 %v716, %v938
        %v945 = vstv %s270
        %v946 = vmul.f32 %v945, %v344
        %v947 = vmul.f32 %v945, %v394
        %v948 = vmul.f32 %v945, %v345
        %v949 = vmul.f32 %v945, %v395
        %v950 = vmul.f32 %v945, %v346
        %v951 = vmul.f32 %v945, %v396
        %958 = vrot.lane.b32.xlu0 %v946, 125
        %v959 = vpop.permute.xlu0 %958
        %960 = vrot.lane.b32.xlu0 %v947, 125
        %v961 = vpop.permute.xlu0 %960
        %962 = vrot.lane.b32.xlu0 %v948, 125
        %v963 = vpop.permute.xlu0 %962
        %964 = vrot.lane.b32.xlu0 %v949, 125
        %v965 = vpop.permute.xlu0 %964
        %966 = vrot.lane.b32.xlu0 %v950, 125
        %v967 = vpop.permute.xlu0 %966
        %968 = vrot.lane.b32.xlu0 %v951, 125
        %v969 = vpop.permute.xlu0 %968
        %v970 = vsel %vm870, %v959, %v961
        %v971 = vsel %vm870, %v963, %v965
        %v972 = vsel %vm870, %v967, %v969
        %v976 = vadd.f32 %v748, %v970
        %v977 = vadd.f32 %v749, %v971
        %v978 = vadd.f32 %v750, %v972
        %v979 = vstv %s277
        %v980 = vmul.f32 %v979, %v344
        %v981 = vmul.f32 %v979, %v394
        %v982 = vmul.f32 %v979, %v345
        %v983 = vmul.f32 %v979, %v395
        %v984 = vmul.f32 %v979, %v346
        %v985 = vmul.f32 %v979, %v396
        %992 = vrot.lane.b32.xlu0 %v980, 125
        %v993 = vpop.permute.xlu0 %992
        %994 = vrot.lane.b32.xlu0 %v981, 125
        %v995 = vpop.permute.xlu0 %994
        %996 = vrot.lane.b32.xlu0 %v982, 125
        %v997 = vpop.permute.xlu0 %996
        %998 = vrot.lane.b32.xlu0 %v983, 125
        %v999 = vpop.permute.xlu0 %998
        %1000 = vrot.lane.b32.xlu0 %v984, 125
        %v1001 = vpop.permute.xlu0 %1000
        %1002 = vrot.lane.b32.xlu0 %v985, 125
        %v1003 = vpop.permute.xlu0 %1002
        %v1004 = vsel %vm870, %v993, %v995
        %v1005 = vsel %vm870, %v997, %v999
        %v1006 = vsel %vm870, %v1001, %v1003
        %v1010 = vadd.f32 %v782, %v1004
        %v1011 = vadd.f32 %v783, %v1005
        %v1012 = vadd.f32 %v784, %v1006
        %v1013 = vstv %s284
        %v1014 = vmul.f32 %v1013, %v344
        %v1015 = vmul.f32 %v1013, %v394
        %v1016 = vmul.f32 %v1013, %v345
        %v1017 = vmul.f32 %v1013, %v395
        %v1018 = vmul.f32 %v1013, %v346
        %v1019 = vmul.f32 %v1013, %v396
        %1026 = vrot.lane.b32.xlu0 %v1014, 125
        %v1027 = vpop.permute.xlu0 %1026
        %1028 = vrot.lane.b32.xlu0 %v1015, 125
        %v1029 = vpop.permute.xlu0 %1028
        %1030 = vrot.lane.b32.xlu0 %v1016, 125
        %v1031 = vpop.permute.xlu0 %1030
        %1032 = vrot.lane.b32.xlu0 %v1017, 125
        %v1033 = vpop.permute.xlu0 %1032
        %1034 = vrot.lane.b32.xlu0 %v1018, 125
        %v1035 = vpop.permute.xlu0 %1034
        %1036 = vrot.lane.b32.xlu0 %v1019, 125
        %v1037 = vpop.permute.xlu0 %1036
        %v1038 = vsel %vm870, %v1027, %v1029
        %v1039 = vsel %vm870, %v1031, %v1033
        %v1040 = vsel %vm870, %v1035, %v1037
        %v1044 = vadd.f32 %v816, %v1038
        %v1045 = vadd.f32 %v817, %v1039
        %v1046 = vadd.f32 %v818, %v1040
        %v1047 = vstv %s291
        %v1048 = vmul.f32 %v1047, %v344
        %v1049 = vmul.f32 %v1047, %v394
        %v1050 = vmul.f32 %v1047, %v345
        %v1051 = vmul.f32 %v1047, %v395
        %v1052 = vmul.f32 %v1047, %v346
        %v1053 = vmul.f32 %v1047, %v396
        %1060 = vrot.lane.b32.xlu0 %v1048, 125
        %v1061 = vpop.permute.xlu0 %1060
        %1062 = vrot.lane.b32.xlu0 %v1049, 125
        %v1063 = vpop.permute.xlu0 %1062
        %1064 = vrot.lane.b32.xlu0 %v1050, 125
        %v1065 = vpop.permute.xlu0 %1064
        %1066 = vrot.lane.b32.xlu0 %v1051, 125
        %v1067 = vpop.permute.xlu0 %1066
        %1068 = vrot.lane.b32.xlu0 %v1052, 125
        %v1069 = vpop.permute.xlu0 %1068
        %1070 = vrot.lane.b32.xlu0 %v1053, 125
        %v1071 = vpop.permute.xlu0 %1070
        %v1072 = vsel %vm870, %v1061, %v1063
        %v1073 = vsel %vm870, %v1065, %v1067
        %v1074 = vsel %vm870, %v1069, %v1071
        %v1078 = vadd.f32 %v850, %v1072
        %v1079 = vadd.f32 %v851, %v1073
        %v1080 = vadd.f32 %v852, %v1074
        %v1081 = vstv %s250
        %v1082 = vmul.f32 %v1081, %v344
        %v1083 = vmul.f32 %v1081, %v394
        %v1084 = vmul.f32 %v1081, %v345
        %v1085 = vmul.f32 %v1081, %v395
        %1090 = vrot.lane.b32.xlu0 %v1082, 124
        %v1091 = vpop.permute.xlu0 %1090
        %1092 = vrot.lane.b32.xlu0 %v1083, 124
        %v1093 = vpop.permute.xlu0 %1092
        %1094 = vrot.lane.b32.xlu0 %v1084, 124
        %v1095 = vpop.permute.xlu0 %1094
        %1096 = vrot.lane.b32.xlu0 %v1085, 124
        %v1097 = vpop.permute.xlu0 %1096
        %vm1098 = vcmask 1014784
        %v1099 = vsel %vm1098, %v1091, %v1093
        %v1100 = vsel %vm1098, %v1095, %v1097
        %v1103 = vadd.f32 %v875, %v1099
        %v1104 = vadd.f32 %v876, %v1100
        %v1105 = vstv %s257
        %v1106 = vmul.f32 %v1105, %v344
        %v1107 = vmul.f32 %v1105, %v394
        %v1108 = vmul.f32 %v1105, %v345
        %v1109 = vmul.f32 %v1105, %v395
        %v1110 = vmul.f32 %v1105, %v346
        %v1111 = vmul.f32 %v1105, %v396
        %1118 = vrot.lane.b32.xlu0 %v1106, 124
        %v1119 = vpop.permute.xlu0 %1118
        %1120 = vrot.lane.b32.xlu0 %v1107, 124
        %v1121 = vpop.permute.xlu0 %1120
        %1122 = vrot.lane.b32.xlu0 %v1108, 124
        %v1123 = vpop.permute.xlu0 %1122
        %1124 = vrot.lane.b32.xlu0 %v1109, 124
        %v1125 = vpop.permute.xlu0 %1124
        %1126 = vrot.lane.b32.xlu0 %v1110, 124
        %v1127 = vpop.permute.xlu0 %1126
        %1128 = vrot.lane.b32.xlu0 %v1111, 124
        %v1129 = vpop.permute.xlu0 %1128
        %v1130 = vsel %vm1098, %v1119, %v1121
        %v1131 = vsel %vm1098, %v1123, %v1125
        %v1132 = vsel %vm1098, %v1127, %v1129
        %v1136 = vadd.f32 %v908, %v1130
        %v1137 = vadd.f32 %v909, %v1131
        %v1138 = vadd.f32 %v910, %v1132
        %v1139 = vstv %s264
        %v1140 = vmul.f32 %v1139, %v344
        %v1141 = vmul.f32 %v1139, %v394
        %v1142 = vmul.f32 %v1139, %v345
        %v1143 = vmul.f32 %v1139, %v395
        %v1144 = vmul.f32 %v1139, %v346
        %v1145 = vmul.f32 %v1139, %v396
        %1152 = vrot.lane.b32.xlu0 %v1140, 124
        %v1153 = vpop.permute.xlu0 %1152
        %1154 = vrot.lane.b32.xlu0 %v1141, 124
        %v1155 = vpop.permute.xlu0 %1154
        %1156 = vrot.lane.b32.xlu0 %v1142, 124
        %v1157 = vpop.permute.xlu0 %1156
        %1158 = vrot.lane.b32.xlu0 %v1143, 124
        %v1159 = vpop.permute.xlu0 %1158
        %1160 = vrot.lane.b32.xlu0 %v1144, 124
        %v1161 = vpop.permute.xlu0 %1160
        %1162 = vrot.lane.b32.xlu0 %v1145, 124
        %v1163 = vpop.permute.xlu0 %1162
        %v1164 = vsel %vm1098, %v1153, %v1155
        %v1165 = vsel %vm1098, %v1157, %v1159
        %v1166 = vsel %vm1098, %v1161, %v1163
        %v1170 = vadd.f32 %v942, %v1164
        %v1171 = vadd.f32 %v943, %v1165
        %v1172 = vadd.f32 %v944, %v1166
        %v1173 = vstv %s271
        %v1174 = vmul.f32 %v1173, %v344
        %v1175 = vmul.f32 %v1173, %v394
        %v1176 = vmul.f32 %v1173, %v345
        %v1177 = vmul.f32 %v1173, %v395
        %v1178 = vmul.f32 %v1173, %v346
        %v1179 = vmul.f32 %v1173, %v396
        %1186 = vrot.lane.b32.xlu0 %v1174, 124
        %v1187 = vpop.permute.xlu0 %1186
        %1188 = vrot.lane.b32.xlu0 %v1175, 124
        %v1189 = vpop.permute.xlu0 %1188
        %1190 = vrot.lane.b32.xlu0 %v1176, 124
        %v1191 = vpop.permute.xlu0 %1190
        %1192 = vrot.lane.b32.xlu0 %v1177, 124
        %v1193 = vpop.permute.xlu0 %1192
        %1194 = vrot.lane.b32.xlu0 %v1178, 124
        %v1195 = vpop.permute.xlu0 %1194
        %1196 = vrot.lane.b32.xlu0 %v1179, 124
        %v1197 = vpop.permute.xlu0 %1196
        %v1198 = vsel %vm1098, %v1187, %v1189
        %v1199 = vsel %vm1098, %v1191, %v1193
        %v1200 = vsel %vm1098, %v1195, %v1197
        %v1204 = vadd.f32 %v976, %v1198
        %v1205 = vadd.f32 %v977, %v1199
        %v1206 = vadd.f32 %v978, %v1200
        %v1207 = vstv %s278
        %v1208 = vmul.f32 %v1207, %v344
        %v1209 = vmul.f32 %v1207, %v394
        %v1210 = vmul.f32 %v1207, %v345
        %v1211 = vmul.f32 %v1207, %v395
        %v1212 = vmul.f32 %v1207, %v346
        %v1213 = vmul.f32 %v1207, %v396
        %1220 = vrot.lane.b32.xlu0 %v1208, 124
        %v1221 = vpop.permute.xlu0 %1220
        %1222 = vrot.lane.b32.xlu0 %v1209, 124
        %v1223 = vpop.permute.xlu0 %1222
        %1224 = vrot.lane.b32.xlu0 %v1210, 124
        %v1225 = vpop.permute.xlu0 %1224
        %1226 = vrot.lane.b32.xlu0 %v1211, 124
        %v1227 = vpop.permute.xlu0 %1226
        %1228 = vrot.lane.b32.xlu0 %v1212, 124
        %v1229 = vpop.permute.xlu0 %1228
        %1230 = vrot.lane.b32.xlu0 %v1213, 124
        %v1231 = vpop.permute.xlu0 %1230
        %v1232 = vsel %vm1098, %v1221, %v1223
        %v1233 = vsel %vm1098, %v1225, %v1227
        %v1234 = vsel %vm1098, %v1229, %v1231
        %v1238 = vadd.f32 %v1010, %v1232
        %v1239 = vadd.f32 %v1011, %v1233
        %v1240 = vadd.f32 %v1012, %v1234
        %v1241 = vstv %s285
        %v1242 = vmul.f32 %v1241, %v344
        %v1243 = vmul.f32 %v1241, %v394
        %v1244 = vmul.f32 %v1241, %v345
        %v1245 = vmul.f32 %v1241, %v395
        %v1246 = vmul.f32 %v1241, %v346
        %v1247 = vmul.f32 %v1241, %v396
        %1254 = vrot.lane.b32.xlu0 %v1242, 124
        %v1255 = vpop.permute.xlu0 %1254
        %1256 = vrot.lane.b32.xlu0 %v1243, 124
        %v1257 = vpop.permute.xlu0 %1256
        %1258 = vrot.lane.b32.xlu0 %v1244, 124
        %v1259 = vpop.permute.xlu0 %1258
        %1260 = vrot.lane.b32.xlu0 %v1245, 124
        %v1261 = vpop.permute.xlu0 %1260
        %1262 = vrot.lane.b32.xlu0 %v1246, 124
        %v1263 = vpop.permute.xlu0 %1262
        %1264 = vrot.lane.b32.xlu0 %v1247, 124
        %v1265 = vpop.permute.xlu0 %1264
        %v1266 = vsel %vm1098, %v1255, %v1257
        %v1267 = vsel %vm1098, %v1259, %v1261
        %v1268 = vsel %vm1098, %v1263, %v1265
        %v1272 = vadd.f32 %v1044, %v1266
        %v1273 = vadd.f32 %v1045, %v1267
        %v1274 = vadd.f32 %v1046, %v1268
        %v1275 = vstv %s292
        %v1276 = vmul.f32 %v1275, %v344
        %v1277 = vmul.f32 %v1275, %v394
        %v1278 = vmul.f32 %v1275, %v345
        %v1279 = vmul.f32 %v1275, %v395
        %v1280 = vmul.f32 %v1275, %v346
        %v1281 = vmul.f32 %v1275, %v396
        %1288 = vrot.lane.b32.xlu0 %v1276, 124
        %v1289 = vpop.permute.xlu0 %1288
        %1290 = vrot.lane.b32.xlu0 %v1277, 124
        %v1291 = vpop.permute.xlu0 %1290
        %1292 = vrot.lane.b32.xlu0 %v1278, 124
        %v1293 = vpop.permute.xlu0 %1292
        %1294 = vrot.lane.b32.xlu0 %v1279, 124
        %v1295 = vpop.permute.xlu0 %1294
        %1296 = vrot.lane.b32.xlu0 %v1280, 124
        %v1297 = vpop.permute.xlu0 %1296
        %1298 = vrot.lane.b32.xlu0 %v1281, 124
        %v1299 = vpop.permute.xlu0 %1298
        %v1300 = vsel %vm1098, %v1289, %v1291
        %v1301 = vsel %vm1098, %v1293, %v1295
        %v1302 = vsel %vm1098, %v1297, %v1299
        %v1306 = vadd.f32 %v1078, %v1300
        %v1307 = vadd.f32 %v1079, %v1301
        %v1308 = vadd.f32 %v1080, %v1302
        %v1309 = vstv %s251
        %v1310 = vmul.f32 %v1309, %v344
        %v1311 = vmul.f32 %v1309, %v394
        %v1312 = vmul.f32 %v1309, %v345
        %v1313 = vmul.f32 %v1309, %v395
        %1318 = vrot.lane.b32.xlu0 %v1310, 123
        %v1319 = vpop.permute.xlu0 %1318
        %1320 = vrot.lane.b32.xlu0 %v1311, 123
        %v1321 = vpop.permute.xlu0 %1320
        %1322 = vrot.lane.b32.xlu0 %v1312, 123
        %v1323 = vpop.permute.xlu0 %1322
        %1324 = vrot.lane.b32.xlu0 %v1313, 123
        %v1325 = vpop.permute.xlu0 %1324
        %vm1326 = vcmask 1006592
        %v1327 = vsel %vm1326, %v1319, %v1321
        %v1328 = vsel %vm1326, %v1323, %v1325
        %v1331 = vadd.f32 %v1103, %v1327
        %v1332 = vadd.f32 %v1104, %v1328
        %v1333 = vstv %s258
        %v1334 = vmul.f32 %v1333, %v344
        %v1335 = vmul.f32 %v1333, %v394
        %v1336 = vmul.f32 %v1333, %v345
        %v1337 = vmul.f32 %v1333, %v395
        %v1338 = vmul.f32 %v1333, %v346
        %v1339 = vmul.f32 %v1333, %v396
        %1346 = vrot.lane.b32.xlu0 %v1334, 123
        %v1347 = vpop.permute.xlu0 %1346
        %1348 = vrot.lane.b32.xlu0 %v1335, 123
        %v1349 = vpop.permute.xlu0 %1348
        %1350 = vrot.lane.b32.xlu0 %v1336, 123
        %v1351 = vpop.permute.xlu0 %1350
        %1352 = vrot.lane.b32.xlu0 %v1337, 123
        %v1353 = vpop.permute.xlu0 %1352
        %1354 = vrot.lane.b32.xlu0 %v1338, 123
        %v1355 = vpop.permute.xlu0 %1354
        %1356 = vrot.lane.b32.xlu0 %v1339, 123
        %v1357 = vpop.permute.xlu0 %1356
        %v1358 = vsel %vm1326, %v1347, %v1349
        %v1359 = vsel %vm1326, %v1351, %v1353
        %v1360 = vsel %vm1326, %v1355, %v1357
        %v1364 = vadd.f32 %v1136, %v1358
        %v1365 = vadd.f32 %v1137, %v1359
        %v1366 = vadd.f32 %v1138, %v1360
        %v1367 = vstv %s265
        %v1368 = vmul.f32 %v1367, %v344
        %v1369 = vmul.f32 %v1367, %v394
        %v1370 = vmul.f32 %v1367, %v345
        %v1371 = vmul.f32 %v1367, %v395
        %v1372 = vmul.f32 %v1367, %v346
        %v1373 = vmul.f32 %v1367, %v396
        %1380 = vrot.lane.b32.xlu0 %v1368, 123
        %v1381 = vpop.permute.xlu0 %1380
        %1382 = vrot.lane.b32.xlu0 %v1369, 123
        %v1383 = vpop.permute.xlu0 %1382
        %1384 = vrot.lane.b32.xlu0 %v1370, 123
        %v1385 = vpop.permute.xlu0 %1384
        %1386 = vrot.lane.b32.xlu0 %v1371, 123
        %v1387 = vpop.permute.xlu0 %1386
        %1388 = vrot.lane.b32.xlu0 %v1372, 123
        %v1389 = vpop.permute.xlu0 %1388
        %1390 = vrot.lane.b32.xlu0 %v1373, 123
        %v1391 = vpop.permute.xlu0 %1390
        %v1392 = vsel %vm1326, %v1381, %v1383
        %v1393 = vsel %vm1326, %v1385, %v1387
        %v1394 = vsel %vm1326, %v1389, %v1391
        %v1398 = vadd.f32 %v1170, %v1392
        %v1399 = vadd.f32 %v1171, %v1393
        %v1400 = vadd.f32 %v1172, %v1394
        %v1401 = vstv %s272
        %v1402 = vmul.f32 %v1401, %v344
        %v1403 = vmul.f32 %v1401, %v394
        %v1404 = vmul.f32 %v1401, %v345
        %v1405 = vmul.f32 %v1401, %v395
        %v1406 = vmul.f32 %v1401, %v346
        %v1407 = vmul.f32 %v1401, %v396
        %1414 = vrot.lane.b32.xlu0 %v1402, 123
        %v1415 = vpop.permute.xlu0 %1414
        %1416 = vrot.lane.b32.xlu0 %v1403, 123
        %v1417 = vpop.permute.xlu0 %1416
        %1418 = vrot.lane.b32.xlu0 %v1404, 123
        %v1419 = vpop.permute.xlu0 %1418
        %1420 = vrot.lane.b32.xlu0 %v1405, 123
        %v1421 = vpop.permute.xlu0 %1420
        %1422 = vrot.lane.b32.xlu0 %v1406, 123
        %v1423 = vpop.permute.xlu0 %1422
        %1424 = vrot.lane.b32.xlu0 %v1407, 123
        %v1425 = vpop.permute.xlu0 %1424
        %v1426 = vsel %vm1326, %v1415, %v1417
        %v1427 = vsel %vm1326, %v1419, %v1421
        %v1428 = vsel %vm1326, %v1423, %v1425
        %v1432 = vadd.f32 %v1204, %v1426
        %v1433 = vadd.f32 %v1205, %v1427
        %v1434 = vadd.f32 %v1206, %v1428
        %v1435 = vstv %s279
        %v1436 = vmul.f32 %v1435, %v344
        %v1437 = vmul.f32 %v1435, %v394
        %v1438 = vmul.f32 %v1435, %v345
        %v1439 = vmul.f32 %v1435, %v395
        %v1440 = vmul.f32 %v1435, %v346
        %v1441 = vmul.f32 %v1435, %v396
        %1448 = vrot.lane.b32.xlu0 %v1436, 123
        %v1449 = vpop.permute.xlu0 %1448
        %1450 = vrot.lane.b32.xlu0 %v1437, 123
        %v1451 = vpop.permute.xlu0 %1450
        %1452 = vrot.lane.b32.xlu0 %v1438, 123
        %v1453 = vpop.permute.xlu0 %1452
        %1454 = vrot.lane.b32.xlu0 %v1439, 123
        %v1455 = vpop.permute.xlu0 %1454
        %1456 = vrot.lane.b32.xlu0 %v1440, 123
        %v1457 = vpop.permute.xlu0 %1456
        %1458 = vrot.lane.b32.xlu0 %v1441, 123
        %v1459 = vpop.permute.xlu0 %1458
        %v1460 = vsel %vm1326, %v1449, %v1451
        %v1461 = vsel %vm1326, %v1453, %v1455
        %v1462 = vsel %vm1326, %v1457, %v1459
        %v1466 = vadd.f32 %v1238, %v1460
        %v1467 = vadd.f32 %v1239, %v1461
        %v1468 = vadd.f32 %v1240, %v1462
        %v1469 = vstv %s286
        %v1470 = vmul.f32 %v1469, %v344
        %v1471 = vmul.f32 %v1469, %v394
        %v1472 = vmul.f32 %v1469, %v345
        %v1473 = vmul.f32 %v1469, %v395
        %v1474 = vmul.f32 %v1469, %v346
        %v1475 = vmul.f32 %v1469, %v396
        %1482 = vrot.lane.b32.xlu0 %v1470, 123
        %v1483 = vpop.permute.xlu0 %1482
        %1484 = vrot.lane.b32.xlu0 %v1471, 123
        %v1485 = vpop.permute.xlu0 %1484
        %1486 = vrot.lane.b32.xlu0 %v1472, 123
        %v1487 = vpop.permute.xlu0 %1486
        %1488 = vrot.lane.b32.xlu0 %v1473, 123
        %v1489 = vpop.permute.xlu0 %1488
        %1490 = vrot.lane.b32.xlu0 %v1474, 123
        %v1491 = vpop.permute.xlu0 %1490
        %1492 = vrot.lane.b32.xlu0 %v1475, 123
        %v1493 = vpop.permute.xlu0 %1492
        %v1494 = vsel %vm1326, %v1483, %v1485
        %v1495 = vsel %vm1326, %v1487, %v1489
        %v1496 = vsel %vm1326, %v1491, %v1493
        %v1500 = vadd.f32 %v1272, %v1494
        %v1501 = vadd.f32 %v1273, %v1495
        %v1502 = vadd.f32 %v1274, %v1496
        %v1503 = vstv %s293
        %v1504 = vmul.f32 %v1503, %v344
        %v1505 = vmul.f32 %v1503, %v394
        %v1506 = vmul.f32 %v1503, %v345
        %v1507 = vmul.f32 %v1503, %v395
        %v1508 = vmul.f32 %v1503, %v346
        %v1509 = vmul.f32 %v1503, %v396
        %1516 = vrot.lane.b32.xlu0 %v1504, 123
        %v1517 = vpop.permute.xlu0 %1516
        %1518 = vrot.lane.b32.xlu0 %v1505, 123
        %v1519 = vpop.permute.xlu0 %1518
        %1520 = vrot.lane.b32.xlu0 %v1506, 123
        %v1521 = vpop.permute.xlu0 %1520
        %1522 = vrot.lane.b32.xlu0 %v1507, 123
        %v1523 = vpop.permute.xlu0 %1522
        %1524 = vrot.lane.b32.xlu0 %v1508, 123
        %v1525 = vpop.permute.xlu0 %1524
        %1526 = vrot.lane.b32.xlu0 %v1509, 123
        %v1527 = vpop.permute.xlu0 %1526
        %v1528 = vsel %vm1326, %v1517, %v1519
        %v1529 = vsel %vm1326, %v1521, %v1523
        %v1530 = vsel %vm1326, %v1525, %v1527
        %v1534 = vadd.f32 %v1306, %v1528
        %v1535 = vadd.f32 %v1307, %v1529
        %v1536 = vadd.f32 %v1308, %v1530
        %v1537 = vstv %s252
        %v1538 = vmul.f32 %v1537, %v344
        %v1539 = vmul.f32 %v1537, %v394
        %v1540 = vmul.f32 %v1537, %v345
        %v1541 = vmul.f32 %v1537, %v395
        %1546 = vrot.lane.b32.xlu0 %v1538, 122
        %v1547 = vpop.permute.xlu0 %1546
        %1548 = vrot.lane.b32.xlu0 %v1539, 122
        %v1549 = vpop.permute.xlu0 %1548
        %1550 = vrot.lane.b32.xlu0 %v1540, 122
        %v1551 = vpop.permute.xlu0 %1550
        %1552 = vrot.lane.b32.xlu0 %v1541, 122
        %v1553 = vpop.permute.xlu0 %1552
        %vm1554 = vcmask 998400
        %v1555 = vsel %vm1554, %v1547, %v1549
        %v1556 = vsel %vm1554, %v1551, %v1553
        %v1559 = vadd.f32 %v1331, %v1555
        %v1560 = vadd.f32 %v1332, %v1556
        %v1561 = vstv %s259
        %v1562 = vmul.f32 %v1561, %v344
        %v1563 = vmul.f32 %v1561, %v394
        %v1564 = vmul.f32 %v1561, %v345
        %v1565 = vmul.f32 %v1561, %v395
        %v1566 = vmul.f32 %v1561, %v346
        %v1567 = vmul.f32 %v1561, %v396
        %1574 = vrot.lane.b32.xlu0 %v1562, 122
        %v1575 = vpop.permute.xlu0 %1574
        %1576 = vrot.lane.b32.xlu0 %v1563, 122
        %v1577 = vpop.permute.xlu0 %1576
        %1578 = vrot.lane.b32.xlu0 %v1564, 122
        %v1579 = vpop.permute.xlu0 %1578
        %1580 = vrot.lane.b32.xlu0 %v1565, 122
        %v1581 = vpop.permute.xlu0 %1580
        %1582 = vrot.lane.b32.xlu0 %v1566, 122
        %v1583 = vpop.permute.xlu0 %1582
        %1584 = vrot.lane.b32.xlu0 %v1567, 122
        %v1585 = vpop.permute.xlu0 %1584
        %v1586 = vsel %vm1554, %v1575, %v1577
        %v1587 = vsel %vm1554, %v1579, %v1581
        %v1588 = vsel %vm1554, %v1583, %v1585
        %v1592 = vadd.f32 %v1364, %v1586
        %v1593 = vadd.f32 %v1365, %v1587
        %v1594 = vadd.f32 %v1366, %v1588
        %v1595 = vstv %s266
        %v1596 = vmul.f32 %v1595, %v344
        %v1597 = vmul.f32 %v1595, %v394
        %v1598 = vmul.f32 %v1595, %v345
        %v1599 = vmul.f32 %v1595, %v395
        %v1600 = vmul.f32 %v1595, %v346
        %v1601 = vmul.f32 %v1595, %v396
        %1608 = vrot.lane.b32.xlu0 %v1596, 122
        %v1609 = vpop.permute.xlu0 %1608
        %1610 = vrot.lane.b32.xlu0 %v1597, 122
        %v1611 = vpop.permute.xlu0 %1610
        %1612 = vrot.lane.b32.xlu0 %v1598, 122
        %v1613 = vpop.permute.xlu0 %1612
        %1614 = vrot.lane.b32.xlu0 %v1599, 122
        %v1615 = vpop.permute.xlu0 %1614
        %1616 = vrot.lane.b32.xlu0 %v1600, 122
        %v1617 = vpop.permute.xlu0 %1616
        %1618 = vrot.lane.b32.xlu0 %v1601, 122
        %v1619 = vpop.permute.xlu0 %1618
        %v1620 = vsel %vm1554, %v1609, %v1611
        %v1621 = vsel %vm1554, %v1613, %v1615
        %v1622 = vsel %vm1554, %v1617, %v1619
        %v1626 = vadd.f32 %v1398, %v1620
        %v1627 = vadd.f32 %v1399, %v1621
        %v1628 = vadd.f32 %v1400, %v1622
        %v1629 = vstv %s273
        %v1630 = vmul.f32 %v1629, %v344
        %v1631 = vmul.f32 %v1629, %v394
        %v1632 = vmul.f32 %v1629, %v345
        %v1633 = vmul.f32 %v1629, %v395
        %v1634 = vmul.f32 %v1629, %v346
        %v1635 = vmul.f32 %v1629, %v396
        %1642 = vrot.lane.b32.xlu0 %v1630, 122
        %v1643 = vpop.permute.xlu0 %1642
        %1644 = vrot.lane.b32.xlu0 %v1631, 122
        %v1645 = vpop.permute.xlu0 %1644
        %1646 = vrot.lane.b32.xlu0 %v1632, 122
        %v1647 = vpop.permute.xlu0 %1646
        %1648 = vrot.lane.b32.xlu0 %v1633, 122
        %v1649 = vpop.permute.xlu0 %1648
        %1650 = vrot.lane.b32.xlu0 %v1634, 122
        %v1651 = vpop.permute.xlu0 %1650
        %1652 = vrot.lane.b32.xlu0 %v1635, 122
        %v1653 = vpop.permute.xlu0 %1652
        %v1654 = vsel %vm1554, %v1643, %v1645
        %v1655 = vsel %vm1554, %v1647, %v1649
        %v1656 = vsel %vm1554, %v1651, %v1653
        %v1660 = vadd.f32 %v1432, %v1654
        %v1661 = vadd.f32 %v1433, %v1655
        %v1662 = vadd.f32 %v1434, %v1656
        %v1663 = vstv %s280
        %v1664 = vmul.f32 %v1663, %v344
        %v1665 = vmul.f32 %v1663, %v394
        %v1666 = vmul.f32 %v1663, %v345
        %v1667 = vmul.f32 %v1663, %v395
        %v1668 = vmul.f32 %v1663, %v346
        %v1669 = vmul.f32 %v1663, %v396
        %1676 = vrot.lane.b32.xlu0 %v1664, 122
        %v1677 = vpop.permute.xlu0 %1676
        %1678 = vrot.lane.b32.xlu0 %v1665, 122
        %v1679 = vpop.permute.xlu0 %1678
        %1680 = vrot.lane.b32.xlu0 %v1666, 122
        %v1681 = vpop.permute.xlu0 %1680
        %1682 = vrot.lane.b32.xlu0 %v1667, 122
        %v1683 = vpop.permute.xlu0 %1682
        %1684 = vrot.lane.b32.xlu0 %v1668, 122
        %v1685 = vpop.permute.xlu0 %1684
        %1686 = vrot.lane.b32.xlu0 %v1669, 122
        %v1687 = vpop.permute.xlu0 %1686
        %v1688 = vsel %vm1554, %v1677, %v1679
        %v1689 = vsel %vm1554, %v1681, %v1683
        %v1690 = vsel %vm1554, %v1685, %v1687
        %v1694 = vadd.f32 %v1466, %v1688
        %v1695 = vadd.f32 %v1467, %v1689
        %v1696 = vadd.f32 %v1468, %v1690
        %v1697 = vstv %s287
        %v1698 = vmul.f32 %v1697, %v344
        %v1699 = vmul.f32 %v1697, %v394
        %v1700 = vmul.f32 %v1697, %v345
        %v1701 = vmul.f32 %v1697, %v395
        %v1702 = vmul.f32 %v1697, %v346
        %v1703 = vmul.f32 %v1697, %v396
        %1710 = vrot.lane.b32.xlu0 %v1698, 122
        %v1711 = vpop.permute.xlu0 %1710
        %1712 = vrot.lane.b32.xlu0 %v1699, 122
        %v1713 = vpop.permute.xlu0 %1712
        %1714 = vrot.lane.b32.xlu0 %v1700, 122
        %v1715 = vpop.permute.xlu0 %1714
        %1716 = vrot.lane.b32.xlu0 %v1701, 122
        %v1717 = vpop.permute.xlu0 %1716
        %1718 = vrot.lane.b32.xlu0 %v1702, 122
        %v1719 = vpop.permute.xlu0 %1718
        %1720 = vrot.lane.b32.xlu0 %v1703, 122
        %v1721 = vpop.permute.xlu0 %1720
        %v1722 = vsel %vm1554, %v1711, %v1713
        %v1723 = vsel %vm1554, %v1715, %v1717
        %v1724 = vsel %vm1554, %v1719, %v1721
        %v1728 = vadd.f32 %v1500, %v1722
        %v1729 = vadd.f32 %v1501, %v1723
        %v1730 = vadd.f32 %v1502, %v1724
        %v1731 = vstv %s294
        %v1732 = vmul.f32 %v1731, %v344
        %v1733 = vmul.f32 %v1731, %v394
        %v1734 = vmul.f32 %v1731, %v345
        %v1735 = vmul.f32 %v1731, %v395
        %v1736 = vmul.f32 %v1731, %v346
        %v1737 = vmul.f32 %v1731, %v396
        %1744 = vrot.lane.b32.xlu0 %v1732, 122
        %v1745 = vpop.permute.xlu0 %1744
        %1746 = vrot.lane.b32.xlu0 %v1733, 122
        %v1747 = vpop.permute.xlu0 %1746
        %1748 = vrot.lane.b32.xlu0 %v1734, 122
        %v1749 = vpop.permute.xlu0 %1748
        %1750 = vrot.lane.b32.xlu0 %v1735, 122
        %v1751 = vpop.permute.xlu0 %1750
        %1752 = vrot.lane.b32.xlu0 %v1736, 122
        %v1753 = vpop.permute.xlu0 %1752
        %1754 = vrot.lane.b32.xlu0 %v1737, 122
        %v1755 = vpop.permute.xlu0 %1754
        %v1756 = vsel %vm1554, %v1745, %v1747
        %v1757 = vsel %vm1554, %v1749, %v1751
        %v1758 = vsel %vm1554, %v1753, %v1755
        %v1762 = vadd.f32 %v1534, %v1756
        %v1763 = vadd.f32 %v1535, %v1757
        %v1764 = vadd.f32 %v1536, %v1758
        %v1765 = vld [vmem:[%s204] sm:$0xff]
        %v1766 = vld [vmem:[%s204 + $0x10] sm:$0xff]
        %v1767 = vld [vmem:[%s204 + $0x20] sm:$0xff]
        %v1768 = vstv %s295
        %v1769 = vmul.f32 %v1768, %v1765
        %v1770 = vmul.f32 %v1768, %v1766
        %v1771 = vadd.f32 %v1559, %v1769
        %v1772 = vadd.f32 %v1560, %v1770
        %v1773 = vstv %s302
        %v1774 = vmul.f32 %v1773, %v1765
        %v1775 = vmul.f32 %v1773, %v1766
        %v1776 = vmul.f32 %v1773, %v1767
        %v1777 = vadd.f32 %v1592, %v1774
        %v1778 = vadd.f32 %v1593, %v1775
        %v1779 = vadd.f32 %v1594, %v1776
        %v1780 = vstv %s309
        %v1781 = vmul.f32 %v1780, %v1765
        %v1782 = vmul.f32 %v1780, %v1766
        %v1783 = vmul.f32 %v1780, %v1767
        %v1784 = vadd.f32 %v1626, %v1781
        %v1785 = vadd.f32 %v1627, %v1782
        %v1786 = vadd.f32 %v1628, %v1783
        %v1787 = vstv %s316
        %v1788 = vmul.f32 %v1787, %v1765
        %v1789 = vmul.f32 %v1787, %v1766
        %v1790 = vmul.f32 %v1787, %v1767
        %v1791 = vadd.f32 %v1660, %v1788
        %v1792 = vadd.f32 %v1661, %v1789
        %v1793 = vadd.f32 %v1662, %v1790
        %v1794 = vstv %s323
        %v1795 = vmul.f32 %v1794, %v1765
        %v1796 = vmul.f32 %v1794, %v1766
        %v1797 = vmul.f32 %v1794, %v1767
        %v1798 = vadd.f32 %v1694, %v1795
        %v1799 = vadd.f32 %v1695, %v1796
        %v1800 = vadd.f32 %v1696, %v1797
        %v1801 = vstv %s330
        %v1802 = vmul.f32 %v1801, %v1765
        %v1803 = vmul.f32 %v1801, %v1766
        %v1804 = vmul.f32 %v1801, %v1767
        %v1805 = vadd.f32 %v1728, %v1802
        %v1806 = vadd.f32 %v1729, %v1803
        %v1807 = vadd.f32 %v1730, %v1804
        %v1808 = vstv %s337
        %v1809 = vmul.f32 %v1808, %v1765
        %v1810 = vmul.f32 %v1808, %v1766
        %v1811 = vmul.f32 %v1808, %v1767
        %v1812 = vadd.f32 %v1762, %v1809
        %v1813 = vadd.f32 %v1763, %v1810
        %v1814 = vadd.f32 %v1764, %v1811
        %v1815 = vld [vmem:[%s204 + $0x8] sm:$0xff]
        %v1816 = vld [vmem:[%s204 + $0x18] sm:$0xff]
        %v1817 = vld [vmem:[%s204 + $0x28] sm:$0xff]
        %v1818 = vstv %s296
        %v1819 = vmul.f32 %v1818, %v1765
        %v1820 = vmul.f32 %v1818, %v1815
        %v1821 = vmul.f32 %v1818, %v1766
        %v1822 = vmul.f32 %v1818, %v1816
        %1827 = vrot.lane.b32.xlu0 %v1819, 127
        %v1828 = vpop.permute.xlu0 %1827
        %1829 = vrot.lane.b32.xlu0 %v1820, 127
        %v1830 = vpop.permute.xlu0 %1829
        %1831 = vrot.lane.b32.xlu0 %v1821, 127
        %v1832 = vpop.permute.xlu0 %1831
        %1833 = vrot.lane.b32.xlu0 %v1822, 127
        %v1834 = vpop.permute.xlu0 %1833
        %v1835 = vsel %vm414, %v1828, %v1830
        %v1836 = vsel %vm414, %v1832, %v1834
        %v1839 = vadd.f32 %v1771, %v1835
        %v1840 = vadd.f32 %v1772, %v1836
        %v1841 = vstv %s303
        %v1842 = vmul.f32 %v1841, %v1765
        %v1843 = vmul.f32 %v1841, %v1815
        %v1844 = vmul.f32 %v1841, %v1766
        %v1845 = vmul.f32 %v1841, %v1816
        %v1846 = vmul.f32 %v1841, %v1767
        %v1847 = vmul.f32 %v1841, %v1817
        %1854 = vrot.lane.b32.xlu0 %v1842, 127
        %v1855 = vpop.permute.xlu0 %1854
        %1856 = vrot.lane.b32.xlu0 %v1843, 127
        %v1857 = vpop.permute.xlu0 %1856
        %1858 = vrot.lane.b32.xlu0 %v1844, 127
        %v1859 = vpop.permute.xlu0 %1858
        %1860 = vrot.lane.b32.xlu0 %v1845, 127
        %v1861 = vpop.permute.xlu0 %1860
        %1862 = vrot.lane.b32.xlu0 %v1846, 127
        %v1863 = vpop.permute.xlu0 %1862
        %1864 = vrot.lane.b32.xlu0 %v1847, 127
        %v1865 = vpop.permute.xlu0 %1864
        %v1866 = vsel %vm414, %v1855, %v1857
        %v1867 = vsel %vm414, %v1859, %v1861
        %v1868 = vsel %vm414, %v1863, %v1865
        %v1872 = vadd.f32 %v1777, %v1866
        %v1873 = vadd.f32 %v1778, %v1867
        %v1874 = vadd.f32 %v1779, %v1868
        %v1875 = vstv %s310
        %v1876 = vmul.f32 %v1875, %v1765
        %v1877 = vmul.f32 %v1875, %v1815
        %v1878 = vmul.f32 %v1875, %v1766
        %v1879 = vmul.f32 %v1875, %v1816
        %v1880 = vmul.f32 %v1875, %v1767
        %v1881 = vmul.f32 %v1875, %v1817
        %1888 = vrot.lane.b32.xlu0 %v1876, 127
        %v1889 = vpop.permute.xlu0 %1888
        %1890 = vrot.lane.b32.xlu0 %v1877, 127
        %v1891 = vpop.permute.xlu0 %1890
        %1892 = vrot.lane.b32.xlu0 %v1878, 127
        %v1893 = vpop.permute.xlu0 %1892
        %1894 = vrot.lane.b32.xlu0 %v1879, 127
        %v1895 = vpop.permute.xlu0 %1894
        %1896 = vrot.lane.b32.xlu0 %v1880, 127
        %v1897 = vpop.permute.xlu0 %1896
        %1898 = vrot.lane.b32.xlu0 %v1881, 127
        %v1899 = vpop.permute.xlu0 %1898
        %v1900 = vsel %vm414, %v1889, %v1891
        %v1901 = vsel %vm414, %v1893, %v1895
        %v1902 = vsel %vm414, %v1897, %v1899
        %v1906 = vadd.f32 %v1784, %v1900
        %v1907 = vadd.f32 %v1785, %v1901
        %v1908 = vadd.f32 %v1786, %v1902
        %v1909 = vstv %s317
        %v1910 = vmul.f32 %v1909, %v1765
        %v1911 = vmul.f32 %v1909, %v1815
        %v1912 = vmul.f32 %v1909, %v1766
        %v1913 = vmul.f32 %v1909, %v1816
        %v1914 = vmul.f32 %v1909, %v1767
        %v1915 = vmul.f32 %v1909, %v1817
        %1922 = vrot.lane.b32.xlu0 %v1910, 127
        %v1923 = vpop.permute.xlu0 %1922
        %1924 = vrot.lane.b32.xlu0 %v1911, 127
        %v1925 = vpop.permute.xlu0 %1924
        %1926 = vrot.lane.b32.xlu0 %v1912, 127
        %v1927 = vpop.permute.xlu0 %1926
        %1928 = vrot.lane.b32.xlu0 %v1913, 127
        %v1929 = vpop.permute.xlu0 %1928
        %1930 = vrot.lane.b32.xlu0 %v1914, 127
        %v1931 = vpop.permute.xlu0 %1930
        %1932 = vrot.lane.b32.xlu0 %v1915, 127
        %v1933 = vpop.permute.xlu0 %1932
        %v1934 = vsel %vm414, %v1923, %v1925
        %v1935 = vsel %vm414, %v1927, %v1929
        %v1936 = vsel %vm414, %v1931, %v1933
        %v1940 = vadd.f32 %v1791, %v1934
        %v1941 = vadd.f32 %v1792, %v1935
        %v1942 = vadd.f32 %v1793, %v1936
        %v1943 = vstv %s324
        %v1944 = vmul.f32 %v1943, %v1765
        %v1945 = vmul.f32 %v1943, %v1815
        %v1946 = vmul.f32 %v1943, %v1766
        %v1947 = vmul.f32 %v1943, %v1816
        %v1948 = vmul.f32 %v1943, %v1767
        %v1949 = vmul.f32 %v1943, %v1817
        %1956 = vrot.lane.b32.xlu0 %v1944, 127
        %v1957 = vpop.permute.xlu0 %1956
        %1958 = vrot.lane.b32.xlu0 %v1945, 127
        %v1959 = vpop.permute.xlu0 %1958
        %1960 = vrot.lane.b32.xlu0 %v1946, 127
        %v1961 = vpop.permute.xlu0 %1960
        %1962 = vrot.lane.b32.xlu0 %v1947, 127
        %v1963 = vpop.permute.xlu0 %1962
        %1964 = vrot.lane.b32.xlu0 %v1948, 127
        %v1965 = vpop.permute.xlu0 %1964
        %1966 = vrot.lane.b32.xlu0 %v1949, 127
        %v1967 = vpop.permute.xlu0 %1966
        %v1968 = vsel %vm414, %v1957, %v1959
        %v1969 = vsel %vm414, %v1961, %v1963
        %v1970 = vsel %vm414, %v1965, %v1967
        %v1974 = vadd.f32 %v1798, %v1968
        %v1975 = vadd.f32 %v1799, %v1969
        %v1976 = vadd.f32 %v1800, %v1970
        %v1977 = vstv %s331
        %v1978 = vmul.f32 %v1977, %v1765
        %v1979 = vmul.f32 %v1977, %v1815
        %v1980 = vmul.f32 %v1977, %v1766
        %v1981 = vmul.f32 %v1977, %v1816
        %v1982 = vmul.f32 %v1977, %v1767
        %v1983 = vmul.f32 %v1977, %v1817
        %1990 = vrot.lane.b32.xlu0 %v1978, 127
        %v1991 = vpop.permute.xlu0 %1990
        %1992 = vrot.lane.b32.xlu0 %v1979, 127
        %v1993 = vpop.permute.xlu0 %1992
        %1994 = vrot.lane.b32.xlu0 %v1980, 127
        %v1995 = vpop.permute.xlu0 %1994
        %1996 = vrot.lane.b32.xlu0 %v1981, 127
        %v1997 = vpop.permute.xlu0 %1996
        %1998 = vrot.lane.b32.xlu0 %v1982, 127
        %v1999 = vpop.permute.xlu0 %1998
        %2000 = vrot.lane.b32.xlu0 %v1983, 127
        %v2001 = vpop.permute.xlu0 %2000
        %v2002 = vsel %vm414, %v1991, %v1993
        %v2003 = vsel %vm414, %v1995, %v1997
        %v2004 = vsel %vm414, %v1999, %v2001
        %v2008 = vadd.f32 %v1805, %v2002
        %v2009 = vadd.f32 %v1806, %v2003
        %v2010 = vadd.f32 %v1807, %v2004
        %v2011 = vstv %s338
        %v2012 = vmul.f32 %v2011, %v1765
        %v2013 = vmul.f32 %v2011, %v1815
        %v2014 = vmul.f32 %v2011, %v1766
        %v2015 = vmul.f32 %v2011, %v1816
        %v2016 = vmul.f32 %v2011, %v1767
        %v2017 = vmul.f32 %v2011, %v1817
        %2024 = vrot.lane.b32.xlu0 %v2012, 127
        %v2025 = vpop.permute.xlu0 %2024
        %2026 = vrot.lane.b32.xlu0 %v2013, 127
        %v2027 = vpop.permute.xlu0 %2026
        %2028 = vrot.lane.b32.xlu0 %v2014, 127
        %v2029 = vpop.permute.xlu0 %2028
        %2030 = vrot.lane.b32.xlu0 %v2015, 127
        %v2031 = vpop.permute.xlu0 %2030
        %2032 = vrot.lane.b32.xlu0 %v2016, 127
        %v2033 = vpop.permute.xlu0 %2032
        %2034 = vrot.lane.b32.xlu0 %v2017, 127
        %v2035 = vpop.permute.xlu0 %2034
        %v2036 = vsel %vm414, %v2025, %v2027
        %v2037 = vsel %vm414, %v2029, %v2031
        %v2038 = vsel %vm414, %v2033, %v2035
        %v2042 = vadd.f32 %v1812, %v2036
        %v2043 = vadd.f32 %v1813, %v2037
        %v2044 = vadd.f32 %v1814, %v2038
        %v2045 = vstv %s297
        %v2046 = vmul.f32 %v2045, %v1765
        %v2047 = vmul.f32 %v2045, %v1815
        %v2048 = vmul.f32 %v2045, %v1766
        %v2049 = vmul.f32 %v2045, %v1816
        %2054 = vrot.lane.b32.xlu0 %v2046, 126
        %v2055 = vpop.permute.xlu0 %2054
        %2056 = vrot.lane.b32.xlu0 %v2047, 126
        %v2057 = vpop.permute.xlu0 %2056
        %2058 = vrot.lane.b32.xlu0 %v2048, 126
        %v2059 = vpop.permute.xlu0 %2058
        %2060 = vrot.lane.b32.xlu0 %v2049, 126
        %v2061 = vpop.permute.xlu0 %2060
        %v2062 = vsel %vm642, %v2055, %v2057
        %v2063 = vsel %vm642, %v2059, %v2061
        %v2066 = vadd.f32 %v1839, %v2062
        %v2067 = vadd.f32 %v1840, %v2063
        %v2068 = vstv %s304
        %v2069 = vmul.f32 %v2068, %v1765
        %v2070 = vmul.f32 %v2068, %v1815
        %v2071 = vmul.f32 %v2068, %v1766
        %v2072 = vmul.f32 %v2068, %v1816
        %v2073 = vmul.f32 %v2068, %v1767
        %v2074 = vmul.f32 %v2068, %v1817
        %2081 = vrot.lane.b32.xlu0 %v2069, 126
        %v2082 = vpop.permute.xlu0 %2081
        %2083 = vrot.lane.b32.xlu0 %v2070, 126
        %v2084 = vpop.permute.xlu0 %2083
        %2085 = vrot.lane.b32.xlu0 %v2071, 126
        %v2086 = vpop.permute.xlu0 %2085
        %2087 = vrot.lane.b32.xlu0 %v2072, 126
        %v2088 = vpop.permute.xlu0 %2087
        %2089 = vrot.lane.b32.xlu0 %v2073, 126
        %v2090 = vpop.permute.xlu0 %2089
        %2091 = vrot.lane.b32.xlu0 %v2074, 126
        %v2092 = vpop.permute.xlu0 %2091
        %v2093 = vsel %vm642, %v2082, %v2084
        %v2094 = vsel %vm642, %v2086, %v2088
        %v2095 = vsel %vm642, %v2090, %v2092
        %v2099 = vadd.f32 %v1872, %v2093
        %v2100 = vadd.f32 %v1873, %v2094
        %v2101 = vadd.f32 %v1874, %v2095
        %v2102 = vstv %s311
        %v2103 = vmul.f32 %v2102, %v1765
        %v2104 = vmul.f32 %v2102, %v1815
        %v2105 = vmul.f32 %v2102, %v1766
        %v2106 = vmul.f32 %v2102, %v1816
        %v2107 = vmul.f32 %v2102, %v1767
        %v2108 = vmul.f32 %v2102, %v1817
        %2115 = vrot.lane.b32.xlu0 %v2103, 126
        %v2116 = vpop.permute.xlu0 %2115
        %2117 = vrot.lane.b32.xlu0 %v2104, 126
        %v2118 = vpop.permute.xlu0 %2117
        %2119 = vrot.lane.b32.xlu0 %v2105, 126
        %v2120 = vpop.permute.xlu0 %2119
        %2121 = vrot.lane.b32.xlu0 %v2106, 126
        %v2122 = vpop.permute.xlu0 %2121
        %2123 = vrot.lane.b32.xlu0 %v2107, 126
        %v2124 = vpop.permute.xlu0 %2123
        %2125 = vrot.lane.b32.xlu0 %v2108, 126
        %v2126 = vpop.permute.xlu0 %2125
        %v2127 = vsel %vm642, %v2116, %v2118
        %v2128 = vsel %vm642, %v2120, %v2122
        %v2129 = vsel %vm642, %v2124, %v2126
        %v2133 = vadd.f32 %v1906, %v2127
        %v2134 = vadd.f32 %v1907, %v2128
        %v2135 = vadd.f32 %v1908, %v2129
        %v2136 = vstv %s318
        %v2137 = vmul.f32 %v2136, %v1765
        %v2138 = vmul.f32 %v2136, %v1815
        %v2139 = vmul.f32 %v2136, %v1766
        %v2140 = vmul.f32 %v2136, %v1816
        %v2141 = vmul.f32 %v2136, %v1767
        %v2142 = vmul.f32 %v2136, %v1817
        %2149 = vrot.lane.b32.xlu0 %v2137, 126
        %v2150 = vpop.permute.xlu0 %2149
        %2151 = vrot.lane.b32.xlu0 %v2138, 126
        %v2152 = vpop.permute.xlu0 %2151
        %2153 = vrot.lane.b32.xlu0 %v2139, 126
        %v2154 = vpop.permute.xlu0 %2153
        %2155 = vrot.lane.b32.xlu0 %v2140, 126
        %v2156 = vpop.permute.xlu0 %2155
        %2157 = vrot.lane.b32.xlu0 %v2141, 126
        %v2158 = vpop.permute.xlu0 %2157
        %2159 = vrot.lane.b32.xlu0 %v2142, 126
        %v2160 = vpop.permute.xlu0 %2159
        %v2161 = vsel %vm642, %v2150, %v2152
        %v2162 = vsel %vm642, %v2154, %v2156
        %v2163 = vsel %vm642, %v2158, %v2160
        %v2167 = vadd.f32 %v1940, %v2161
        %v2168 = vadd.f32 %v1941, %v2162
        %v2169 = vadd.f32 %v1942, %v2163
        %v2170 = vstv %s325
        %v2171 = vmul.f32 %v2170, %v1765
        %v2172 = vmul.f32 %v2170, %v1815
        %v2173 = vmul.f32 %v2170, %v1766
        %v2174 = vmul.f32 %v2170, %v1816
        %v2175 = vmul.f32 %v2170, %v1767
        %v2176 = vmul.f32 %v2170, %v1817
        %2183 = vrot.lane.b32.xlu0 %v2171, 126
        %v2184 = vpop.permute.xlu0 %2183
        %2185 = vrot.lane.b32.xlu0 %v2172, 126
        %v2186 = vpop.permute.xlu0 %2185
        %2187 = vrot.lane.b32.xlu0 %v2173, 126
        %v2188 = vpop.permute.xlu0 %2187
        %2189 = vrot.lane.b32.xlu0 %v2174, 126
        %v2190 = vpop.permute.xlu0 %2189
        %2191 = vrot.lane.b32.xlu0 %v2175, 126
        %v2192 = vpop.permute.xlu0 %2191
        %2193 = vrot.lane.b32.xlu0 %v2176, 126
        %v2194 = vpop.permute.xlu0 %2193
        %v2195 = vsel %vm642, %v2184, %v2186
        %v2196 = vsel %vm642, %v2188, %v2190
        %v2197 = vsel %vm642, %v2192, %v2194
        %v2201 = vadd.f32 %v1974, %v2195
        %v2202 = vadd.f32 %v1975, %v2196
        %v2203 = vadd.f32 %v1976, %v2197
        %v2204 = vstv %s332
        %v2205 = vmul.f32 %v2204, %v1765
        %v2206 = vmul.f32 %v2204, %v1815
        %v2207 = vmul.f32 %v2204, %v1766
        %v2208 = vmul.f32 %v2204, %v1816
        %v2209 = vmul.f32 %v2204, %v1767
        %v2210 = vmul.f32 %v2204, %v1817
        %2217 = vrot.lane.b32.xlu0 %v2205, 126
        %v2218 = vpop.permute.xlu0 %2217
        %2219 = vrot.lane.b32.xlu0 %v2206, 126
        %v2220 = vpop.permute.xlu0 %2219
        %2221 = vrot.lane.b32.xlu0 %v2207, 126
        %v2222 = vpop.permute.xlu0 %2221
        %2223 = vrot.lane.b32.xlu0 %v2208, 126
        %v2224 = vpop.permute.xlu0 %2223
        %2225 = vrot.lane.b32.xlu0 %v2209, 126
        %v2226 = vpop.permute.xlu0 %2225
        %2227 = vrot.lane.b32.xlu0 %v2210, 126
        %v2228 = vpop.permute.xlu0 %2227
        %v2229 = vsel %vm642, %v2218, %v2220
        %v2230 = vsel %vm642, %v2222, %v2224
        %v2231 = vsel %vm642, %v2226, %v2228
        %v2235 = vadd.f32 %v2008, %v2229
        %v2236 = vadd.f32 %v2009, %v2230
        %v2237 = vadd.f32 %v2010, %v2231
        %v2238 = vstv %s339
        %v2239 = vmul.f32 %v2238, %v1765
        %v2240 = vmul.f32 %v2238, %v1815
        %v2241 = vmul.f32 %v2238, %v1766
        %v2242 = vmul.f32 %v2238, %v1816
        %v2243 = vmul.f32 %v2238, %v1767
        %v2244 = vmul.f32 %v2238, %v1817
        %2251 = vrot.lane.b32.xlu0 %v2239, 126
        %v2252 = vpop.permute.xlu0 %2251
        %2253 = vrot.lane.b32.xlu0 %v2240, 126
        %v2254 = vpop.permute.xlu0 %2253
        %2255 = vrot.lane.b32.xlu0 %v2241, 126
        %v2256 = vpop.permute.xlu0 %2255
        %2257 = vrot.lane.b32.xlu0 %v2242, 126
        %v2258 = vpop.permute.xlu0 %2257
        %2259 = vrot.lane.b32.xlu0 %v2243, 126
        %v2260 = vpop.permute.xlu0 %2259
        %2261 = vrot.lane.b32.xlu0 %v2244, 126
        %v2262 = vpop.permute.xlu0 %2261
        %v2263 = vsel %vm642, %v2252, %v2254
        %v2264 = vsel %vm642, %v2256, %v2258
        %v2265 = vsel %vm642, %v2260, %v2262
        %v2269 = vadd.f32 %v2042, %v2263
        %v2270 = vadd.f32 %v2043, %v2264
        %v2271 = vadd.f32 %v2044, %v2265
        %v2272 = vstv %s298
        %v2273 = vmul.f32 %v2272, %v1765
        %v2274 = vmul.f32 %v2272, %v1815
        %v2275 = vmul.f32 %v2272, %v1766
        %v2276 = vmul.f32 %v2272, %v1816
        %2281 = vrot.lane.b32.xlu0 %v2273, 125
        %v2282 = vpop.permute.xlu0 %2281
        %2283 = vrot.lane.b32.xlu0 %v2274, 125
        %v2284 = vpop.permute.xlu0 %2283
        %2285 = vrot.lane.b32.xlu0 %v2275, 125
        %v2286 = vpop.permute.xlu0 %2285
        %2287 = vrot.lane.b32.xlu0 %v2276, 125
        %v2288 = vpop.permute.xlu0 %2287
        %v2289 = vsel %vm870, %v2282, %v2284
        %v2290 = vsel %vm870, %v2286, %v2288
        %v2293 = vadd.f32 %v2066, %v2289
        %v2294 = vadd.f32 %v2067, %v2290
        %v2295 = vstv %s305
        %v2296 = vmul.f32 %v2295, %v1765
        %v2297 = vmul.f32 %v2295, %v1815
        %v2298 = vmul.f32 %v2295, %v1766
        %v2299 = vmul.f32 %v2295, %v1816
        %v2300 = vmul.f32 %v2295, %v1767
        %v2301 = vmul.f32 %v2295, %v1817
        %2308 = vrot.lane.b32.xlu0 %v2296, 125
        %v2309 = vpop.permute.xlu0 %2308
        %2310 = vrot.lane.b32.xlu0 %v2297, 125
        %v2311 = vpop.permute.xlu0 %2310
        %2312 = vrot.lane.b32.xlu0 %v2298, 125
        %v2313 = vpop.permute.xlu0 %2312
        %2314 = vrot.lane.b32.xlu0 %v2299, 125
        %v2315 = vpop.permute.xlu0 %2314
        %2316 = vrot.lane.b32.xlu0 %v2300, 125
        %v2317 = vpop.permute.xlu0 %2316
        %2318 = vrot.lane.b32.xlu0 %v2301, 125
        %v2319 = vpop.permute.xlu0 %2318
        %v2320 = vsel %vm870, %v2309, %v2311
        %v2321 = vsel %vm870, %v2313, %v2315
        %v2322 = vsel %vm870, %v2317, %v2319
        %v2326 = vadd.f32 %v2099, %v2320
        %v2327 = vadd.f32 %v2100, %v2321
        %v2328 = vadd.f32 %v2101, %v2322
        %v2329 = vstv %s312
        %v2330 = vmul.f32 %v2329, %v1765
        %v2331 = vmul.f32 %v2329, %v1815
        %v2332 = vmul.f32 %v2329, %v1766
        %v2333 = vmul.f32 %v2329, %v1816
        %v2334 = vmul.f32 %v2329, %v1767
        %v2335 = vmul.f32 %v2329, %v1817
        %2342 = vrot.lane.b32.xlu0 %v2330, 125
        %v2343 = vpop.permute.xlu0 %2342
        %2344 = vrot.lane.b32.xlu0 %v2331, 125
        %v2345 = vpop.permute.xlu0 %2344
        %2346 = vrot.lane.b32.xlu0 %v2332, 125
        %v2347 = vpop.permute.xlu0 %2346
        %2348 = vrot.lane.b32.xlu0 %v2333, 125
        %v2349 = vpop.permute.xlu0 %2348
        %2350 = vrot.lane.b32.xlu0 %v2334, 125
        %v2351 = vpop.permute.xlu0 %2350
        %2352 = vrot.lane.b32.xlu0 %v2335, 125
        %v2353 = vpop.permute.xlu0 %2352
        %v2354 = vsel %vm870, %v2343, %v2345
        %v2355 = vsel %vm870, %v2347, %v2349
        %v2356 = vsel %vm870, %v2351, %v2353
        %v2360 = vadd.f32 %v2133, %v2354
        %v2361 = vadd.f32 %v2134, %v2355
        %v2362 = vadd.f32 %v2135, %v2356
        %v2363 = vstv %s319
        %v2364 = vmul.f32 %v2363, %v1765
        %v2365 = vmul.f32 %v2363, %v1815
        %v2366 = vmul.f32 %v2363, %v1766
        %v2367 = vmul.f32 %v2363, %v1816
        %v2368 = vmul.f32 %v2363, %v1767
        %v2369 = vmul.f32 %v2363, %v1817
        %2376 = vrot.lane.b32.xlu0 %v2364, 125
        %v2377 = vpop.permute.xlu0 %2376
        %2378 = vrot.lane.b32.xlu0 %v2365, 125
        %v2379 = vpop.permute.xlu0 %2378
        %2380 = vrot.lane.b32.xlu0 %v2366, 125
        %v2381 = vpop.permute.xlu0 %2380
        %2382 = vrot.lane.b32.xlu0 %v2367, 125
        %v2383 = vpop.permute.xlu0 %2382
        %2384 = vrot.lane.b32.xlu0 %v2368, 125
        %v2385 = vpop.permute.xlu0 %2384
        %2386 = vrot.lane.b32.xlu0 %v2369, 125
        %v2387 = vpop.permute.xlu0 %2386
        %v2388 = vsel %vm870, %v2377, %v2379
        %v2389 = vsel %vm870, %v2381, %v2383
        %v2390 = vsel %vm870, %v2385, %v2387
        %v2394 = vadd.f32 %v2167, %v2388
        %v2395 = vadd.f32 %v2168, %v2389
        %v2396 = vadd.f32 %v2169, %v2390
        %v2397 = vstv %s326
        %v2398 = vmul.f32 %v2397, %v1765
        %v2399 = vmul.f32 %v2397, %v1815
        %v2400 = vmul.f32 %v2397, %v1766
        %v2401 = vmul.f32 %v2397, %v1816
        %v2402 = vmul.f32 %v2397, %v1767
        %v2403 = vmul.f32 %v2397, %v1817
        %2410 = vrot.lane.b32.xlu0 %v2398, 125
        %v2411 = vpop.permute.xlu0 %2410
        %2412 = vrot.lane.b32.xlu0 %v2399, 125
        %v2413 = vpop.permute.xlu0 %2412
        %2414 = vrot.lane.b32.xlu0 %v2400, 125
        %v2415 = vpop.permute.xlu0 %2414
        %2416 = vrot.lane.b32.xlu0 %v2401, 125
        %v2417 = vpop.permute.xlu0 %2416
        %2418 = vrot.lane.b32.xlu0 %v2402, 125
        %v2419 = vpop.permute.xlu0 %2418
        %2420 = vrot.lane.b32.xlu0 %v2403, 125
        %v2421 = vpop.permute.xlu0 %2420
        %v2422 = vsel %vm870, %v2411, %v2413
        %v2423 = vsel %vm870, %v2415, %v2417
        %v2424 = vsel %vm870, %v2419, %v2421
        %v2428 = vadd.f32 %v2201, %v2422
        %v2429 = vadd.f32 %v2202, %v2423
        %v2430 = vadd.f32 %v2203, %v2424
        %v2431 = vstv %s333
        %v2432 = vmul.f32 %v2431, %v1765
        %v2433 = vmul.f32 %v2431, %v1815
        %v2434 = vmul.f32 %v2431, %v1766
        %v2435 = vmul.f32 %v2431, %v1816
        %v2436 = vmul.f32 %v2431, %v1767
        %v2437 = vmul.f32 %v2431, %v1817
        %2444 = vrot.lane.b32.xlu0 %v2432, 125
        %v2445 = vpop.permute.xlu0 %2444
        %2446 = vrot.lane.b32.xlu0 %v2433, 125
        %v2447 = vpop.permute.xlu0 %2446
        %2448 = vrot.lane.b32.xlu0 %v2434, 125
        %v2449 = vpop.permute.xlu0 %2448
        %2450 = vrot.lane.b32.xlu0 %v2435, 125
        %v2451 = vpop.permute.xlu0 %2450
        %2452 = vrot.lane.b32.xlu0 %v2436, 125
        %v2453 = vpop.permute.xlu0 %2452
        %2454 = vrot.lane.b32.xlu0 %v2437, 125
        %v2455 = vpop.permute.xlu0 %2454
        %v2456 = vsel %vm870, %v2445, %v2447
        %v2457 = vsel %vm870, %v2449, %v2451
        %v2458 = vsel %vm870, %v2453, %v2455
        %v2462 = vadd.f32 %v2235, %v2456
        %v2463 = vadd.f32 %v2236, %v2457
        %v2464 = vadd.f32 %v2237, %v2458
        %v2465 = vstv %s340
        %v2466 = vmul.f32 %v2465, %v1765
        %v2467 = vmul.f32 %v2465, %v1815
        %v2468 = vmul.f32 %v2465, %v1766
        %v2469 = vmul.f32 %v2465, %v1816
        %v2470 = vmul.f32 %v2465, %v1767
        %v2471 = vmul.f32 %v2465, %v1817
        %2478 = vrot.lane.b32.xlu0 %v2466, 125
        %v2479 = vpop.permute.xlu0 %2478
        %2480 = vrot.lane.b32.xlu0 %v2467, 125
        %v2481 = vpop.permute.xlu0 %2480
        %2482 = vrot.lane.b32.xlu0 %v2468, 125
        %v2483 = vpop.permute.xlu0 %2482
        %2484 = vrot.lane.b32.xlu0 %v2469, 125
        %v2485 = vpop.permute.xlu0 %2484
        %2486 = vrot.lane.b32.xlu0 %v2470, 125
        %v2487 = vpop.permute.xlu0 %2486
        %2488 = vrot.lane.b32.xlu0 %v2471, 125
        %v2489 = vpop.permute.xlu0 %2488
        %v2490 = vsel %vm870, %v2479, %v2481
        %v2491 = vsel %vm870, %v2483, %v2485
        %v2492 = vsel %vm870, %v2487, %v2489
        %v2496 = vadd.f32 %v2269, %v2490
        %v2497 = vadd.f32 %v2270, %v2491
        %v2498 = vadd.f32 %v2271, %v2492
        %v2499 = vstv %s299
        %v2500 = vmul.f32 %v2499, %v1765
        %v2501 = vmul.f32 %v2499, %v1815
        %v2502 = vmul.f32 %v2499, %v1766
        %v2503 = vmul.f32 %v2499, %v1816
        %2508 = vrot.lane.b32.xlu0 %v2500, 124
        %v2509 = vpop.permute.xlu0 %2508
        %2510 = vrot.lane.b32.xlu0 %v2501, 124
        %v2511 = vpop.permute.xlu0 %2510
        %2512 = vrot.lane.b32.xlu0 %v2502, 124
        %v2513 = vpop.permute.xlu0 %2512
        %2514 = vrot.lane.b32.xlu0 %v2503, 124
        %v2515 = vpop.permute.xlu0 %2514
        %v2516 = vsel %vm1098, %v2509, %v2511
        %v2517 = vsel %vm1098, %v2513, %v2515
        %v2520 = vadd.f32 %v2293, %v2516
        %v2521 = vadd.f32 %v2294, %v2517
        %v2522 = vstv %s306
        %v2523 = vmul.f32 %v2522, %v1765
        %v2524 = vmul.f32 %v2522, %v1815
        %v2525 = vmul.f32 %v2522, %v1766
        %v2526 = vmul.f32 %v2522, %v1816
        %v2527 = vmul.f32 %v2522, %v1767
        %v2528 = vmul.f32 %v2522, %v1817
        %2535 = vrot.lane.b32.xlu0 %v2523, 124
        %v2536 = vpop.permute.xlu0 %2535
        %2537 = vrot.lane.b32.xlu0 %v2524, 124
        %v2538 = vpop.permute.xlu0 %2537
        %2539 = vrot.lane.b32.xlu0 %v2525, 124
        %v2540 = vpop.permute.xlu0 %2539
        %2541 = vrot.lane.b32.xlu0 %v2526, 124
        %v2542 = vpop.permute.xlu0 %2541
        %2543 = vrot.lane.b32.xlu0 %v2527, 124
        %v2544 = vpop.permute.xlu0 %2543
        %2545 = vrot.lane.b32.xlu0 %v2528, 124
        %v2546 = vpop.permute.xlu0 %2545
        %v2547 = vsel %vm1098, %v2536, %v2538
        %v2548 = vsel %vm1098, %v2540, %v2542
        %v2549 = vsel %vm1098, %v2544, %v2546
        %v2553 = vadd.f32 %v2326, %v2547
        %v2554 = vadd.f32 %v2327, %v2548
        %v2555 = vadd.f32 %v2328, %v2549
        %v2556 = vstv %s313
        %v2557 = vmul.f32 %v2556, %v1765
        %v2558 = vmul.f32 %v2556, %v1815
        %v2559 = vmul.f32 %v2556, %v1766
        %v2560 = vmul.f32 %v2556, %v1816
        %v2561 = vmul.f32 %v2556, %v1767
        %v2562 = vmul.f32 %v2556, %v1817
        %2569 = vrot.lane.b32.xlu0 %v2557, 124
        %v2570 = vpop.permute.xlu0 %2569
        %2571 = vrot.lane.b32.xlu0 %v2558, 124
        %v2572 = vpop.permute.xlu0 %2571
        %2573 = vrot.lane.b32.xlu0 %v2559, 124
        %v2574 = vpop.permute.xlu0 %2573
        %2575 = vrot.lane.b32.xlu0 %v2560, 124
        %v2576 = vpop.permute.xlu0 %2575
        %2577 = vrot.lane.b32.xlu0 %v2561, 124
        %v2578 = vpop.permute.xlu0 %2577
        %2579 = vrot.lane.b32.xlu0 %v2562, 124
        %v2580 = vpop.permute.xlu0 %2579
        %v2581 = vsel %vm1098, %v2570, %v2572
        %v2582 = vsel %vm1098, %v2574, %v2576
        %v2583 = vsel %vm1098, %v2578, %v2580
        %v2587 = vadd.f32 %v2360, %v2581
        %v2588 = vadd.f32 %v2361, %v2582
        %v2589 = vadd.f32 %v2362, %v2583
        %v2590 = vstv %s320
        %v2591 = vmul.f32 %v2590, %v1765
        %v2592 = vmul.f32 %v2590, %v1815
        %v2593 = vmul.f32 %v2590, %v1766
        %v2594 = vmul.f32 %v2590, %v1816
        %v2595 = vmul.f32 %v2590, %v1767
        %v2596 = vmul.f32 %v2590, %v1817
        %2603 = vrot.lane.b32.xlu0 %v2591, 124
        %v2604 = vpop.permute.xlu0 %2603
        %2605 = vrot.lane.b32.xlu0 %v2592, 124
        %v2606 = vpop.permute.xlu0 %2605
        %2607 = vrot.lane.b32.xlu0 %v2593, 124
        %v2608 = vpop.permute.xlu0 %2607
        %2609 = vrot.lane.b32.xlu0 %v2594, 124
        %v2610 = vpop.permute.xlu0 %2609
        %2611 = vrot.lane.b32.xlu0 %v2595, 124
        %v2612 = vpop.permute.xlu0 %2611
        %2613 = vrot.lane.b32.xlu0 %v2596, 124
        %v2614 = vpop.permute.xlu0 %2613
        %v2615 = vsel %vm1098, %v2604, %v2606
        %v2616 = vsel %vm1098, %v2608, %v2610
        %v2617 = vsel %vm1098, %v2612, %v2614
        %v2621 = vadd.f32 %v2394, %v2615
        %v2622 = vadd.f32 %v2395, %v2616
        %v2623 = vadd.f32 %v2396, %v2617
        %v2624 = vstv %s327
        %v2625 = vmul.f32 %v2624, %v1765
        %v2626 = vmul.f32 %v2624, %v1815
        %v2627 = vmul.f32 %v2624, %v1766
        %v2628 = vmul.f32 %v2624, %v1816
        %v2629 = vmul.f32 %v2624, %v1767
        %v2630 = vmul.f32 %v2624, %v1817
        %2637 = vrot.lane.b32.xlu0 %v2625, 124
        %v2638 = vpop.permute.xlu0 %2637
        %2639 = vrot.lane.b32.xlu0 %v2626, 124
        %v2640 = vpop.permute.xlu0 %2639
        %2641 = vrot.lane.b32.xlu0 %v2627, 124
        %v2642 = vpop.permute.xlu0 %2641
        %2643 = vrot.lane.b32.xlu0 %v2628, 124
        %v2644 = vpop.permute.xlu0 %2643
        %2645 = vrot.lane.b32.xlu0 %v2629, 124
        %v2646 = vpop.permute.xlu0 %2645
        %2647 = vrot.lane.b32.xlu0 %v2630, 124
        %v2648 = vpop.permute.xlu0 %2647
        %v2649 = vsel %vm1098, %v2638, %v2640
        %v2650 = vsel %vm1098, %v2642, %v2644
        %v2651 = vsel %vm1098, %v2646, %v2648
        %v2655 = vadd.f32 %v2428, %v2649
        %v2656 = vadd.f32 %v2429, %v2650
        %v2657 = vadd.f32 %v2430, %v2651
        %v2658 = vstv %s334
        %v2659 = vmul.f32 %v2658, %v1765
        %v2660 = vmul.f32 %v2658, %v1815
        %v2661 = vmul.f32 %v2658, %v1766
        %v2662 = vmul.f32 %v2658, %v1816
        %v2663 = vmul.f32 %v2658, %v1767
        %v2664 = vmul.f32 %v2658, %v1817
        %2671 = vrot.lane.b32.xlu0 %v2659, 124
        %v2672 = vpop.permute.xlu0 %2671
        %2673 = vrot.lane.b32.xlu0 %v2660, 124
        %v2674 = vpop.permute.xlu0 %2673
        %2675 = vrot.lane.b32.xlu0 %v2661, 124
        %v2676 = vpop.permute.xlu0 %2675
        %2677 = vrot.lane.b32.xlu0 %v2662, 124
        %v2678 = vpop.permute.xlu0 %2677
        %2679 = vrot.lane.b32.xlu0 %v2663, 124
        %v2680 = vpop.permute.xlu0 %2679
        %2681 = vrot.lane.b32.xlu0 %v2664, 124
        %v2682 = vpop.permute.xlu0 %2681
        %v2683 = vsel %vm1098, %v2672, %v2674
        %v2684 = vsel %vm1098, %v2676, %v2678
        %v2685 = vsel %vm1098, %v2680, %v2682
        %v2689 = vadd.f32 %v2462, %v2683
        %v2690 = vadd.f32 %v2463, %v2684
        %v2691 = vadd.f32 %v2464, %v2685
        %v2692 = vstv %s341
        %v2693 = vmul.f32 %v2692, %v1765
        %v2694 = vmul.f32 %v2692, %v1815
        %v2695 = vmul.f32 %v2692, %v1766
        %v2696 = vmul.f32 %v2692, %v1816
        %v2697 = vmul.f32 %v2692, %v1767
        %v2698 = vmul.f32 %v2692, %v1817
        %2705 = vrot.lane.b32.xlu0 %v2693, 124
        %v2706 = vpop.permute.xlu0 %2705
        %2707 = vrot.lane.b32.xlu0 %v2694, 124
        %v2708 = vpop.permute.xlu0 %2707
        %2709 = vrot.lane.b32.xlu0 %v2695, 124
        %v2710 = vpop.permute.xlu0 %2709
        %2711 = vrot.lane.b32.xlu0 %v2696, 124
        %v2712 = vpop.permute.xlu0 %2711
        %2713 = vrot.lane.b32.xlu0 %v2697, 124
        %v2714 = vpop.permute.xlu0 %2713
        %2715 = vrot.lane.b32.xlu0 %v2698, 124
        %v2716 = vpop.permute.xlu0 %2715
        %v2717 = vsel %vm1098, %v2706, %v2708
        %v2718 = vsel %vm1098, %v2710, %v2712
        %v2719 = vsel %vm1098, %v2714, %v2716
        %v2723 = vadd.f32 %v2496, %v2717
        %v2724 = vadd.f32 %v2497, %v2718
        %v2725 = vadd.f32 %v2498, %v2719
        %v2726 = vstv %s300
        %v2727 = vmul.f32 %v2726, %v1765
        %v2728 = vmul.f32 %v2726, %v1815
        %v2729 = vmul.f32 %v2726, %v1766
        %v2730 = vmul.f32 %v2726, %v1816
        %2735 = vrot.lane.b32.xlu0 %v2727, 123
        %v2736 = vpop.permute.xlu0 %2735
        %2737 = vrot.lane.b32.xlu0 %v2728, 123
        %v2738 = vpop.permute.xlu0 %2737
        %2739 = vrot.lane.b32.xlu0 %v2729, 123
        %v2740 = vpop.permute.xlu0 %2739
        %2741 = vrot.lane.b32.xlu0 %v2730, 123
        %v2742 = vpop.permute.xlu0 %2741
        %v2743 = vsel %vm1326, %v2736, %v2738
        %v2744 = vsel %vm1326, %v2740, %v2742
        %v2747 = vadd.f32 %v2520, %v2743
        %v2748 = vadd.f32 %v2521, %v2744
        %v2749 = vstv %s307
        %v2750 = vmul.f32 %v2749, %v1765
        %v2751 = vmul.f32 %v2749, %v1815
        %v2752 = vmul.f32 %v2749, %v1766
        %v2753 = vmul.f32 %v2749, %v1816
        %v2754 = vmul.f32 %v2749, %v1767
        %v2755 = vmul.f32 %v2749, %v1817
        %2762 = vrot.lane.b32.xlu0 %v2750, 123
        %v2763 = vpop.permute.xlu0 %2762
        %2764 = vrot.lane.b32.xlu0 %v2751, 123
        %v2765 = vpop.permute.xlu0 %2764
        %2766 = vrot.lane.b32.xlu0 %v2752, 123
        %v2767 = vpop.permute.xlu0 %2766
        %2768 = vrot.lane.b32.xlu0 %v2753, 123
        %v2769 = vpop.permute.xlu0 %2768
        %2770 = vrot.lane.b32.xlu0 %v2754, 123
        %v2771 = vpop.permute.xlu0 %2770
        %2772 = vrot.lane.b32.xlu0 %v2755, 123
        %v2773 = vpop.permute.xlu0 %2772
        %v2774 = vsel %vm1326, %v2763, %v2765
        %v2775 = vsel %vm1326, %v2767, %v2769
        %v2776 = vsel %vm1326, %v2771, %v2773
        %v2780 = vadd.f32 %v2553, %v2774
        %v2781 = vadd.f32 %v2554, %v2775
        %v2782 = vadd.f32 %v2555, %v2776
        %v2783 = vstv %s314
        %v2784 = vmul.f32 %v2783, %v1765
        %v2785 = vmul.f32 %v2783, %v1815
        %v2786 = vmul.f32 %v2783, %v1766
        %v2787 = vmul.f32 %v2783, %v1816
        %v2788 = vmul.f32 %v2783, %v1767
        %v2789 = vmul.f32 %v2783, %v1817
        %2796 = vrot.lane.b32.xlu0 %v2784, 123
        %v2797 = vpop.permute.xlu0 %2796
        %2798 = vrot.lane.b32.xlu0 %v2785, 123
        %v2799 = vpop.permute.xlu0 %2798
        %2800 = vrot.lane.b32.xlu0 %v2786, 123
        %v2801 = vpop.permute.xlu0 %2800
        %2802 = vrot.lane.b32.xlu0 %v2787, 123
        %v2803 = vpop.permute.xlu0 %2802
        %2804 = vrot.lane.b32.xlu0 %v2788, 123
        %v2805 = vpop.permute.xlu0 %2804
        %2806 = vrot.lane.b32.xlu0 %v2789, 123
        %v2807 = vpop.permute.xlu0 %2806
        %v2808 = vsel %vm1326, %v2797, %v2799
        %v2809 = vsel %vm1326, %v2801, %v2803
        %v2810 = vsel %vm1326, %v2805, %v2807
        %v2814 = vadd.f32 %v2587, %v2808
        %v2815 = vadd.f32 %v2588, %v2809
        %v2816 = vadd.f32 %v2589, %v2810
        %v2817 = vstv %s321
        %v2818 = vmul.f32 %v2817, %v1765
        %v2819 = vmul.f32 %v2817, %v1815
        %v2820 = vmul.f32 %v2817, %v1766
        %v2821 = vmul.f32 %v2817, %v1816
        %v2822 = vmul.f32 %v2817, %v1767
        %v2823 = vmul.f32 %v2817, %v1817
        %2830 = vrot.lane.b32.xlu0 %v2818, 123
        %v2831 = vpop.permute.xlu0 %2830
        %2832 = vrot.lane.b32.xlu0 %v2819, 123
        %v2833 = vpop.permute.xlu0 %2832
        %2834 = vrot.lane.b32.xlu0 %v2820, 123
        %v2835 = vpop.permute.xlu0 %2834
        %2836 = vrot.lane.b32.xlu0 %v2821, 123
        %v2837 = vpop.permute.xlu0 %2836
        %2838 = vrot.lane.b32.xlu0 %v2822, 123
        %v2839 = vpop.permute.xlu0 %2838
        %2840 = vrot.lane.b32.xlu0 %v2823, 123
        %v2841 = vpop.permute.xlu0 %2840
        %v2842 = vsel %vm1326, %v2831, %v2833
        %v2843 = vsel %vm1326, %v2835, %v2837
        %v2844 = vsel %vm1326, %v2839, %v2841
        %v2848 = vadd.f32 %v2621, %v2842
        %v2849 = vadd.f32 %v2622, %v2843
        %v2850 = vadd.f32 %v2623, %v2844
        %v2851 = vstv %s328
        %v2852 = vmul.f32 %v2851, %v1765
        %v2853 = vmul.f32 %v2851, %v1815
        %v2854 = vmul.f32 %v2851, %v1766
        %v2855 = vmul.f32 %v2851, %v1816
        %v2856 = vmul.f32 %v2851, %v1767
        %v2857 = vmul.f32 %v2851, %v1817
        %2864 = vrot.lane.b32.xlu0 %v2852, 123
        %v2865 = vpop.permute.xlu0 %2864
        %2866 = vrot.lane.b32.xlu0 %v2853, 123
        %v2867 = vpop.permute.xlu0 %2866
        %2868 = vrot.lane.b32.xlu0 %v2854, 123
        %v2869 = vpop.permute.xlu0 %2868
        %2870 = vrot.lane.b32.xlu0 %v2855, 123
        %v2871 = vpop.permute.xlu0 %2870
        %2872 = vrot.lane.b32.xlu0 %v2856, 123
        %v2873 = vpop.permute.xlu0 %2872
        %2874 = vrot.lane.b32.xlu0 %v2857, 123
        %v2875 = vpop.permute.xlu0 %2874
        %v2876 = vsel %vm1326, %v2865, %v2867
        %v2877 = vsel %vm1326, %v2869, %v2871
        %v2878 = vsel %vm1326, %v2873, %v2875
        %v2882 = vadd.f32 %v2655, %v2876
        %v2883 = vadd.f32 %v2656, %v2877
        %v2884 = vadd.f32 %v2657, %v2878
        %v2885 = vstv %s335
        %v2886 = vmul.f32 %v2885, %v1765
        %v2887 = vmul.f32 %v2885, %v1815
        %v2888 = vmul.f32 %v2885, %v1766
        %v2889 = vmul.f32 %v2885, %v1816
        %v2890 = vmul.f32 %v2885, %v1767
        %v2891 = vmul.f32 %v2885, %v1817
        %2898 = vrot.lane.b32.xlu0 %v2886, 123
        %v2899 = vpop.permute.xlu0 %2898
        %2900 = vrot.lane.b32.xlu0 %v2887, 123
        %v2901 = vpop.permute.xlu0 %2900
        %2902 = vrot.lane.b32.xlu0 %v2888, 123
        %v2903 = vpop.permute.xlu0 %2902
        %2904 = vrot.lane.b32.xlu0 %v2889, 123
        %v2905 = vpop.permute.xlu0 %2904
        %2906 = vrot.lane.b32.xlu0 %v2890, 123
        %v2907 = vpop.permute.xlu0 %2906
        %2908 = vrot.lane.b32.xlu0 %v2891, 123
        %v2909 = vpop.permute.xlu0 %2908
        %v2910 = vsel %vm1326, %v2899, %v2901
        %v2911 = vsel %vm1326, %v2903, %v2905
        %v2912 = vsel %vm1326, %v2907, %v2909
        %v2916 = vadd.f32 %v2689, %v2910
        %v2917 = vadd.f32 %v2690, %v2911
        %v2918 = vadd.f32 %v2691, %v2912
        %v2919 = vstv %s342
        %v2920 = vmul.f32 %v2919, %v1765
        %v2921 = vmul.f32 %v2919, %v1815
        %v2922 = vmul.f32 %v2919, %v1766
        %v2923 = vmul.f32 %v2919, %v1816
        %v2924 = vmul.f32 %v2919, %v1767
        %v2925 = vmul.f32 %v2919, %v1817
        %2932 = vrot.lane.b32.xlu0 %v2920, 123
        %v2933 = vpop.permute.xlu0 %2932
        %2934 = vrot.lane.b32.xlu0 %v2921, 123
        %v2935 = vpop.permute.xlu0 %2934
        %2936 = vrot.lane.b32.xlu0 %v2922, 123
        %v2937 = vpop.permute.xlu0 %2936
        %2938 = vrot.lane.b32.xlu0 %v2923, 123
        %v2939 = vpop.permute.xlu0 %2938
        %2940 = vrot.lane.b32.xlu0 %v2924, 123
        %v2941 = vpop.permute.xlu0 %2940
        %2942 = vrot.lane.b32.xlu0 %v2925, 123
        %v2943 = vpop.permute.xlu0 %2942
        %v2944 = vsel %vm1326, %v2933, %v2935
        %v2945 = vsel %vm1326, %v2937, %v2939
        %v2946 = vsel %vm1326, %v2941, %v2943
        %v2950 = vadd.f32 %v2723, %v2944
        %v2951 = vadd.f32 %v2724, %v2945
        %v2952 = vadd.f32 %v2725, %v2946
        %v2953 = vstv %s301
        %v2954 = vmul.f32 %v2953, %v1765
        %v2955 = vmul.f32 %v2953, %v1815
        %v2956 = vmul.f32 %v2953, %v1766
        %v2957 = vmul.f32 %v2953, %v1816
        %2962 = vrot.lane.b32.xlu0 %v2954, 122
        %v2963 = vpop.permute.xlu0 %2962
        %2964 = vrot.lane.b32.xlu0 %v2955, 122
        %v2965 = vpop.permute.xlu0 %2964
        %2966 = vrot.lane.b32.xlu0 %v2956, 122
        %v2967 = vpop.permute.xlu0 %2966
        %2968 = vrot.lane.b32.xlu0 %v2957, 122
        %v2969 = vpop.permute.xlu0 %2968
        %v2970 = vsel %vm1554, %v2963, %v2965
        %v2971 = vsel %vm1554, %v2967, %v2969
        %v2974 = vadd.f32 %v2747, %v2970
        %v2975 = vadd.f32 %v2748, %v2971
        %v2976 = vstv %s308
        %v2977 = vmul.f32 %v2976, %v1765
        %v2978 = vmul.f32 %v2976, %v1815
        %v2979 = vmul.f32 %v2976, %v1766
        %v2980 = vmul.f32 %v2976, %v1816
        %v2981 = vmul.f32 %v2976, %v1767
        %v2982 = vmul.f32 %v2976, %v1817
        %2989 = vrot.lane.b32.xlu0 %v2977, 122
        %v2990 = vpop.permute.xlu0 %2989
        %2991 = vrot.lane.b32.xlu0 %v2978, 122
        %v2992 = vpop.permute.xlu0 %2991
        %2993 = vrot.lane.b32.xlu0 %v2979, 122
        %v2994 = vpop.permute.xlu0 %2993
        %2995 = vrot.lane.b32.xlu0 %v2980, 122
        %v2996 = vpop.permute.xlu0 %2995
        %2997 = vrot.lane.b32.xlu0 %v2981, 122
        %v2998 = vpop.permute.xlu0 %2997
        %2999 = vrot.lane.b32.xlu0 %v2982, 122
        %v3000 = vpop.permute.xlu0 %2999
        %v3001 = vsel %vm1554, %v2990, %v2992
        %v3002 = vsel %vm1554, %v2994, %v2996
        %v3003 = vsel %vm1554, %v2998, %v3000
        %v3007 = vadd.f32 %v2780, %v3001
        %v3008 = vadd.f32 %v2781, %v3002
        %v3009 = vadd.f32 %v2782, %v3003
        %v3010 = vstv %s315
        %v3011 = vmul.f32 %v3010, %v1765
        %v3012 = vmul.f32 %v3010, %v1815
        %v3013 = vmul.f32 %v3010, %v1766
        %v3014 = vmul.f32 %v3010, %v1816
        %v3015 = vmul.f32 %v3010, %v1767
        %v3016 = vmul.f32 %v3010, %v1817
        %3023 = vrot.lane.b32.xlu0 %v3011, 122
        %v3024 = vpop.permute.xlu0 %3023
        %3025 = vrot.lane.b32.xlu0 %v3012, 122
        %v3026 = vpop.permute.xlu0 %3025
        %3027 = vrot.lane.b32.xlu0 %v3013, 122
        %v3028 = vpop.permute.xlu0 %3027
        %3029 = vrot.lane.b32.xlu0 %v3014, 122
        %v3030 = vpop.permute.xlu0 %3029
        %3031 = vrot.lane.b32.xlu0 %v3015, 122
        %v3032 = vpop.permute.xlu0 %3031
        %3033 = vrot.lane.b32.xlu0 %v3016, 122
        %v3034 = vpop.permute.xlu0 %3033
        %v3035 = vsel %vm1554, %v3024, %v3026
        %v3036 = vsel %vm1554, %v3028, %v3030
        %v3037 = vsel %vm1554, %v3032, %v3034
        %v3041 = vadd.f32 %v2814, %v3035
        %v3042 = vadd.f32 %v2815, %v3036
        %v3043 = vadd.f32 %v2816, %v3037
        %v3044 = vstv %s322
        %v3045 = vmul.f32 %v3044, %v1765
        %v3046 = vmul.f32 %v3044, %v1815
        %v3047 = vmul.f32 %v3044, %v1766
        %v3048 = vmul.f32 %v3044, %v1816
        %v3049 = vmul.f32 %v3044, %v1767
        %v3050 = vmul.f32 %v3044, %v1817
        %3057 = vrot.lane.b32.xlu0 %v3045, 122
        %v3058 = vpop.permute.xlu0 %3057
        %3059 = vrot.lane.b32.xlu0 %v3046, 122
        %v3060 = vpop.permute.xlu0 %3059
        %3061 = vrot.lane.b32.xlu0 %v3047, 122
        %v3062 = vpop.permute.xlu0 %3061
        %3063 = vrot.lane.b32.xlu0 %v3048, 122
        %v3064 = vpop.permute.xlu0 %3063
        %3065 = vrot.lane.b32.xlu0 %v3049, 122
        %v3066 = vpop.permute.xlu0 %3065
        %3067 = vrot.lane.b32.xlu0 %v3050, 122
        %v3068 = vpop.permute.xlu0 %3067
        %v3069 = vsel %vm1554, %v3058, %v3060
        %v3070 = vsel %vm1554, %v3062, %v3064
        %v3071 = vsel %vm1554, %v3066, %v3068
        %v3075 = vadd.f32 %v2848, %v3069
        %v3076 = vadd.f32 %v2849, %v3070
        %v3077 = vadd.f32 %v2850, %v3071
        %v3078 = vstv %s329
        %v3079 = vmul.f32 %v3078, %v1765
        %v3080 = vmul.f32 %v3078, %v1815
        %v3081 = vmul.f32 %v3078, %v1766
        %v3082 = vmul.f32 %v3078, %v1816
        %v3083 = vmul.f32 %v3078, %v1767
        %v3084 = vmul.f32 %v3078, %v1817
        %3091 = vrot.lane.b32.xlu0 %v3079, 122
        %v3092 = vpop.permute.xlu0 %3091
        %3093 = vrot.lane.b32.xlu0 %v3080, 122
        %v3094 = vpop.permute.xlu0 %3093
        %3095 = vrot.lane.b32.xlu0 %v3081, 122
        %v3096 = vpop.permute.xlu0 %3095
        %3097 = vrot.lane.b32.xlu0 %v3082, 122
        %v3098 = vpop.permute.xlu0 %3097
        %3099 = vrot.lane.b32.xlu0 %v3083, 122
        %v3100 = vpop.permute.xlu0 %3099
        %3101 = vrot.lane.b32.xlu0 %v3084, 122
        %v3102 = vpop.permute.xlu0 %3101
        %v3103 = vsel %vm1554, %v3092, %v3094
        %v3104 = vsel %vm1554, %v3096, %v3098
        %v3105 = vsel %vm1554, %v3100, %v3102
        %v3109 = vadd.f32 %v2882, %v3103
        %v3110 = vadd.f32 %v2883, %v3104
        %v3111 = vadd.f32 %v2884, %v3105
        %v3112 = vstv %s336
        %v3113 = vmul.f32 %v3112, %v1765
        %v3114 = vmul.f32 %v3112, %v1815
        %v3115 = vmul.f32 %v3112, %v1766
        %v3116 = vmul.f32 %v3112, %v1816
        %v3117 = vmul.f32 %v3112, %v1767
        %v3118 = vmul.f32 %v3112, %v1817
        %3125 = vrot.lane.b32.xlu0 %v3113, 122
        %v3126 = vpop.permute.xlu0 %3125
        %3127 = vrot.lane.b32.xlu0 %v3114, 122
        %v3128 = vpop.permute.xlu0 %3127
        %3129 = vrot.lane.b32.xlu0 %v3115, 122
        %v3130 = vpop.permute.xlu0 %3129
        %3131 = vrot.lane.b32.xlu0 %v3116, 122
        %v3132 = vpop.permute.xlu0 %3131
        %3133 = vrot.lane.b32.xlu0 %v3117, 122
        %v3134 = vpop.permute.xlu0 %3133
        %3135 = vrot.lane.b32.xlu0 %v3118, 122
        %v3136 = vpop.permute.xlu0 %3135
        %v3137 = vsel %vm1554, %v3126, %v3128
        %v3138 = vsel %vm1554, %v3130, %v3132
        %v3139 = vsel %vm1554, %v3134, %v3136
        %v3143 = vadd.f32 %v2916, %v3137
        %v3144 = vadd.f32 %v2917, %v3138
        %v3145 = vadd.f32 %v2918, %v3139
        %v3146 = vstv %s343
        %v3147 = vmul.f32 %v3146, %v1765
        %v3148 = vmul.f32 %v3146, %v1815
        %v3149 = vmul.f32 %v3146, %v1766
        %v3150 = vmul.f32 %v3146, %v1816
        %v3151 = vmul.f32 %v3146, %v1767
        %v3152 = vmul.f32 %v3146, %v1817
        %3159 = vrot.lane.b32.xlu0 %v3147, 122
        %v3160 = vpop.permute.xlu0 %3159
        %3161 = vrot.lane.b32.xlu0 %v3148, 122
        %v3162 = vpop.permute.xlu0 %3161
        %3163 = vrot.lane.b32.xlu0 %v3149, 122
        %v3164 = vpop.permute.xlu0 %3163
        %3165 = vrot.lane.b32.xlu0 %v3150, 122
        %v3166 = vpop.permute.xlu0 %3165
        %3167 = vrot.lane.b32.xlu0 %v3151, 122
        %v3168 = vpop.permute.xlu0 %3167
        %3169 = vrot.lane.b32.xlu0 %v3152, 122
        %v3170 = vpop.permute.xlu0 %3169
        %v3171 = vsel %vm1554, %v3160, %v3162
        %v3172 = vsel %vm1554, %v3164, %v3166
        %v3173 = vsel %vm1554, %v3168, %v3170
        %v3177 = vadd.f32 %v2950, %v3171
        %v3178 = vadd.f32 %v2951, %v3172
        %v3179 = vadd.f32 %v2952, %v3173
        %vm3183 = vcmask 1046528
        %v3184 = vrot.slane %v3007, 1
        %v3185 = vrot.slane %v3008, 1
        %v3186 = vsel %vm3183, %v3184, %v3185
        %v3187 = vrot.slane %v3009, 1
        %v3188 = vsel %vm3183, %v3185, %v3187
        %v3191 = vadd.f32 %v2974, %v3186
        %v3192 = vadd.f32 %v2975, %v3188
        %vm3196 = vcmask 1045504
        %v3197 = vrot.slane %v3041, 2
        %v3198 = vrot.slane %v3042, 2
        %v3199 = vsel %vm3196, %v3197, %v3198
        %v3200 = vrot.slane %v3043, 2
        %v3201 = vsel %vm3196, %v3198, %v3200
        %v3204 = vadd.f32 %v3191, %v3199
        %v3205 = vadd.f32 %v3192, %v3201
        %vm3209 = vcmask 1044480
        %v3210 = vrot.slane %v3075, 3
        %v3211 = vrot.slane %v3076, 3
        %v3212 = vsel %vm3209, %v3210, %v3211
        %v3213 = vrot.slane %v3077, 3
        %v3214 = vsel %vm3209, %v3211, %v3213
        %v3217 = vadd.f32 %v3204, %v3212
        %v3218 = vadd.f32 %v3205, %v3214
        %vm3222 = vcmask 1043456
        %v3223 = vrot.slane %v3109, 4
        %v3224 = vrot.slane %v3110, 4
        %v3225 = vsel %vm3222, %v3223, %v3224
        %v3226 = vrot.slane %v3111, 4
        %v3227 = vsel %vm3222, %v3224, %v3226
        %v3230 = vadd.f32 %v3217, %v3225
        %v3231 = vadd.f32 %v3218, %v3227
        %v3235 = vrot.slane %v3143, 5
        %v3236 = vrot.slane %v3144, 5
        %v3237 = vsel %vm210, %v3235, %v3236
        %v3238 = vrot.slane %v3145, 5
        %v3239 = vsel %vm210, %v3236, %v3238
        %v3242 = vadd.f32 %v3230, %v3237
        %v3243 = vadd.f32 %v3231, %v3239
        %vm3247 = vcmask 1041408
        %v3248 = vrot.slane %v3177, 6
        %v3249 = vrot.slane %v3178, 6
        %v3250 = vsel %vm3247, %v3248, %v3249
        %v3251 = vrot.slane %v3179, 6
        %v3252 = vsel %vm3247, %v3249, %v3251
        %v3255 = vadd.f32 %v3242, %v3250
        %v3256 = vadd.f32 %v3243, %v3252
        %v3257 = vxor.u32 %v3255, 2147483648
        %v3258 = vxor.u32 %v3256, 2147483648
        %v3259 = vmul.f32 %v3257, 1.442695
        %v3260 = vpow.pop %v3259
        %v3261 = vmul.f32 %v3258, 1.442695
        %v3262 = vpow.pop %v3261
        %v3263 = vadd.f32 %v3260, 1.0
        %v3264 = vadd.f32 %v3262, 1.0
        %v3265 = vrcp.pop %v3263
        %v3266 = vmul.f32 1.0, %v3265
        %v3267 = vrcp.pop %v3264
        %v3268 = vmul.f32 1.0, %v3267
        %vm3269 = vcmask 130048
        %3270 = vst.msk [vmem:[%s173] sm:$0xff] %vm3269, %v3266
        %3271 = vst.msk [vmem:[%s173 + $0x8] sm:$0xff] %vm3269, %v3268
        %s3272 = sand.u32 %s75, 1
        %s3273 = scalar_lea.sflag [#allocation5], %s3272
        %s3274 = sand.u32 %s75, 1
        %s3275 = smul.addr %s3274, 16
        %s3276 = scalar_lea.vmem [#allocation8], %s3275
        // Predicated region
        $region37: #{tpu_custom_call.1} parent=27 // pred_check
          %p3277 = pneg %p85
        $region38: #{tpu_custom_call.1} parent=27 // pred_check_branch
          %3279 = sbr.rel (%p3277) target = $region40
        $region39: #{tpu_custom_call.1} parent=27 // pred_region
          %s3281 = ssub.s32 256, 256
          %3282 = vsyncadd %s3273, %s3281
          %s3283 = smul.addr %s20, 2
          %s3284 = smul.addr %s3283, 128
          %s3285 = scalar_lea.hbm %s2, %s3284
          %s3286 = sshll.u32 %s3276, 4
          %s3287 = int_to_ptr.vmem [resolvable:$true] %s3286
          %3292 = dma.vmem_to_hbm [thread:$0]  %s3287, 256, %s3285, %s3273, 128, 128, 8
        $region40: #{tpu_custom_call.1} parent=27 // pred_fallthru
          _
      $region28: #{tpu_custom_call.1} parent=5 // pred_fallthru
        _
      %p3293 = scmp.le.s32.totalorder 2, %s15
      // Predicated region
      $region41: #{tpu_custom_call.1} parent=5 // pred_check
        %p3294 = pneg %p3293
      $region42: #{tpu_custom_call.1} parent=5 // pred_check_branch
        %3296 = sbr.rel (%p3294) target = $region44
      $region43: #{tpu_custom_call.1} parent=5 // pred_region
        %s3297 = ssub.s32 %s15, 2
        // Predicated region
        $region45: #{tpu_custom_call.1} parent=43 // pred_check
          %p3298 = pneg %p91
        $region46: #{tpu_custom_call.1} parent=43 // pred_check_branch
          %3300 = sbr.rel (%p3298) target = $region48
        $region47: #{tpu_custom_call.1} parent=43 // pred_region
          %s3301 = sand.u32 %s76, 1
          %s3302 = scalar_lea.sflag [#allocation5], %s3301
          %s3303 = sand.u32 %s76, 1
          %s3304 = smul.addr %s3303, 16
          %s3305 = scalar_lea.vmem [#allocation8], %s3304
          %3306 = dma.done %s3302, 256
        $region48: #{tpu_custom_call.1} parent=43 // pred_fallthru
          _
      $region44: #{tpu_custom_call.1} parent=5 // pred_fallthru
        _
    $region6: #{tpu_custom_call.1} parent=1 // loop_footer
      %s19 = sadd.s32 1, %s15
    $region7: #{tpu_custom_call.1} parent=1 // loop_footer_branch
      %14 = sbr.rel target = $region3
    $region8: #{tpu_custom_call.1} parent=1 // loop_exit
      _
    %3307 = vsyncpa [#allocation4], 1
    %s3308 = scalar_lea.sflag [#allocation4], 1
    %3309 = vsyncpa %s3308, 1
    %3310 = vsyncpa [#allocation5], 1
    %s3311 = scalar_lea.sflag [#allocation5], 1
    %3312 = vsyncpa %s3311, 1
    %3313 = vsyncpa [#allocation6], 1
    %s3314 = scalar_lea.sflag [#allocation6], 1
    %3315 = vsyncpa %s3314, 1

</llo_original>
